<compile_context>
chip_gen: v7x
topology: tpu7x:2x2x1
jax: 0.10.0
libtpu: 0.0.40
codegen_flags: <defaults>
</compile_context>

<pallas_src>
import jax
import jax.numpy as jnp
from jax.experimental import pallas as pl
from jax.experimental.pallas import tpu as pltpu

_BN_EPS = 1e-5
_LN_EPS = 1e-5


# -----------------------------------------------------------------------------
# small helpers for row tiling / padding
# -----------------------------------------------------------------------------
def _choose_tile(n, max_tile=512):
    n16 = -(-n // 16) * 16            # multiple of 16 rows (bf16 sublane pairs)
    tile = min(max_tile, n16)
    n_pad = -(-n16 // tile) * tile
    return tile, n_pad


def _pad_rows(x, n_pad):
    n = x.shape[0]
    if n == n_pad:
        return x
    pads = [(0, n_pad - n)] + [(0, 0)] * (x.ndim - 1)
    return jnp.pad(x, pads)


# -----------------------------------------------------------------------------
# Pallas kernel 1: fused backbone head + BiGRU input projections
#   feat = relu(x @ W_fold + b_fold)         (res + proj + eval-BN folded)
#   gi   = feat @ [Wih_f.T | Wih_b.T] + [bih_f | bih_b]   (one matmul, 768 lanes)
# -----------------------------------------------------------------------------
def _head_kernel(x_ref, wh_ref, bh_ref, wg_ref, bg_ref, o_ref):
    z = jnp.dot(x_ref[...], wh_ref[...],
                preferred_element_type=jnp.float32) + bh_ref[...]
    feat = jnp.maximum(z, 0.0).astype(jnp.bfloat16)          # f32 ReLU -> bf16
    o_ref[...] = jnp.dot(feat, wg_ref[...],
                         preferred_element_type=jnp.float32) + bg_ref[...]


def head_gru_in(x_rows, hp, gp):
    """x_rows: (N, 1280) rows ordered t-major -> (N, 6H) gate pre-activations."""
    n, f = x_rows.shape
    g3 = gp["wih_f"].shape[0]

    # fold (res + proj) Linear and eval-mode BatchNorm1d into one weight/bias
    scale = hp["bn_g"] * jax.lax.rsqrt(hp["bn_v"] + _BN_EPS)                # (D,)
    w_head = (((hp["res_w"] + hp["proj_w"]) * scale[:, None]).T).astype(jnp.bfloat16)
    b_head = ((hp["res_b"] + hp["proj_b"] - hp["bn_m"]) * scale + hp["bn_b"])[None, :]
    # concatenate both GRU-input projections -> one (D, 6H) matmul
    wg = jnp.concatenate([gp["wih_f"].T, gp["wih_b"].T], axis=1).astype(jnp.bfloat16)
    bg = jnp.concatenate([gp["bih_f"], gp["bih_b"]])[None, :]

    tile, n_pad = _choose_tile(n)
    x = _pad_rows(x_rows.astype(jnp.bfloat16), n_pad)
    full = lambda a: pl.BlockSpec(a.shape, lambda i: (0, 0))
    out = pl.pallas_call(
        _head_kernel,
        out_shape=jax.ShapeDtypeStruct((n_pad, 2 * g3), jnp.float32),
        grid=(n_pad // tile,),
        in_specs=[pl.BlockSpec((tile, f), lambda i: (i, 0)),
                  full(w_head), full(b_head), full(wg), full(bg)],
        out_specs=pl.BlockSpec((tile, 2 * g3), lambda i: (i, 0)),
        compiler_params=pltpu.CompilerParams(dimension_semantics=("parallel",)),
    )(x, w_head, b_head, wg, bg)
    return out[:n]


# -----------------------------------------------------------------------------
# Pallas kernel 2: BiGRU recurrence only (input projections already done).
# Forward and backward directions interleaved in one (unrolled) loop.
# g: (T, B, 6H) with PyTorch gate order [r, z, n]; output (T, B, 2H).
# -----------------------------------------------------------------------------
def _bigru_kernel(g_ref, whf_ref, bhf_ref, whb_ref, bhb_ref, o_ref):
    t_len, b, g6 = g_ref.shape
    h_dim = g6 // 6
    g3 = 3 * h_dim

    # hoist loop-invariant weight / bias reads out of the recurrence
    whf = whf_ref[...]
    whb = whb_ref[...]
    bhf = bhf_ref[...]
    bhb = bhb_ref[...]

    def gru_step(gi, h, wh, bh):
        gh = jnp.dot(h.astype(jnp.bfloat16), wh,
                     preferred_element_type=jnp.float32) + bh
        r = jax.nn.sigmoid(gi[:, 0:h_dim] + gh[:, 0:h_dim])
        z = jax.nn.sigmoid(gi[:, h_dim:2 * h_dim] + gh[:, h_dim:2 * h_dim])
        n = jnp.tanh(gi[:, 2 * h_dim:g3] + r * gh[:, 2 * h_dim:g3])
        return (1.0 - z) * n + z * h

    h0 = jnp.zeros((b, h_dim), jnp.float32)

    def body(i, carry):
        hf, hb = carry
        tb = t_len - 1 - i
        hf = gru_step(g_ref[i, :, 0:g3], hf, whf, bhf)
        hb = gru_step(g_ref[tb, :, g3:2 * g3], hb, whb, bhb)
        o_ref[i, :, 0:h_dim] = hf
        o_ref[tb, :, h_dim:2 * h_dim] = hb
        return (hf, hb)

    if t_len <= 32:                       # fully unrolled at trace time
        carry = (h0, h0)
        for i in range(t_len):
            carry = body(i, carry)
    else:
        jax.lax.fori_loop(0, t_len, body, (h0, h0), unroll=2)


def bigru_rec(gi, gp):
    t, b, g6 = gi.shape
    h = g6 // 6
    whf = gp["whh_f"].T.astype(jnp.bfloat16)
    whb = gp["whh_b"].T.astype(jnp.bfloat16)
    bhf = gp["bhh_f"][None, :]
    bhb = gp["bhh_b"][None, :]
    vm = lambda: pl.BlockSpec(memory_space=pltpu.MemorySpace.VMEM)
    return pl.pallas_call(
        _bigru_kernel,
        out_shape=jax.ShapeDtypeStruct((t, b, 2 * h), jnp.float32),
        in_specs=[vm() for _ in range(5)],
        out_specs=vm(),
    )(gi, whf, bhf, whb, bhb)


# -----------------------------------------------------------------------------
# Pallas kernel 3: fused Mamba SSM
#   prologue : U = gru_out @ B.T        (one batched MXU matmul, stays in VMEM)
#   body     : h_t = GELU(h_{t-1} @ A.T + U_t)
#   epilogue : y = hs @ C.T ; LayerNorm ; fc (output padded to 128 lanes)
# -----------------------------------------------------------------------------
def _mamba_fused_kernel(g_ref, bt_ref, at_ref, ct_ref, lg_ref, lb_ref,
                        wfc_ref, bfc_ref, o_ref, u_ref, hs_ref):
    t_len, b, in_dim = g_ref.shape
    h_dim = at_ref.shape[0]

    # ---- prologue: input projection, done once off the recurrent path ----
    g_flat = g_ref[...].reshape(t_len * b, in_dim).astype(jnp.bfloat16)
    u_ref[...] = jnp.dot(g_flat, bt_ref[...],
                         preferred_element_type=jnp.float32).reshape(t_len, b, h_dim)

    # ---- serial recurrence ----
    at = at_ref[...]                                       # bf16, loop-invariant
    h0 = jnp.zeros((b, h_dim), jnp.float32)

    def body(t, h):
        pre = jnp.dot(h.astype(jnp.bfloat16), at,
                      preferred_element_type=jnp.float32) + u_ref[t]
        # TODO(synk): tanh-approx GELU (erf lowering not guaranteed in Mosaic).
        h_new = 0.5 * pre * (1.0 + jnp.tanh(
            0.7978845608028654 * (pre + 0.044715 * pre * pre * pre)))
        hs_ref[t] = h_new
        return h_new

    if t_len <= 32:                       # fully unrolled at trace time
        h = h0
        for t in range(t_len):
            h = body(t, h)
    else:
        jax.lax.fori_loop(0, t_len, body, h0, unroll=2)

    # ---- epilogue: C projection, LayerNorm, fc ----
    hs_flat = hs_ref[...].reshape(t_len * b, h_dim)
    y = jnp.dot(hs_flat.astype(jnp.bfloat16), ct_ref[...],
                preferred_element_type=jnp.float32)
    mu = jnp.mean(y, axis=-1, keepdims=True)
    var = jnp.mean(jnp.square(y - mu), axis=-1, keepdims=True)
    yn = (y - mu) * jax.lax.rsqrt(var + _LN_EPS)
    yn = yn * lg_ref[...] + lb_ref[...]
    out = jnp.dot(yn.astype(jnp.bfloat16), wfc_ref[...],
                  preferred_element_type=jnp.float32) + bfc_ref[...]
    o_ref[...] = out.reshape(t_len, b, -1)


def mamba_fused(gru, mp, fcp, out_pad=128):
    t, b, in_dim = gru.shape
    h = mp["A"].shape[0]
    bt = mp["B"].T.astype(jnp.bfloat16)                     # (in_dim, H)
    at = mp["A"].T.astype(jnp.bfloat16)                     # (H, H)
    ct = mp["C"].T.astype(jnp.bfloat16)                     # (H, H)
    lg = mp["ln_g"][None, :]
    lb = mp["ln_b"][None, :]
    n_out = fcp["w"].shape[0]
    wfct = jnp.pad(fcp["w"], ((0, out_pad - n_out), (0, 0))).T.astype(jnp.bfloat16)
    bfc = jnp.pad(fcp["b"], (0, out_pad - n_out))[None, :]

    vm = lambda: pl.BlockSpec(memory_space=pltpu.MemorySpace.VMEM)
    return pl.pallas_call(
        _mamba_fused_kernel,
        out_shape=jax.ShapeDtypeStruct((t, b, out_pad), jnp.float32),
        in_specs=[vm() for _ in range(8)],
        out_specs=vm(),
        scratch_shapes=[pltpu.VMEM((t, b, h), jnp.float32),   # U
                        pltpu.VMEM((t, b, h), jnp.float32)],  # hs
    )(gru, bt, at, ct, lg, lb, wfct, bfc)


# -----------------------------------------------------------------------------
# EfficientNet-B0 feature extractor (plain JAX glue, NHWC + bf16 matmuls)
# -----------------------------------------------------------------------------
_B0_CFG = [  # (expand, kernel, stride, c_in, c_out, repeats)
    (1, 3, 1, 32, 16, 1),
    (6, 3, 2, 16, 24, 2),
    (6, 5, 2, 24, 40, 2),
    (6, 3, 2, 40, 80, 3),
    (6, 5, 1, 80, 112, 3),
    (6, 5, 2, 112, 192, 4),
    (6, 3, 1, 192, 320, 1),
]


def _silu(x):
    return x * jax.nn.sigmoid(x)


def _bn2d_eval(x):
    # BatchNorm2d eval with default running stats (gamma=1, beta=0, mu=0, var=1)
    return x * (1.0 / jnp.sqrt(1.0 + _BN_EPS))


def _conv2d(x, w_oihw, stride=1, groups=1):
    # x: NHWC (f32), w: OIHW (f32); bf16 MXU operands, f32 accumulation
    k = w_oihw.shape[-1]
    pad = (k - 1) // 2
    w = jnp.transpose(w_oihw, (2, 3, 1, 0)).astype(jnp.bfloat16)   # HWIO
    return jax.lax.conv_general_dilated(
        x.astype(jnp.bfloat16), w, (stride, stride), [(pad, pad), (pad, pad)],
        feature_group_count=groups,
        dimension_numbers=("NHWC", "HWIO", "NHWC"),
        preferred_element_type=jnp.float32)


def efficientnet_features(p, x_nchw):
    x = jnp.transpose(x_nchw, (0, 2, 3, 1))                        # NHWC
    x = _silu(_bn2d_eval(_conv2d(x, p["stem_w"], stride=2)))
    for blk in p["blocks"]:
        inp = x
        h = x
        if "expand_w" in blk:
            h = _silu(_bn2d_eval(_conv2d(h, blk["expand_w"])))
        h = _silu(_bn2d_eval(_conv2d(h, blk["dw_w"], stride=blk["stride"],
                                     groups=blk["exp"])))
        # Squeeze-Excitation
        s = jnp.mean(h, axis=(1, 2), keepdims=True)
        s = _silu(_conv2d(s, blk["se1_w"]) + blk["se1_b"][None, None, None, :])
        s = jax.nn.sigmoid(_conv2d(s, blk["se2_w"]) +
                           blk["se2_b"][None, None, None, :])
        h = h * s
        h = _bn2d_eval(_conv2d(h, blk["proj_w"]))
        if blk["stride"] == 1 and blk["in"] == blk["out"]:
            h = h + inp                       # stochastic depth = identity (eval)
        x = h
    x = _silu(_bn2d_eval(_conv2d(x, p["top_w"])))                  # (N, h', w', 1280)
    return x


# -----------------------------------------------------------------------------
# Deterministic synthetic parameter construction
# -----------------------------------------------------------------------------
def _conv_init(key, out_c, in_c_pg, k):
    fan_in = in_c_pg * k * k
    return jax.random.normal(key, (out_c, in_c_pg, k, k), jnp.float32) * (2.0 / fan_in) ** 0.5


def make_params(key, feature_dim=256, mamba_hidden=256, gru_hidden=128):
    keys = iter(jax.random.split(key, 512))
    nk = lambda: next(keys)

    bb = {"stem_w": _conv_init(nk(), 32, 3, 3), "blocks": []}
    for expand, k, s, cin, cout, reps in _B0_CFG:
        for r in range(reps):
            in_c = cin if r == 0 else cout
            stride = s if r == 0 else 1
            exp_c = in_c * expand
            sq = max(1, in_c // 4)
            blk = {"stride": stride, "in": in_c, "out": cout, "exp": exp_c}
            if expand != 1:
                blk["expand_w"] = _conv_init(nk(), exp_c, in_c, 1)
            blk["dw_w"] = _conv_init(nk(), exp_c, 1, k)
            blk["se1_w"] = _conv_init(nk(), sq, exp_c, 1)
            blk["se1_b"] = jnp.zeros((sq,), jnp.float32)
            blk["se2_w"] = _conv_init(nk(), exp_c, sq, 1)
            blk["se2_b"] = jnp.zeros((exp_c,), jnp.float32)
            blk["proj_w"] = _conv_init(nk(), cout, exp_c, 1)
            bb["blocks"].append(blk)
    bb["top_w"] = _conv_init(nk(), 1280, 320, 1)

    bd = 1.0 / (1280.0 ** 0.5)
    head = {
        "res_w": jax.random.uniform(nk(), (feature_dim, 1280), jnp.float32, -bd, bd),
        "res_b": jax.random.uniform(nk(), (feature_dim,), jnp.float32, -bd, bd),
        "proj_w": jax.random.uniform(nk(), (feature_dim, 1280), jnp.float32, -bd, bd),
        "proj_b": jax.random.uniform(nk(), (feature_dim,), jnp.float32, -bd, bd),
        "bn_g": jnp.ones((feature_dim,), jnp.float32),
        "bn_b": jnp.zeros((feature_dim,), jnp.float32),
        "bn_m": jnp.zeros((feature_dim,), jnp.float32),
        "bn_v": jnp.ones((feature_dim,), jnp.float32),
    }

    gb = 1.0 / (gru_hidden ** 0.5)
    gru = {}
    for d in ("f", "b"):
        gru[f"wih_{d}"] = jax.random.uniform(nk(), (3 * gru_hidden, feature_dim), jnp.float32, -gb, gb)
        gru[f"whh_{d}"] = jax.random.uniform(nk(), (3 * gru_hidden, gru_hidden), jnp.float32, -gb, gb)
        gru[f"bih_{d}"] = jax.random.uniform(nk(), (3 * gru_hidden,), jnp.float32, -gb, gb)
        gru[f"bhh_{d}"] = jax.random.uniform(nk(), (3 * gru_hidden,), jnp.float32, -gb, gb)

    a0 = jax.random.normal(nk(), (mamba_hidden, mamba_hidden), jnp.float32)
    q, r = jnp.linalg.qr(a0)
    A = q * jnp.sign(jnp.diagonal(r))[None, :]
    in_dim = 2 * gru_hidden
    xb = (6.0 / (mamba_hidden + in_dim)) ** 0.5
    xc = (6.0 / (2 * mamba_hidden)) ** 0.5
    mamba = {
        "A": A,
        "B": jax.random.uniform(nk(), (mamba_hidden, in_dim), jnp.float32, -xb, xb),
        "C": jax.random.uniform(nk(), (mamba_hidden, mamba_hidden), jnp.float32, -xc, xc),
        "ln_g": jnp.ones((mamba_hidden,), jnp.float32),
        "ln_b": jnp.zeros((mamba_hidden,), jnp.float32),
    }

    fb = 1.0 / (mamba_hidden ** 0.5)
    fc = {"w": jax.random.uniform(nk(), (2, mamba_hidden), jnp.float32, -fb, fb),
          "b": jax.random.uniform(nk(), (2,), jnp.float32, -fb, fb)}

    return {"backbone": bb, "head": head, "gru": gru, "mamba": mamba, "fc": fc}


# -----------------------------------------------------------------------------
# Full model forward:  (B, T, C, H, W) -> (B, T, 2)
# -----------------------------------------------------------------------------
def forward(params, x):
    bsz, t, c, hgt, wid = x.shape
    frames = x.reshape(bsz * t, c, hgt, wid)
    feats = efficientnet_features(params["backbone"], frames)        # (N, h', w', 1280)
    pooled = jnp.mean(feats, axis=(1, 2))                            # AdaptiveAvgPool2d(1)

    # Re-order t-major and pad batch to a full 8-sublane tile; all downstream
    # Pallas kernels then exchange (T, 8, lanes) slabs with no transposes and
    # only unmasked full-tile per-step accesses.
    b_pad = -(-bsz // 8) * 8
    pooled = pooled.reshape(bsz, t, -1).transpose(1, 0, 2)           # (T, B, 1280)
    pooled = jnp.pad(pooled, ((0, 0), (0, b_pad - bsz), (0, 0)))     # (T, 8, 1280)

    # Pallas: fused head (res+proj+BN+ReLU) + single concatenated BiGRU
    # input-gate projection, emitted directly in (T, B, 6H) layout.
    gi = head_gru_in(pooled.reshape(t * b_pad, -1),
                     params["head"], params["gru"])                  # (T*8, 768)
    gi = gi.reshape(t, b_pad, -1)

    # Pallas: interleaved bidirectional GRU recurrence
    gru = bigru_rec(gi, params["gru"])                               # (T, 8, 256)

    # Pallas: fused Mamba (U-projection + recurrence + C-proj + LN + fc)
    out = mamba_fused(gru, params["mamba"], params["fc"])            # (T, 8, 128)

    return out[:, :bsz, :2].transpose(1, 0, 2)                       # (B, T, 2)


if __name__ == "__main__":
    key = jax.random.PRNGKey(0)
    pkey, xkey = jax.random.split(key)
    params = make_params(pkey)

    # x: (batch, seq, channels, height, width) — 32x32 survives the 5 stride-2 stages
    B, T, C, H, W = 2, 4, 3, 32, 32
    x = jax.random.normal(xkey, (B, T, C, H, W), jnp.float32)

    fwd = jax.jit(lambda inp: forward(params, inp))   # params closed over
    out = jax.block_until_ready(fwd(x))

    assert out.shape == (B, T, 2), out.shape
    assert bool(jnp.all(jnp.isfinite(out)))
    print("KERNEL_OK")
</pallas_src>

<mosaic_0001>
module attributes {stable_mosaic.version = 11 : i64} {
  func.func @_head_kernel(%arg0: i32, %arg1: memref<32x1280xbf16, #tpu.memory_space<vmem>>, %arg2: memref<1280x256xbf16, #tpu.memory_space<vmem>>, %arg3: memref<1x256xf32, #tpu.memory_space<vmem>>, %arg4: memref<256x768xbf16, #tpu.memory_space<vmem>>, %arg5: memref<1x768xf32, #tpu.memory_space<vmem>>, %arg6: memref<32x768xf32, #tpu.memory_space<vmem>>) attributes {dimension_semantics = [#tpu.dimension_semantics<parallel>], iteration_bounds = array<i64: 1>, scalar_prefetch = 0 : i64, scratch_operands = 0 : i64, tpu.core_type = #tpu.core_type<tc>, window_params = [{transform_indices = @transform_0, window_bounds = array<i64: 32, 1280>}, {pipeline_mode = #tpu.pipeline_mode<synchronous>, transform_indices = @transform_1, window_bounds = array<i64: 1280, 256>}, {pipeline_mode = #tpu.pipeline_mode<synchronous>, transform_indices = @transform_2, window_bounds = array<i64: 1, 256>}, {pipeline_mode = #tpu.pipeline_mode<synchronous>, transform_indices = @transform_3, window_bounds = array<i64: 256, 768>}, {pipeline_mode = #tpu.pipeline_mode<synchronous>, transform_indices = @transform_4, window_bounds = array<i64: 1, 768>}, {transform_indices = @transform_5, window_bounds = array<i64: 32, 768>}]} {
    %c0 = arith.constant 0 : index
    %c0_0 = arith.constant 0 : index
    %0 = vector.load %arg1[%c0, %c0_0] : memref<32x1280xbf16, #tpu.memory_space<vmem>>, vector<32x1280xbf16>
    %c0_1 = arith.constant 0 : index
    %c0_2 = arith.constant 0 : index
    %1 = vector.load %arg2[%c0_1, %c0_2] : memref<1280x256xbf16, #tpu.memory_space<vmem>>, vector<1280x256xbf16>
    %cst = arith.constant dense<0.000000e+00> : vector<32x256xf32>
    %2 = tpu.matmul %0, %1, %cst {dimension_numbers = #tpu.dot_dimension_numbers<[1], [0], [0], [1], [0, 0, 1, 1], [], []>} : vector<32x1280xbf16>, vector<1280x256xbf16>, vector<32x256xf32> -> vector<32x256xf32>
    %c0_3 = arith.constant 0 : index
    %c0_4 = arith.constant 0 : index
    %3 = vector.load %arg3[%c0_3, %c0_4] : memref<1x256xf32, #tpu.memory_space<vmem>>, vector<1x256xf32>
    %4 = vector.broadcast %3 : vector<1x256xf32> to vector<32x256xf32>
    %5 = arith.addf %2, %4 : vector<32x256xf32>
    %cst_5 = arith.constant 0.000000e+00 : f32
    %6 = vector.broadcast %cst_5 : f32 to vector<32x256xf32>
    %7 = arith.maximumf %5, %6 : vector<32x256xf32>
    %8 = arith.truncf %7 : vector<32x256xf32> to vector<32x256xbf16>
    %c0_6 = arith.constant 0 : index
    %c0_7 = arith.constant 0 : index
    %9 = vector.load %arg4[%c0_6, %c0_7] : memref<256x768xbf16, #tpu.memory_space<vmem>>, vector<256x768xbf16>
    %cst_8 = arith.constant dense<0.000000e+00> : vector<32x768xf32>
    %10 = tpu.matmul %8, %9, %cst_8 {dimension_numbers = #tpu.dot_dimension_numbers<[1], [0], [0], [1], [0, 0, 1, 1], [], []>} : vector<32x256xbf16>, vector<256x768xbf16>, vector<32x768xf32> -> vector<32x768xf32>
    %c0_9 = arith.constant 0 : index
    %c0_10 = arith.constant 0 : index
    %11 = vector.load %arg5[%c0_9, %c0_10] : memref<1x768xf32, #tpu.memory_space<vmem>>, vector<1x768xf32>
    %12 = vector.broadcast %11 : vector<1x768xf32> to vector<32x768xf32>
    %13 = arith.addf %10, %12 : vector<32x768xf32>
    %c0_11 = arith.constant 0 : index
    %c0_12 = arith.constant 0 : index
    %14 = vector.load %arg6[%c0_11, %c0_12] : memref<32x768xf32, #tpu.memory_space<vmem>>, vector<32x768xf32>
    tpu.vector_store %arg6[%c0_11, %c0_12], %13 {strides = array<i32>} : memref<32x768xf32, #tpu.memory_space<vmem>>, vector<32x768xf32>,
    return
  }
  func.func @transform_0(%arg0: i32) -> (i32, i32) {
    %c0_i32 = arith.constant 0 : i32
    %c0_i32_0 = arith.constant 0 : i32
    return %arg0, %c0_i32 : i32, i32
  }
  func.func @transform_1(%arg0: i32) -> (i32, i32) {
    %c0_i32 = arith.constant 0 : i32
    %c0_i32_0 = arith.constant 0 : i32
    %c0_i32_1 = arith.constant 0 : i32
    return %c0_i32, %c0_i32_0 : i32, i32
  }
  func.func @transform_2(%arg0: i32) -> (i32, i32) {
    %c0_i32 = arith.constant 0 : i32
    %c0_i32_0 = arith.constant 0 : i32
    %c0_i32_1 = arith.constant 0 : i32
    return %c0_i32, %c0_i32_0 : i32, i32
  }
  func.func @transform_3(%arg0: i32) -> (i32, i32) {
    %c0_i32 = arith.constant 0 : i32
    %c0_i32_0 = arith.constant 0 : i32
    %c0_i32_1 = arith.constant 0 : i32
    return %c0_i32, %c0_i32_0 : i32, i32
  }
  func.func @transform_4(%arg0: i32) -> (i32, i32) {
    %c0_i32 = arith.constant 0 : i32
    %c0_i32_0 = arith.constant 0 : i32
    %c0_i32_1 = arith.constant 0 : i32
    return %c0_i32, %c0_i32_0 : i32, i32
  }
  func.func @transform_5(%arg0: i32) -> (i32, i32) {
    %c0_i32 = arith.constant 0 : i32
    %c0_i32_0 = arith.constant 0 : i32
    return %arg0, %c0_i32 : i32, i32
  }
}

module attributes {stable_mosaic.version = 11 : i64} {
  func.func @_bigru_kernel(%arg0: memref<4x8x768xf32, #tpu.memory_space<vmem>>, %arg1: memref<128x384xbf16, #tpu.memory_space<vmem>>, %arg2: memref<1x384xf32, #tpu.memory_space<vmem>>, %arg3: memref<128x384xbf16, #tpu.memory_space<vmem>>, %arg4: memref<1x384xf32, #tpu.memory_space<vmem>>, %arg5: memref<4x8x256xf32, #tpu.memory_space<vmem>>) attributes {dimension_semantics = [], scalar_prefetch = 0 : i64, scratch_operands = 0 : i64, tpu.core_type = #tpu.core_type<tc>} {
    %c0 = arith.constant 0 : index
    %c0_0 = arith.constant 0 : index
    %0 = vector.load %arg1[%c0, %c0_0] : memref<128x384xbf16, #tpu.memory_space<vmem>>, vector<128x384xbf16>
    %c0_1 = arith.constant 0 : index
    %c0_2 = arith.constant 0 : index
    %1 = vector.load %arg3[%c0_1, %c0_2] : memref<128x384xbf16, #tpu.memory_space<vmem>>, vector<128x384xbf16>
    %c0_3 = arith.constant 0 : index
    %c0_4 = arith.constant 0 : index
    %2 = vector.load %arg2[%c0_3, %c0_4] : memref<1x384xf32, #tpu.memory_space<vmem>>, vector<1x384xf32>
    %c0_5 = arith.constant 0 : index
    %c0_6 = arith.constant 0 : index
    %3 = vector.load %arg4[%c0_5, %c0_6] : memref<1x384xf32, #tpu.memory_space<vmem>>, vector<1x384xf32>
    %cst = arith.constant 0.000000e+00 : f32
    %4 = vector.broadcast %cst : f32 to vector<8x128xf32>
    %c0_7 = arith.constant 0 : index
    %c0_8 = arith.constant 0 : index
    %c0_9 = arith.constant 0 : index
    %5 = vector.load %arg0[%c0_7, %c0_8, %c0_9] : memref<4x8x768xf32, #tpu.memory_space<vmem>>, vector<1x8x384xf32>
    %6 = vector.shape_cast %5 : vector<1x8x384xf32> to vector<8x384xf32>
    %7 = arith.truncf %4 : vector<8x128xf32> to vector<8x128xbf16>
    %cst_10 = arith.constant dense<0.000000e+00> : vector<8x384xf32>
    %8 = tpu.matmul %7, %0, %cst_10 {dimension_numbers = #tpu.dot_dimension_numbers<[1], [0], [0], [1], [0, 0, 1, 1], [], []>} : vector<8x128xbf16>, vector<128x384xbf16>, vector<8x384xf32> -> vector<8x384xf32>
    %9 = vector.broadcast %2 : vector<1x384xf32> to vector<8x384xf32>
    %10 = arith.addf %8, %9 : vector<8x384xf32>
    %11 = vector.extract_strided_slice %6 {offsets = [0, 0], sizes = [8, 128], strides = [1, 1]} : vector<8x384xf32> to vector<8x128xf32>
    %12 = vector.extract_strided_slice %10 {offsets = [0, 0], sizes = [8, 128], strides = [1, 1]} : vector<8x384xf32> to vector<8x128xf32>
    %13 = arith.addf %11, %12 : vector<8x128xf32>
    %14 = arith.negf %13 : vector<8x128xf32>
    %15 = math.exp %14 : vector<8x128xf32>
    %cst_11 = arith.constant 1.000000e+00 : f32
    %16 = vector.broadcast %cst_11 : f32 to vector<8x128xf32>
    %17 = arith.addf %16, %15 : vector<8x128xf32>
    %18 = arith.divf %16, %17 : vector<8x128xf32>
    %19 = vector.extract_strided_slice %6 {offsets = [0, 128], sizes = [8, 128], strides = [1, 1]} : vector<8x384xf32> to vector<8x128xf32>
    %20 = vector.extract_strided_slice %10 {offsets = [0, 128], sizes = [8, 128], strides = [1, 1]} : vector<8x384xf32> to vector<8x128xf32>
    %21 = arith.addf %19, %20 : vector<8x128xf32>
    %22 = arith.negf %21 : vector<8x128xf32>
    %23 = math.exp %22 : vector<8x128xf32>
    %cst_12 = arith.constant 1.000000e+00 : f32
    %24 = vector.broadcast %cst_12 : f32 to vector<8x128xf32>
    %25 = arith.addf %24, %23 : vector<8x128xf32>
    %26 = arith.divf %24, %25 : vector<8x128xf32>
    %27 = vector.extract_strided_slice %6 {offsets = [0, 256], sizes = [8, 128], strides = [1, 1]} : vector<8x384xf32> to vector<8x128xf32>
    %28 = vector.extract_strided_slice %10 {offsets = [0, 256], sizes = [8, 128], strides = [1, 1]} : vector<8x384xf32> to vector<8x128xf32>
    %29 = arith.mulf %18, %28 : vector<8x128xf32>
    %30 = arith.addf %27, %29 : vector<8x128xf32>
    %31 = math.tanh %30 : vector<8x128xf32>
    %cst_13 = arith.constant 1.000000e+00 : f32
    %32 = vector.broadcast %cst_13 : f32 to vector<8x128xf32>
    %33 = arith.subf %32, %26 : vector<8x128xf32>
    %34 = arith.mulf %33, %31 : vector<8x128xf32>
    %35 = arith.mulf %26, %4 : vector<8x128xf32>
    %36 = arith.addf %34, %35 : vector<8x128xf32>
    %c3 = arith.constant 3 : index
    %c0_14 = arith.constant 0 : index
    %c384 = arith.constant 384 : index
    %37 = vector.load %arg0[%c3, %c0_14, %c384] : memref<4x8x768xf32, #tpu.memory_space<vmem>>, vector<1x8x384xf32>
    %38 = vector.shape_cast %37 : vector<1x8x384xf32> to vector<8x384xf32>
    %39 = arith.truncf %4 : vector<8x128xf32> to vector<8x128xbf16>
    %cst_15 = arith.constant dense<0.000000e+00> : vector<8x384xf32>
    %40 = tpu.matmul %39, %1, %cst_15 {dimension_numbers = #tpu.dot_dimension_numbers<[1], [0], [0], [1], [0, 0, 1, 1], [], []>} : vector<8x128xbf16>, vector<128x384xbf16>, vector<8x384xf32> -> vector<8x384xf32>
    %41 = vector.broadcast %3 : vector<1x384xf32> to vector<8x384xf32>
    %42 = arith.addf %40, %41 : vector<8x384xf32>
    %43 = vector.extract_strided_slice %38 {offsets = [0, 0], sizes = [8, 128], strides = [1, 1]} : vector<8x384xf32> to vector<8x128xf32>
    %44 = vector.extract_strided_slice %42 {offsets = [0, 0], sizes = [8, 128], strides = [1, 1]} : vector<8x384xf32> to vector<8x128xf32>
    %45 = arith.addf %43, %44 : vector<8x128xf32>
    %46 = arith.negf %45 : vector<8x128xf32>
    %47 = math.exp %46 : vector<8x128xf32>
    %cst_16 = arith.constant 1.000000e+00 : f32
    %48 = vector.broadcast %cst_16 : f32 to vector<8x128xf32>
    %49 = arith.addf %48, %47 : vector<8x128xf32>
    %50 = arith.divf %48, %49 : vector<8x128xf32>
    %51 = vector.extract_strided_slice %38 {offsets = [0, 128], sizes = [8, 128], strides = [1, 1]} : vector<8x384xf32> to vector<8x128xf32>
    %52 = vector.extract_strided_slice %42 {offsets = [0, 128], sizes = [8, 128], strides = [1, 1]} : vector<8x384xf32> to vector<8x128xf32>
    %53 = arith.addf %51, %52 : vector<8x128xf32>
    %54 = arith.negf %53 : vector<8x128xf32>
    %55 = math.exp %54 : vector<8x128xf32>
    %cst_17 = arith.constant 1.000000e+00 : f32
    %56 = vector.broadcast %cst_17 : f32 to vector<8x128xf32>
    %57 = arith.addf %56, %55 : vector<8x128xf32>
    %58 = arith.divf %56, %57 : vector<8x128xf32>
    %59 = vector.extract_strided_slice %38 {offsets = [0, 256], sizes = [8, 128], strides = [1, 1]} : vector<8x384xf32> to vector<8x128xf32>
    %60 = vector.extract_strided_slice %42 {offsets = [0, 256], sizes = [8, 128], strides = [1, 1]} : vector<8x384xf32> to vector<8x128xf32>
    %61 = arith.mulf %50, %60 : vector<8x128xf32>
    %62 = arith.addf %59, %61 : vector<8x128xf32>
    %63 = math.tanh %62 : vector<8x128xf32>
    %cst_18 = arith.constant 1.000000e+00 : f32
    %64 = vector.broadcast %cst_18 : f32 to vector<8x128xf32>
    %65 = arith.subf %64, %58 : vector<8x128xf32>
    %66 = arith.mulf %65, %63 : vector<8x128xf32>
    %67 = arith.mulf %58, %4 : vector<8x128xf32>
    %68 = arith.addf %66, %67 : vector<8x128xf32>
    %c0_19 = arith.constant 0 : index
    %c0_20 = arith.constant 0 : index
    %c0_21 = arith.constant 0 : index
    %69 = vector.load %arg5[%c0_19, %c0_20, %c0_21] : memref<4x8x256xf32, #tpu.memory_space<vmem>>, vector<1x8x128xf32>
    %70 = vector.shape_cast %69 : vector<1x8x128xf32> to vector<8x128xf32>
    %71 = vector.shape_cast %36 : vector<8x128xf32> to vector<1x8x128xf32>
    tpu.vector_store %arg5[%c0_19, %c0_20, %c0_21], %71 {strides = array<i32>} : memref<4x8x256xf32, #tpu.memory_space<vmem>>, vector<1x8x128xf32>,
    %c3_22 = arith.constant 3 : index
    %c0_23 = arith.constant 0 : index
    %c128 = arith.constant 128 : index
    %72 = vector.load %arg5[%c3_22, %c0_23, %c128] : memref<4x8x256xf32, #tpu.memory_space<vmem>>, vector<1x8x128xf32>
    %73 = vector.shape_cast %72 : vector<1x8x128xf32> to vector<8x128xf32>
    %74 = vector.shape_cast %68 : vector<8x128xf32> to vector<1x8x128xf32>
    tpu.vector_store %arg5[%c3_22, %c0_23, %c128], %74 {strides = array<i32>} : memref<4x8x256xf32, #tpu.memory_space<vmem>>, vector<1x8x128xf32>,
    %c1 = arith.constant 1 : index
    %c0_24 = arith.constant 0 : index
    %c0_25 = arith.constant 0 : index
    %75 = vector.load %arg0[%c1, %c0_24, %c0_25] : memref<4x8x768xf32, #tpu.memory_space<vmem>>, vector<1x8x384xf32>
    %76 = vector.shape_cast %75 : vector<1x8x384xf32> to vector<8x384xf32>
    %77 = arith.truncf %36 : vector<8x128xf32> to vector<8x128xbf16>
    %cst_26 = arith.constant dense<0.000000e+00> : vector<8x384xf32>
    %78 = tpu.matmul %77, %0, %cst_26 {dimension_numbers = #tpu.dot_dimension_numbers<[1], [0], [0], [1], [0, 0, 1, 1], [], []>} : vector<8x128xbf16>, vector<128x384xbf16>, vector<8x384xf32> -> vector<8x384xf32>
    %79 = vector.broadcast %2 : vector<1x384xf32> to vector<8x384xf32>
    %80 = arith.addf %78, %79 : vector<8x384xf32>
    %81 = vector.extract_strided_slice %76 {offsets = [0, 0], sizes = [8, 128], strides = [1, 1]} : vector<8x384xf32> to vector<8x128xf32>
    %82 = vector.extract_strided_slice %80 {offsets = [0, 0], sizes = [8, 128], strides = [1, 1]} : vector<8x384xf32> to vector<8x128xf32>
    %83 = arith.addf %81, %82 : vector<8x128xf32>
    %84 = arith.negf %83 : vector<8x128xf32>
    %85 = math.exp %84 : vector<8x128xf32>
    %cst_27 = arith.constant 1.000000e+00 : f32
    %86 = vector.broadcast %cst_27 : f32 to vector<8x128xf32>
    %87 = arith.addf %86, %85 : vector<8x128xf32>
    %88 = arith.divf %86, %87 : vector<8x128xf32>
    %89 = vector.extract_strided_slice %76 {offsets = [0, 128], sizes = [8, 128], strides = [1, 1]} : vector<8x384xf32> to vector<8x128xf32>
    %90 = vector.extract_strided_slice %80 {offsets = [0, 128], sizes = [8, 128], strides = [1, 1]} : vector<8x384xf32> to vector<8x128xf32>
    %91 = arith.addf %89, %90 : vector<8x128xf32>
    %92 = arith.negf %91 : vector<8x128xf32>
    %93 = math.exp %92 : vector<8x128xf32>
    %cst_28 = arith.constant 1.000000e+00 : f32
    %94 = vector.broadcast %cst_28 : f32 to vector<8x128xf32>
    %95 = arith.addf %94, %93 : vector<8x128xf32>
    %96 = arith.divf %94, %95 : vector<8x128xf32>
    %97 = vector.extract_strided_slice %76 {offsets = [0, 256], sizes = [8, 128], strides = [1, 1]} : vector<8x384xf32> to vector<8x128xf32>
    %98 = vector.extract_strided_slice %80 {offsets = [0, 256], sizes = [8, 128], strides = [1, 1]} : vector<8x384xf32> to vector<8x128xf32>
    %99 = arith.mulf %88, %98 : vector<8x128xf32>
    %100 = arith.addf %97, %99 : vector<8x128xf32>
    %101 = math.tanh %100 : vector<8x128xf32>
    %cst_29 = arith.constant 1.000000e+00 : f32
    %102 = vector.broadcast %cst_29 : f32 to vector<8x128xf32>
    %103 = arith.subf %102, %96 : vector<8x128xf32>
    %104 = arith.mulf %103, %101 : vector<8x128xf32>
    %105 = arith.mulf %96, %36 : vector<8x128xf32>
    %106 = arith.addf %104, %105 : vector<8x128xf32>
    %c2 = arith.constant 2 : index
    %c0_30 = arith.constant 0 : index
    %c384_31 = arith.constant 384 : index
    %107 = vector.load %arg0[%c2, %c0_30, %c384_31] : memref<4x8x768xf32, #tpu.memory_space<vmem>>, vector<1x8x384xf32>
    %108 = vector.shape_cast %107 : vector<1x8x384xf32> to vector<8x384xf32>
    %109 = arith.truncf %68 : vector<8x128xf32> to vector<8x128xbf16>
    %cst_32 = arith.constant dense<0.000000e+00> : vector<8x384xf32>
    %110 = tpu.matmul %109, %1, %cst_32 {dimension_numbers = #tpu.dot_dimension_numbers<[1], [0], [0], [1], [0, 0, 1, 1], [], []>} : vector<8x128xbf16>, vector<128x384xbf16>, vector<8x384xf32> -> vector<8x384xf32>
    %111 = vector.broadcast %3 : vector<1x384xf32> to vector<8x384xf32>
    %112 = arith.addf %110, %111 : vector<8x384xf32>
    %113 = vector.extract_strided_slice %108 {offsets = [0, 0], sizes = [8, 128], strides = [1, 1]} : vector<8x384xf32> to vector<8x128xf32>
    %114 = vector.extract_strided_slice %112 {offsets = [0, 0], sizes = [8, 128], strides = [1, 1]} : vector<8x384xf32> to vector<8x128xf32>
    %115 = arith.addf %113, %114 : vector<8x128xf32>
    %116 = arith.negf %115 : vector<8x128xf32>
    %117 = math.exp %116 : vector<8x128xf32>
    %cst_33 = arith.constant 1.000000e+00 : f32
    %118 = vector.broadcast %cst_33 : f32 to vector<8x128xf32>
    %119 = arith.addf %118, %117 : vector<8x128xf32>
    %120 = arith.divf %118, %119 : vector<8x128xf32>
    %121 = vector.extract_strided_slice %108 {offsets = [0, 128], sizes = [8, 128], strides = [1, 1]} : vector<8x384xf32> to vector<8x128xf32>
    %122 = vector.extract_strided_slice %112 {offsets = [0, 128], sizes = [8, 128], strides = [1, 1]} : vector<8x384xf32> to vector<8x128xf32>
    %123 = arith.addf %121, %122 : vector<8x128xf32>
    %124 = arith.negf %123 : vector<8x128xf32>
    %125 = math.exp %124 : vector<8x128xf32>
    %cst_34 = arith.constant 1.000000e+00 : f32
    %126 = vector.broadcast %cst_34 : f32 to vector<8x128xf32>
    %127 = arith.addf %126, %125 : vector<8x128xf32>
    %128 = arith.divf %126, %127 : vector<8x128xf32>
    %129 = vector.extract_strided_slice %108 {offsets = [0, 256], sizes = [8, 128], strides = [1, 1]} : vector<8x384xf32> to vector<8x128xf32>
    %130 = vector.extract_strided_slice %112 {offsets = [0, 256], sizes = [8, 128], strides = [1, 1]} : vector<8x384xf32> to vector<8x128xf32>
    %131 = arith.mulf %120, %130 : vector<8x128xf32>
    %132 = arith.addf %129, %131 : vector<8x128xf32>
    %133 = math.tanh %132 : vector<8x128xf32>
    %cst_35 = arith.constant 1.000000e+00 : f32
    %134 = vector.broadcast %cst_35 : f32 to vector<8x128xf32>
    %135 = arith.subf %134, %128 : vector<8x128xf32>
    %136 = arith.mulf %135, %133 : vector<8x128xf32>
    %137 = arith.mulf %128, %68 : vector<8x128xf32>
    %138 = arith.addf %136, %137 : vector<8x128xf32>
    %c1_36 = arith.constant 1 : index
    %c0_37 = arith.constant 0 : index
    %c0_38 = arith.constant 0 : index
    %139 = vector.load %arg5[%c1_36, %c0_37, %c0_38] : memref<4x8x256xf32, #tpu.memory_space<vmem>>, vector<1x8x128xf32>
    %140 = vector.shape_cast %139 : vector<1x8x128xf32> to vector<8x128xf32>
    %141 = vector.shape_cast %106 : vector<8x128xf32> to vector<1x8x128xf32>
    tpu.vector_store %arg5[%c1_36, %c0_37, %c0_38], %141 {strides = array<i32>} : memref<4x8x256xf32, #tpu.memory_space<vmem>>, vector<1x8x128xf32>,
    %c2_39 = arith.constant 2 : index
    %c0_40 = arith.constant 0 : index
    %c128_41 = arith.constant 128 : index
    %142 = vector.load %arg5[%c2_39, %c0_40, %c128_41] : memref<4x8x256xf32, #tpu.memory_space<vmem>>, vector<1x8x128xf32>
    %143 = vector.shape_cast %142 : vector<1x8x128xf32> to vector<8x128xf32>
    %144 = vector.shape_cast %138 : vector<8x128xf32> to vector<1x8x128xf32>
    tpu.vector_store %arg5[%c2_39, %c0_40, %c128_41], %144 {strides = array<i32>} : memref<4x8x256xf32, #tpu.memory_space<vmem>>, vector<1x8x128xf32>,
    %c2_42 = arith.constant 2 : index
    %c0_43 = arith.constant 0 : index
    %c0_44 = arith.constant 0 : index
    %145 = vector.load %arg0[%c2_42, %c0_43, %c0_44] : memref<4x8x768xf32, #tpu.memory_space<vmem>>, vector<1x8x384xf32>
    %146 = vector.shape_cast %145 : vector<1x8x384xf32> to vector<8x384xf32>
    %147 = arith.truncf %106 : vector<8x128xf32> to vector<8x128xbf16>
    %cst_45 = arith.constant dense<0.000000e+00> : vector<8x384xf32>
    %148 = tpu.matmul %147, %0, %cst_45 {dimension_numbers = #tpu.dot_dimension_numbers<[1], [0], [0], [1], [0, 0, 1, 1], [], []>} : vector<8x128xbf16>, vector<128x384xbf16>, vector<8x384xf32> -> vector<8x384xf32>
    %149 = vector.broadcast %2 : vector<1x384xf32> to vector<8x384xf32>
    %150 = arith.addf %148, %149 : vector<8x384xf32>
    %151 = vector.extract_strided_slice %146 {offsets = [0, 0], sizes = [8, 128], strides = [1, 1]} : vector<8x384xf32> to vector<8x128xf32>
    %152 = vector.extract_strided_slice %150 {offsets = [0, 0], sizes = [8, 128], strides = [1, 1]} : vector<8x384xf32> to vector<8x128xf32>
    %153 = arith.addf %151, %152 : vector<8x128xf32>
    %154 = arith.negf %153 : vector<8x128xf32>
    %155 = math.exp %154 : vector<8x128xf32>
    %cst_46 = arith.constant 1.000000e+00 : f32
    %156 = vector.broadcast %cst_46 : f32 to vector<8x128xf32>
    %157 = arith.addf %156, %155 : vector<8x128xf32>
    %158 = arith.divf %156, %157 : vector<8x128xf32>
    %159 = vector.extract_strided_slice %146 {offsets = [0, 128], sizes = [8, 128], strides = [1, 1]} : vector<8x384xf32> to vector<8x128xf32>
    %160 = vector.extract_strided_slice %150 {offsets = [0, 128], sizes = [8, 128], strides = [1, 1]} : vector<8x384xf32> to vector<8x128xf32>
    %161 = arith.addf %159, %160 : vector<8x128xf32>
    %162 = arith.negf %161 : vector<8x128xf32>
    %163 = math.exp %162 : vector<8x128xf32>
    %cst_47 = arith.constant 1.000000e+00 : f32
    %164 = vector.broadcast %cst_47 : f32 to vector<8x128xf32>
    %165 = arith.addf %164, %163 : vector<8x128xf32>
    %166 = arith.divf %164, %165 : vector<8x128xf32>
    %167 = vector.extract_strided_slice %146 {offsets = [0, 256], sizes = [8, 128], strides = [1, 1]} : vector<8x384xf32> to vector<8x128xf32>
    %168 = vector.extract_strided_slice %150 {offsets = [0, 256], sizes = [8, 128], strides = [1, 1]} : vector<8x384xf32> to vector<8x128xf32>
    %169 = arith.mulf %158, %168 : vector<8x128xf32>
    %170 = arith.addf %167, %169 : vector<8x128xf32>
    %171 = math.tanh %170 : vector<8x128xf32>
    %cst_48 = arith.constant 1.000000e+00 : f32
    %172 = vector.broadcast %cst_48 : f32 to vector<8x128xf32>
    %173 = arith.subf %172, %166 : vector<8x128xf32>
    %174 = arith.mulf %173, %171 : vector<8x128xf32>
    %175 = arith.mulf %166, %106 : vector<8x128xf32>
    %176 = arith.addf %174, %175 : vector<8x128xf32>
    %c1_49 = arith.constant 1 : index
    %c0_50 = arith.constant 0 : index
    %c384_51 = arith.constant 384 : index
    %177 = vector.load %arg0[%c1_49, %c0_50, %c384_51] : memref<4x8x768xf32, #tpu.memory_space<vmem>>, vector<1x8x384xf32>
    %178 = vector.shape_cast %177 : vector<1x8x384xf32> to vector<8x384xf32>
    %179 = arith.truncf %138 : vector<8x128xf32> to vector<8x128xbf16>
    %cst_52 = arith.constant dense<0.000000e+00> : vector<8x384xf32>
    %180 = tpu.matmul %179, %1, %cst_52 {dimension_numbers = #tpu.dot_dimension_numbers<[1], [0], [0], [1], [0, 0, 1, 1], [], []>} : vector<8x128xbf16>, vector<128x384xbf16>, vector<8x384xf32> -> vector<8x384xf32>
    %181 = vector.broadcast %3 : vector<1x384xf32> to vector<8x384xf32>
    %182 = arith.addf %180, %181 : vector<8x384xf32>
    %183 = vector.extract_strided_slice %178 {offsets = [0, 0], sizes = [8, 128], strides = [1, 1]} : vector<8x384xf32> to vector<8x128xf32>
    %184 = vector.extract_strided_slice %182 {offsets = [0, 0], sizes = [8, 128], strides = [1, 1]} : vector<8x384xf32> to vector<8x128xf32>
    %185 = arith.addf %183, %184 : vector<8x128xf32>
    %186 = arith.negf %185 : vector<8x128xf32>
    %187 = math.exp %186 : vector<8x128xf32>
    %cst_53 = arith.constant 1.000000e+00 : f32
    %188 = vector.broadcast %cst_53 : f32 to vector<8x128xf32>
    %189 = arith.addf %188, %187 : vector<8x128xf32>
    %190 = arith.divf %188, %189 : vector<8x128xf32>
    %191 = vector.extract_strided_slice %178 {offsets = [0, 128], sizes = [8, 128], strides = [1, 1]} : vector<8x384xf32> to vector<8x128xf32>
    %192 = vector.extract_strided_slice %182 {offsets = [0, 128], sizes = [8, 128], strides = [1, 1]} : vector<8x384xf32> to vector<8x128xf32>
    %193 = arith.addf %191, %192 : vector<8x128xf32>
    %194 = arith.negf %193 : vector<8x128xf32>
    %195 = math.exp %194 : vector<8x128xf32>
    %cst_54 = arith.constant 1.000000e+00 : f32
    %196 = vector.broadcast %cst_54 : f32 to vector<8x128xf32>
    %197 = arith.addf %196, %195 : vector<8x128xf32>
    %198 = arith.divf %196, %197 : vector<8x128xf32>
    %199 = vector.extract_strided_slice %178 {offsets = [0, 256], sizes = [8, 128], strides = [1, 1]} : vector<8x384xf32> to vector<8x128xf32>
    %200 = vector.extract_strided_slice %182 {offsets = [0, 256], sizes = [8, 128], strides = [1, 1]} : vector<8x384xf32> to vector<8x128xf32>
    %201 = arith.mulf %190, %200 : vector<8x128xf32>
    %202 = arith.addf %199, %201 : vector<8x128xf32>
    %203 = math.tanh %202 : vector<8x128xf32>
    %cst_55 = arith.constant 1.000000e+00 : f32
    %204 = vector.broadcast %cst_55 : f32 to vector<8x128xf32>
    %205 = arith.subf %204, %198 : vector<8x128xf32>
    %206 = arith.mulf %205, %203 : vector<8x128xf32>
    %207 = arith.mulf %198, %138 : vector<8x128xf32>
    %208 = arith.addf %206, %207 : vector<8x128xf32>
    %c2_56 = arith.constant 2 : index
    %c0_57 = arith.constant 0 : index
    %c0_58 = arith.constant 0 : index
    %209 = vector.load %arg5[%c2_56, %c0_57, %c0_58] : memref<4x8x256xf32, #tpu.memory_space<vmem>>, vector<1x8x128xf32>
    %210 = vector.shape_cast %209 : vector<1x8x128xf32> to vector<8x128xf32>
    %211 = vector.shape_cast %176 : vector<8x128xf32> to vector<1x8x128xf32>
    tpu.vector_store %arg5[%c2_56, %c0_57, %c0_58], %211 {strides = array<i32>} : memref<4x8x256xf32, #tpu.memory_space<vmem>>, vector<1x8x128xf32>,
    %c1_59 = arith.constant 1 : index
    %c0_60 = arith.constant 0 : index
    %c128_61 = arith.constant 128 : index
    %212 = vector.load %arg5[%c1_59, %c0_60, %c128_61] : memref<4x8x256xf32, #tpu.memory_space<vmem>>, vector<1x8x128xf32>
    %213 = vector.shape_cast %212 : vector<1x8x128xf32> to vector<8x128xf32>
    %214 = vector.shape_cast %208 : vector<8x128xf32> to vector<1x8x128xf32>
    tpu.vector_store %arg5[%c1_59, %c0_60, %c128_61], %214 {strides = array<i32>} : memref<4x8x256xf32, #tpu.memory_space<vmem>>, vector<1x8x128xf32>,
    %c3_62 = arith.constant 3 : index
    %c0_63 = arith.constant 0 : index
    %c0_64 = arith.constant 0 : index
    %215 = vector.load %arg0[%c3_62, %c0_63, %c0_64] : memref<4x8x768xf32, #tpu.memory_space<vmem>>, vector<1x8x384xf32>
    %216 = vector.shape_cast %215 : vector<1x8x384xf32> to vector<8x384xf32>
    %217 = arith.truncf %176 : vector<8x128xf32> to vector<8x128xbf16>
    %cst_65 = arith.constant dense<0.000000e+00> : vector<8x384xf32>
    %218 = tpu.matmul %217, %0, %cst_65 {dimension_numbers = #tpu.dot_dimension_numbers<[1], [0], [0], [1], [0, 0, 1, 1], [], []>} : vector<8x128xbf16>, vector<128x384xbf16>, vector<8x384xf32> -> vector<8x384xf32>
    %219 = vector.broadcast %2 : vector<1x384xf32> to vector<8x384xf32>
    %220 = arith.addf %218, %219 : vector<8x384xf32>
    %221 = vector.extract_strided_slice %216 {offsets = [0, 0], sizes = [8, 128], strides = [1, 1]} : vector<8x384xf32> to vector<8x128xf32>
    %222 = vector.extract_strided_slice %220 {offsets = [0, 0], sizes = [8, 128], strides = [1, 1]} : vector<8x384xf32> to vector<8x128xf32>
    %223 = arith.addf %221, %222 : vector<8x128xf32>
    %224 = arith.negf %223 : vector<8x128xf32>
    %225 = math.exp %224 : vector<8x128xf32>
    %cst_66 = arith.constant 1.000000e+00 : f32
    %226 = vector.broadcast %cst_66 : f32 to vector<8x128xf32>
    %227 = arith.addf %226, %225 : vector<8x128xf32>
    %228 = arith.divf %226, %227 : vector<8x128xf32>
    %229 = vector.extract_strided_slice %216 {offsets = [0, 128], sizes = [8, 128], strides = [1, 1]} : vector<8x384xf32> to vector<8x128xf32>
    %230 = vector.extract_strided_slice %220 {offsets = [0, 128], sizes = [8, 128], strides = [1, 1]} : vector<8x384xf32> to vector<8x128xf32>
    %231 = arith.addf %229, %230 : vector<8x128xf32>
    %232 = arith.negf %231 : vector<8x128xf32>
    %233 = math.exp %232 : vector<8x128xf32>
    %cst_67 = arith.constant 1.000000e+00 : f32
    %234 = vector.broadcast %cst_67 : f32 to vector<8x128xf32>
    %235 = arith.addf %234, %233 : vector<8x128xf32>
    %236 = arith.divf %234, %235 : vector<8x128xf32>
    %237 = vector.extract_strided_slice %216 {offsets = [0, 256], sizes = [8, 128], strides = [1, 1]} : vector<8x384xf32> to vector<8x128xf32>
    %238 = vector.extract_strided_slice %220 {offsets = [0, 256], sizes = [8, 128], strides = [1, 1]} : vector<8x384xf32> to vector<8x128xf32>
    %239 = arith.mulf %228, %238 : vector<8x128xf32>
    %240 = arith.addf %237, %239 : vector<8x128xf32>
    %241 = math.tanh %240 : vector<8x128xf32>
    %cst_68 = arith.constant 1.000000e+00 : f32
    %242 = vector.broadcast %cst_68 : f32 to vector<8x128xf32>
    %243 = arith.subf %242, %236 : vector<8x128xf32>
    %244 = arith.mulf %243, %241 : vector<8x128xf32>
    %245 = arith.mulf %236, %176 : vector<8x128xf32>
    %246 = arith.addf %244, %245 : vector<8x128xf32>
    %c0_69 = arith.constant 0 : index
    %c0_70 = arith.constant 0 : index
    %c384_71 = arith.constant 384 : index
    %247 = vector.load %arg0[%c0_69, %c0_70, %c384_71] : memref<4x8x768xf32, #tpu.memory_space<vmem>>, vector<1x8x384xf32>
    %248 = vector.shape_cast %247 : vector<1x8x384xf32> to vector<8x384xf32>
    %249 = arith.truncf %208 : vector<8x128xf32> to vector<8x128xbf16>
    %cst_72 = arith.constant dense<0.000000e+00> : vector<8x384xf32>
    %250 = tpu.matmul %249, %1, %cst_72 {dimension_numbers = #tpu.dot_dimension_numbers<[1], [0], [0], [1], [0, 0, 1, 1], [], []>} : vector<8x128xbf16>, vector<128x384xbf16>, vector<8x384xf32> -> vector<8x384xf32>
    %251 = vector.broadcast %3 : vector<1x384xf32> to vector<8x384xf32>
    %252 = arith.addf %250, %251 : vector<8x384xf32>
    %253 = vector.extract_strided_slice %248 {offsets = [0, 0], sizes = [8, 128], strides = [1, 1]} : vector<8x384xf32> to vector<8x128xf32>
    %254 = vector.extract_strided_slice %252 {offsets = [0, 0], sizes = [8, 128], strides = [1, 1]} : vector<8x384xf32> to vector<8x128xf32>
    %255 = arith.addf %253, %254 : vector<8x128xf32>
    %256 = arith.negf %255 : vector<8x128xf32>
    %257 = math.exp %256 : vector<8x128xf32>
    %cst_73 = arith.constant 1.000000e+00 : f32
    %258 = vector.broadcast %cst_73 : f32 to vector<8x128xf32>
    %259 = arith.addf %258, %257 : vector<8x128xf32>
    %260 = arith.divf %258, %259 : vector<8x128xf32>
    %261 = vector.extract_strided_slice %248 {offsets = [0, 128], sizes = [8, 128], strides = [1, 1]} : vector<8x384xf32> to vector<8x128xf32>
    %262 = vector.extract_strided_slice %252 {offsets = [0, 128], sizes = [8, 128], strides = [1, 1]} : vector<8x384xf32> to vector<8x128xf32>
    %263 = arith.addf %261, %262 : vector<8x128xf32>
    %264 = arith.negf %263 : vector<8x128xf32>
    %265 = math.exp %264 : vector<8x128xf32>
    %cst_74 = arith.constant 1.000000e+00 : f32
    %266 = vector.broadcast %cst_74 : f32 to vector<8x128xf32>
    %267 = arith.addf %266, %265 : vector<8x128xf32>
    %268 = arith.divf %266, %267 : vector<8x128xf32>
    %269 = vector.extract_strided_slice %248 {offsets = [0, 256], sizes = [8, 128], strides = [1, 1]} : vector<8x384xf32> to vector<8x128xf32>
    %270 = vector.extract_strided_slice %252 {offsets = [0, 256], sizes = [8, 128], strides = [1, 1]} : vector<8x384xf32> to vector<8x128xf32>
    %271 = arith.mulf %260, %270 : vector<8x128xf32>
    %272 = arith.addf %269, %271 : vector<8x128xf32>
    %273 = math.tanh %272 : vector<8x128xf32>
    %cst_75 = arith.constant 1.000000e+00 : f32
    %274 = vector.broadcast %cst_75 : f32 to vector<8x128xf32>
    %275 = arith.subf %274, %268 : vector<8x128xf32>
    %276 = arith.mulf %275, %273 : vector<8x128xf32>
    %277 = arith.mulf %268, %208 : vector<8x128xf32>
    %278 = arith.addf %276, %277 : vector<8x128xf32>
    %c3_76 = arith.constant 3 : index
    %c0_77 = arith.constant 0 : index
    %c0_78 = arith.constant 0 : index
    %279 = vector.load %arg5[%c3_76, %c0_77, %c0_78] : memref<4x8x256xf32, #tpu.memory_space<vmem>>, vector<1x8x128xf32>
    %280 = vector.shape_cast %279 : vector<1x8x128xf32> to vector<8x128xf32>
    %281 = vector.shape_cast %246 : vector<8x128xf32> to vector<1x8x128xf32>
    tpu.vector_store %arg5[%c3_76, %c0_77, %c0_78], %281 {strides = array<i32>} : memref<4x8x256xf32, #tpu.memory_space<vmem>>, vector<1x8x128xf32>,
    %c0_79 = arith.constant 0 : index
    %c0_80 = arith.constant 0 : index
    %c128_81 = arith.constant 128 : index
    %282 = vector.load %arg5[%c0_79, %c0_80, %c128_81] : memref<4x8x256xf32, #tpu.memory_space<vmem>>, vector<1x8x128xf32>
    %283 = vector.shape_cast %282 : vector<1x8x128xf32> to vector<8x128xf32>
    %284 = vector.shape_cast %278 : vector<8x128xf32> to vector<1x8x128xf32>
    tpu.vector_store %arg5[%c0_79, %c0_80, %c128_81], %284 {strides = array<i32>} : memref<4x8x256xf32, #tpu.memory_space<vmem>>, vector<1x8x128xf32>,
    return
  }
}

module attributes {stable_mosaic.version = 11 : i64} {
  func.func @_mamba_fused_kernel(%arg0: memref<4x8x256xf32, #tpu.memory_space<vmem>>, %arg1: memref<256x256xbf16, #tpu.memory_space<vmem>>, %arg2: memref<256x256xbf16, #tpu.memory_space<vmem>>, %arg3: memref<256x256xbf16, #tpu.memory_space<vmem>>, %arg4: memref<1x256xf32, #tpu.memory_space<vmem>>, %arg5: memref<1x256xf32, #tpu.memory_space<vmem>>, %arg6: memref<256x128xbf16, #tpu.memory_space<vmem>>, %arg7: memref<1x128xf32, #tpu.memory_space<vmem>>, %arg8: memref<4x8x128xf32, #tpu.memory_space<vmem>>, %arg9: memref<4x8x256xf32, #tpu.memory_space<vmem>>, %arg10: memref<4x8x256xf32, #tpu.memory_space<vmem>>) attributes {dimension_semantics = [], scalar_prefetch = 0 : i64, scratch_operands = 2 : i64, tpu.core_type = #tpu.core_type<tc>} {
    %c0 = arith.constant 0 : index
    %c0_0 = arith.constant 0 : index
    %c0_1 = arith.constant 0 : index
    %0 = vector.load %arg0[%c0, %c0_0, %c0_1] : memref<4x8x256xf32, #tpu.memory_space<vmem>>, vector<4x8x256xf32>
    %1 = vector.shape_cast %0 : vector<4x8x256xf32> to vector<32x256xf32>
    %2 = arith.truncf %1 : vector<32x256xf32> to vector<32x256xbf16>
    %c0_2 = arith.constant 0 : index
    %c0_3 = arith.constant 0 : index
    %3 = vector.load %arg1[%c0_2, %c0_3] : memref<256x256xbf16, #tpu.memory_space<vmem>>, vector<256x256xbf16>
    %cst = arith.constant dense<0.000000e+00> : vector<32x256xf32>
    %4 = tpu.matmul %2, %3, %cst {dimension_numbers = #tpu.dot_dimension_numbers<[1], [0], [0], [1], [0, 0, 1, 1], [], []>} : vector<32x256xbf16>, vector<256x256xbf16>, vector<32x256xf32> -> vector<32x256xf32>
    %5 = vector.shape_cast %4 : vector<32x256xf32> to vector<4x8x256xf32>
    %c0_4 = arith.constant 0 : index
    %c0_5 = arith.constant 0 : index
    %c0_6 = arith.constant 0 : index
    %6 = vector.load %arg9[%c0_4, %c0_5, %c0_6] : memref<4x8x256xf32, #tpu.memory_space<vmem>>, vector<4x8x256xf32>
    tpu.vector_store %arg9[%c0_4, %c0_5, %c0_6], %5 {strides = array<i32>} : memref<4x8x256xf32, #tpu.memory_space<vmem>>, vector<4x8x256xf32>,
    %c0_7 = arith.constant 0 : index
    %c0_8 = arith.constant 0 : index
    %7 = vector.load %arg2[%c0_7, %c0_8] : memref<256x256xbf16, #tpu.memory_space<vmem>>, vector<256x256xbf16>
    %cst_9 = arith.constant 0.000000e+00 : f32
    %8 = vector.broadcast %cst_9 : f32 to vector<8x256xf32>
    %9 = arith.truncf %8 : vector<8x256xf32> to vector<8x256xbf16>
    %cst_10 = arith.constant dense<0.000000e+00> : vector<8x256xf32>
    %10 = tpu.matmul %9, %7, %cst_10 {dimension_numbers = #tpu.dot_dimension_numbers<[1], [0], [0], [1], [0, 0, 1, 1], [], []>} : vector<8x256xbf16>, vector<256x256xbf16>, vector<8x256xf32> -> vector<8x256xf32>
    %c0_11 = arith.constant 0 : index
    %c0_12 = arith.constant 0 : index
    %c0_13 = arith.constant 0 : index
    %11 = vector.load %arg9[%c0_11, %c0_12, %c0_13] : memref<4x8x256xf32, #tpu.memory_space<vmem>>, vector<1x8x256xf32>
    %12 = vector.shape_cast %11 : vector<1x8x256xf32> to vector<8x256xf32>
    %13 = arith.addf %10, %12 : vector<8x256xf32>
    %cst_14 = arith.constant 5.000000e-01 : f32
    %14 = vector.broadcast %cst_14 : f32 to vector<8x256xf32>
    %15 = arith.mulf %14, %13 : vector<8x256xf32>
    %cst_15 = arith.constant 4.471500e-02 : f32
    %16 = vector.broadcast %cst_15 : f32 to vector<8x256xf32>
    %17 = arith.mulf %16, %13 : vector<8x256xf32>
    %18 = arith.mulf %17, %13 : vector<8x256xf32>
    %19 = arith.mulf %18, %13 : vector<8x256xf32>
    %20 = arith.addf %13, %19 : vector<8x256xf32>
    %cst_16 = arith.constant 0.797884583 : f32
    %21 = vector.broadcast %cst_16 : f32 to vector<8x256xf32>
    %22 = arith.mulf %21, %20 : vector<8x256xf32>
    %23 = math.tanh %22 : vector<8x256xf32>
    %cst_17 = arith.constant 1.000000e+00 : f32
    %24 = vector.broadcast %cst_17 : f32 to vector<8x256xf32>
    %25 = arith.addf %24, %23 : vector<8x256xf32>
    %26 = arith.mulf %15, %25 : vector<8x256xf32>
    %c0_18 = arith.constant 0 : index
    %c0_19 = arith.constant 0 : index
    %c0_20 = arith.constant 0 : index
    %27 = vector.load %arg10[%c0_18, %c0_19, %c0_20] : memref<4x8x256xf32, #tpu.memory_space<vmem>>, vector<1x8x256xf32>
    %28 = vector.shape_cast %27 : vector<1x8x256xf32> to vector<8x256xf32>
    %29 = vector.shape_cast %26 : vector<8x256xf32> to vector<1x8x256xf32>
    tpu.vector_store %arg10[%c0_18, %c0_19, %c0_20], %29 {strides = array<i32>} : memref<4x8x256xf32, #tpu.memory_space<vmem>>, vector<1x8x256xf32>,
    %30 = arith.truncf %26 : vector<8x256xf32> to vector<8x256xbf16>
    %cst_21 = arith.constant dense<0.000000e+00> : vector<8x256xf32>
    %31 = tpu.matmul %30, %7, %cst_21 {dimension_numbers = #tpu.dot_dimension_numbers<[1], [0], [0], [1], [0, 0, 1, 1], [], []>} : vector<8x256xbf16>, vector<256x256xbf16>, vector<8x256xf32> -> vector<8x256xf32>
    %c1 = arith.constant 1 : index
    %c0_22 = arith.constant 0 : index
    %c0_23 = arith.constant 0 : index
    %32 = vector.load %arg9[%c1, %c0_22, %c0_23] : memref<4x8x256xf32, #tpu.memory_space<vmem>>, vector<1x8x256xf32>
    %33 = vector.shape_cast %32 : vector<1x8x256xf32> to vector<8x256xf32>
    %34 = arith.addf %31, %33 : vector<8x256xf32>
    %cst_24 = arith.constant 5.000000e-01 : f32
    %35 = vector.broadcast %cst_24 : f32 to vector<8x256xf32>
    %36 = arith.mulf %35, %34 : vector<8x256xf32>
    %cst_25 = arith.constant 4.471500e-02 : f32
    %37 = vector.broadcast %cst_25 : f32 to vector<8x256xf32>
    %38 = arith.mulf %37, %34 : vector<8x256xf32>
    %39 = arith.mulf %38, %34 : vector<8x256xf32>
    %40 = arith.mulf %39, %34 : vector<8x256xf32>
    %41 = arith.addf %34, %40 : vector<8x256xf32>
    %cst_26 = arith.constant 0.797884583 : f32
    %42 = vector.broadcast %cst_26 : f32 to vector<8x256xf32>
    %43 = arith.mulf %42, %41 : vector<8x256xf32>
    %44 = math.tanh %43 : vector<8x256xf32>
    %cst_27 = arith.constant 1.000000e+00 : f32
    %45 = vector.broadcast %cst_27 : f32 to vector<8x256xf32>
    %46 = arith.addf %45, %44 : vector<8x256xf32>
    %47 = arith.mulf %36, %46 : vector<8x256xf32>
    %c1_28 = arith.constant 1 : index
    %c0_29 = arith.constant 0 : index
    %c0_30 = arith.constant 0 : index
    %48 = vector.load %arg10[%c1_28, %c0_29, %c0_30] : memref<4x8x256xf32, #tpu.memory_space<vmem>>, vector<1x8x256xf32>
    %49 = vector.shape_cast %48 : vector<1x8x256xf32> to vector<8x256xf32>
    %50 = vector.shape_cast %47 : vector<8x256xf32> to vector<1x8x256xf32>
    tpu.vector_store %arg10[%c1_28, %c0_29, %c0_30], %50 {strides = array<i32>} : memref<4x8x256xf32, #tpu.memory_space<vmem>>, vector<1x8x256xf32>,
    %51 = arith.truncf %47 : vector<8x256xf32> to vector<8x256xbf16>
    %cst_31 = arith.constant dense<0.000000e+00> : vector<8x256xf32>
    %52 = tpu.matmul %51, %7, %cst_31 {dimension_numbers = #tpu.dot_dimension_numbers<[1], [0], [0], [1], [0, 0, 1, 1], [], []>} : vector<8x256xbf16>, vector<256x256xbf16>, vector<8x256xf32> -> vector<8x256xf32>
    %c2 = arith.constant 2 : index
    %c0_32 = arith.constant 0 : index
    %c0_33 = arith.constant 0 : index
    %53 = vector.load %arg9[%c2, %c0_32, %c0_33] : memref<4x8x256xf32, #tpu.memory_space<vmem>>, vector<1x8x256xf32>
    %54 = vector.shape_cast %53 : vector<1x8x256xf32> to vector<8x256xf32>
    %55 = arith.addf %52, %54 : vector<8x256xf32>
    %cst_34 = arith.constant 5.000000e-01 : f32
    %56 = vector.broadcast %cst_34 : f32 to vector<8x256xf32>
    %57 = arith.mulf %56, %55 : vector<8x256xf32>
    %cst_35 = arith.constant 4.471500e-02 : f32
    %58 = vector.broadcast %cst_35 : f32 to vector<8x256xf32>
    %59 = arith.mulf %58, %55 : vector<8x256xf32>
    %60 = arith.mulf %59, %55 : vector<8x256xf32>
    %61 = arith.mulf %60, %55 : vector<8x256xf32>
    %62 = arith.addf %55, %61 : vector<8x256xf32>
    %cst_36 = arith.constant 0.797884583 : f32
    %63 = vector.broadcast %cst_36 : f32 to vector<8x256xf32>
    %64 = arith.mulf %63, %62 : vector<8x256xf32>
    %65 = math.tanh %64 : vector<8x256xf32>
    %cst_37 = arith.constant 1.000000e+00 : f32
    %66 = vector.broadcast %cst_37 : f32 to vector<8x256xf32>
    %67 = arith.addf %66, %65 : vector<8x256xf32>
    %68 = arith.mulf %57, %67 : vector<8x256xf32>
    %c2_38 = arith.constant 2 : index
    %c0_39 = arith.constant 0 : index
    %c0_40 = arith.constant 0 : index
    %69 = vector.load %arg10[%c2_38, %c0_39, %c0_40] : memref<4x8x256xf32, #tpu.memory_space<vmem>>, vector<1x8x256xf32>
    %70 = vector.shape_cast %69 : vector<1x8x256xf32> to vector<8x256xf32>
    %71 = vector.shape_cast %68 : vector<8x256xf32> to vector<1x8x256xf32>
    tpu.vector_store %arg10[%c2_38, %c0_39, %c0_40], %71 {strides = array<i32>} : memref<4x8x256xf32, #tpu.memory_space<vmem>>, vector<1x8x256xf32>,
    %72 = arith.truncf %68 : vector<8x256xf32> to vector<8x256xbf16>
    %cst_41 = arith.constant dense<0.000000e+00> : vector<8x256xf32>
    %73 = tpu.matmul %72, %7, %cst_41 {dimension_numbers = #tpu.dot_dimension_numbers<[1], [0], [0], [1], [0, 0, 1, 1], [], []>} : vector<8x256xbf16>, vector<256x256xbf16>, vector<8x256xf32> -> vector<8x256xf32>
    %c3 = arith.constant 3 : index
    %c0_42 = arith.constant 0 : index
    %c0_43 = arith.constant 0 : index
    %74 = vector.load %arg9[%c3, %c0_42, %c0_43] : memref<4x8x256xf32, #tpu.memory_space<vmem>>, vector<1x8x256xf32>
    %75 = vector.shape_cast %74 : vector<1x8x256xf32> to vector<8x256xf32>
    %76 = arith.addf %73, %75 : vector<8x256xf32>
    %cst_44 = arith.constant 5.000000e-01 : f32
    %77 = vector.broadcast %cst_44 : f32 to vector<8x256xf32>
    %78 = arith.mulf %77, %76 : vector<8x256xf32>
    %cst_45 = arith.constant 4.471500e-02 : f32
    %79 = vector.broadcast %cst_45 : f32 to vector<8x256xf32>
    %80 = arith.mulf %79, %76 : vector<8x256xf32>
    %81 = arith.mulf %80, %76 : vector<8x256xf32>
    %82 = arith.mulf %81, %76 : vector<8x256xf32>
    %83 = arith.addf %76, %82 : vector<8x256xf32>
    %cst_46 = arith.constant 0.797884583 : f32
    %84 = vector.broadcast %cst_46 : f32 to vector<8x256xf32>
    %85 = arith.mulf %84, %83 : vector<8x256xf32>
    %86 = math.tanh %85 : vector<8x256xf32>
    %cst_47 = arith.constant 1.000000e+00 : f32
    %87 = vector.broadcast %cst_47 : f32 to vector<8x256xf32>
    %88 = arith.addf %87, %86 : vector<8x256xf32>
    %89 = arith.mulf %78, %88 : vector<8x256xf32>
    %c3_48 = arith.constant 3 : index
    %c0_49 = arith.constant 0 : index
    %c0_50 = arith.constant 0 : index
    %90 = vector.load %arg10[%c3_48, %c0_49, %c0_50] : memref<4x8x256xf32, #tpu.memory_space<vmem>>, vector<1x8x256xf32>
    %91 = vector.shape_cast %90 : vector<1x8x256xf32> to vector<8x256xf32>
    %92 = vector.shape_cast %89 : vector<8x256xf32> to vector<1x8x256xf32>
    tpu.vector_store %arg10[%c3_48, %c0_49, %c0_50], %92 {strides = array<i32>} : memref<4x8x256xf32, #tpu.memory_space<vmem>>, vector<1x8x256xf32>,
    %c0_51 = arith.constant 0 : index
    %c0_52 = arith.constant 0 : index
    %c0_53 = arith.constant 0 : index
    %93 = vector.load %arg10[%c0_51, %c0_52, %c0_53] : memref<4x8x256xf32, #tpu.memory_space<vmem>>, vector<4x8x256xf32>
    %94 = vector.shape_cast %93 : vector<4x8x256xf32> to vector<32x256xf32>
    %95 = arith.truncf %94 : vector<32x256xf32> to vector<32x256xbf16>
    %c0_54 = arith.constant 0 : index
    %c0_55 = arith.constant 0 : index
    %96 = vector.load %arg3[%c0_54, %c0_55] : memref<256x256xbf16, #tpu.memory_space<vmem>>, vector<256x256xbf16>
    %cst_56 = arith.constant dense<0.000000e+00> : vector<32x256xf32>
    %97 = tpu.matmul %95, %96, %cst_56 {dimension_numbers = #tpu.dot_dimension_numbers<[1], [0], [0], [1], [0, 0, 1, 1], [], []>} : vector<32x256xbf16>, vector<256x256xbf16>, vector<32x256xf32> -> vector<32x256xf32>
    %cst_57 = arith.constant dense<0.000000e+00> : vector<32xf32>
    %98 = vector.multi_reduction <add>, %97, %cst_57 [1] : vector<32x256xf32> to vector<32xf32>
    %99 = vector.shape_cast %98 : vector<32xf32> to vector<32x1xf32>
    %cst_58 = arith.constant 2.560000e+02 : f32
    %100 = vector.broadcast %cst_58 : f32 to vector<32x1xf32>
    %101 = arith.divf %99, %100 : vector<32x1xf32>
    %102 = vector.broadcast %101 : vector<32x1xf32> to vector<32x256xf32>
    %103 = arith.subf %97, %102 : vector<32x256xf32>
    %104 = arith.mulf %103, %103 : vector<32x256xf32>
    %cst_59 = arith.constant dense<0.000000e+00> : vector<32xf32>
    %105 = vector.multi_reduction <add>, %104, %cst_59 [1] : vector<32x256xf32> to vector<32xf32>
    %106 = vector.shape_cast %105 : vector<32xf32> to vector<32x1xf32>
    %cst_60 = arith.constant 2.560000e+02 : f32
    %107 = vector.broadcast %cst_60 : f32 to vector<32x1xf32>
    %108 = arith.divf %106, %107 : vector<32x1xf32>
    %109 = vector.broadcast %101 : vector<32x1xf32> to vector<32x256xf32>
    %110 = arith.subf %97, %109 : vector<32x256xf32>
    %cst_61 = arith.constant 9.99999974E-6 : f32
    %111 = vector.broadcast %cst_61 : f32 to vector<32x1xf32>
    %112 = arith.addf %108, %111 : vector<32x1xf32>
    %113 = math.rsqrt %112 : vector<32x1xf32>
    %114 = vector.broadcast %113 : vector<32x1xf32> to vector<32x256xf32>
    %115 = arith.mulf %110, %114 : vector<32x256xf32>
    %c0_62 = arith.constant 0 : index
    %c0_63 = arith.constant 0 : index
    %116 = vector.load %arg4[%c0_62, %c0_63] : memref<1x256xf32, #tpu.memory_space<vmem>>, vector<1x256xf32>
    %117 = vector.broadcast %116 : vector<1x256xf32> to vector<32x256xf32>
    %118 = arith.mulf %115, %117 : vector<32x256xf32>
    %c0_64 = arith.constant 0 : index
    %c0_65 = arith.constant 0 : index
    %119 = vector.load %arg5[%c0_64, %c0_65] : memref<1x256xf32, #tpu.memory_space<vmem>>, vector<1x256xf32>
    %120 = vector.broadcast %119 : vector<1x256xf32> to vector<32x256xf32>
    %121 = arith.addf %118, %120 : vector<32x256xf32>
    %122 = arith.truncf %121 : vector<32x256xf32> to vector<32x256xbf16>
    %c0_66 = arith.constant 0 : index
    %c0_67 = arith.constant 0 : index
    %123 = vector.load %arg6[%c0_66, %c0_67] : memref<256x128xbf16, #tpu.memory_space<vmem>>, vector<256x128xbf16>
    %cst_68 = arith.constant dense<0.000000e+00> : vector<32x128xf32>
    %124 = tpu.matmul %122, %123, %cst_68 {dimension_numbers = #tpu.dot_dimension_numbers<[1], [0], [0], [1], [0, 0, 1, 1], [], []>} : vector<32x256xbf16>, vector<256x128xbf16>, vector<32x128xf32> -> vector<32x128xf32>
    %c0_69 = arith.constant 0 : index
    %c0_70 = arith.constant 0 : index
    %125 = vector.load %arg7[%c0_69, %c0_70] : memref<1x128xf32, #tpu.memory_space<vmem>>, vector<1x128xf32>
    %126 = vector.broadcast %125 : vector<1x128xf32> to vector<32x128xf32>
    %127 = arith.addf %124, %126 : vector<32x128xf32>
    %128 = vector.shape_cast %127 : vector<32x128xf32> to vector<4x8x128xf32>
    %c0_71 = arith.constant 0 : index
    %c0_72 = arith.constant 0 : index
    %c0_73 = arith.constant 0 : index
    %129 = vector.load %arg8[%c0_71, %c0_72, %c0_73] : memref<4x8x128xf32, #tpu.memory_space<vmem>>, vector<4x8x128xf32>
    tpu.vector_store %arg8[%c0_71, %c0_72, %c0_73], %128 {strides = array<i32>} : memref<4x8x128xf32, #tpu.memory_space<vmem>>, vector<4x8x128xf32>,
    return
  }
}

</mosaic_0001>

<llo_original>
// kernel: _lambda_.4
$region0: #{_lambda_.4}
  #allocation0 [shape = 'u32[]', space=smem, size = 0x4, offset = 0x4, fixed_abs, tag = 'smem constant byte address 0x4 - core index']
  #allocation1 [shape = 'u32[144,128]{1,0:T(1,128)}', space=vmem, size = 0x12000, scoped, tag = 'internal scratch']
  %s0 = inlined_call_operand.vmem [shape: f32[4,8,768], index: 0, kind: input, shape index: {}]
  %s1 = inlined_call_operand.vmem [shape: bf16[128,384], index: 1, kind: input, shape index: {}]
  %s2 = inlined_call_operand.vmem [shape: f32[1,384], index: 2, kind: input, shape index: {}]
  %s3 = inlined_call_operand.vmem [shape: bf16[128,384], index: 3, kind: input, shape index: {}]
  %s4 = inlined_call_operand.vmem [shape: f32[1,384], index: 4, kind: input, shape index: {}]
  %s5 = inlined_call_operand.vmem [shape: f32[4,8,256], index: 5, kind: output, shape index: {}]
  %s6 = sld [smem:[#allocation0]]
  $region30: #{_lambda_.4} parent=0
    _
  %s8 = ssub.s32 1, %s6
  %s9 = scalar_select 0, %s8, %s6
  // Predicated region
  $region2: #{_lambda_.4} parent=0 // pred_check
    _
  $region3: #{_lambda_.4} parent=0 // pred_check_branch
    %11 = sbr.rel (0) target = $region5
  $region4: #{_lambda_.4} parent=0 // pred_region
    _
  $region5: #{_lambda_.4} parent=0 // pred_fallthru
    _
  // Predicated region
  $region6: #{_lambda_.4} parent=0 // pred_check
    _
  $region7: #{_lambda_.4} parent=0 // pred_check_branch
    %13 = sbr.rel (0) target = $region9
  $region8: #{_lambda_.4} parent=0 // pred_region
    _
  $region9: #{_lambda_.4} parent=0 // pred_fallthru
    _
  // Predicated region
  $region10: #{_lambda_.4} parent=0 // pred_check
    _
  $region11: #{_lambda_.4} parent=0 // pred_check_branch
    %15 = sbr.rel (0) target = $region13
  $region12: #{_lambda_.4} parent=0 // pred_region
    _
  $region13: #{_lambda_.4} parent=0 // pred_fallthru
    _
  // Predicated region
  $region14: #{_lambda_.4} parent=0 // pred_check
    _
  $region15: #{_lambda_.4} parent=0 // pred_check_branch
    %17 = sbr.rel (0) target = $region17
  $region16: #{_lambda_.4} parent=0 // pred_region
    _
  $region17: #{_lambda_.4} parent=0 // pred_fallthru
    _
  // Predicated region
  $region18: #{_lambda_.4} parent=0 // pred_check
    _
  $region19: #{_lambda_.4} parent=0 // pred_check_branch
    %19 = sbr.rel (0) target = $region21
  $region20: #{_lambda_.4} parent=0 // pred_region
    _
  $region21: #{_lambda_.4} parent=0 // pred_fallthru
    _
  %v21 = vld [vmem:[%s1] sm:$0xff]
  %v22 = vld [vmem:[%s1 + $0x8] sm:$0xf]
  %v23 = vld [vmem:[%s1 + $0xc] sm:$0xff]
  %v24 = vld [vmem:[%s1 + $0x14] sm:$0xf]
  %v25 = vld [vmem:[%s1 + $0x18] sm:$0xff]
  %v26 = vld [vmem:[%s1 + $0x20] sm:$0xf]
  %v27 = vld [vmem:[%s1 + $0x24] sm:$0xff]
  %v28 = vld [vmem:[%s1 + $0x2c] sm:$0xf]
  %v29 = vld [vmem:[%s1 + $0x30] sm:$0xff]
  %v30 = vld [vmem:[%s1 + $0x38] sm:$0xf]
  %v31 = vld [vmem:[%s1 + $0x3c] sm:$0xff]
  %v32 = vld [vmem:[%s1 + $0x44] sm:$0xf]
  %v33 = vld [vmem:[%s1 + $0x48] sm:$0xff]
  %v34 = vld [vmem:[%s1 + $0x50] sm:$0xf]
  %v35 = vld [vmem:[%s1 + $0x54] sm:$0xff]
  %v36 = vld [vmem:[%s1 + $0x5c] sm:$0xf]
  %v37 = vld [vmem:[%s1 + $0x60] sm:$0xff]
  %v38 = vld [vmem:[%s1 + $0x68] sm:$0xf]
  %v39 = vld [vmem:[%s1 + $0x6c] sm:$0xff]
  %v40 = vld [vmem:[%s1 + $0x74] sm:$0xf]
  %v41 = vld [vmem:[%s1 + $0x78] sm:$0xff]
  %v42 = vld [vmem:[%s1 + $0x80] sm:$0xf]
  %v43 = vld [vmem:[%s1 + $0x84] sm:$0xff]
  %v44 = vld [vmem:[%s1 + $0x8c] sm:$0xf]
  %v45 = vld [vmem:[%s1 + $0x90] sm:$0xff]
  %v46 = vld [vmem:[%s1 + $0x98] sm:$0xf]
  %v47 = vld [vmem:[%s1 + $0x9c] sm:$0xff]
  %v48 = vld [vmem:[%s1 + $0xa4] sm:$0xf]
  %v49 = vld [vmem:[%s1 + $0xa8] sm:$0xff]
  %v50 = vld [vmem:[%s1 + $0xb0] sm:$0xf]
  %v51 = vld [vmem:[%s1 + $0xb4] sm:$0xff]
  %v52 = vld [vmem:[%s1 + $0xbc] sm:$0xf]
  %v53 = vld [vmem:[%s3] sm:$0xff]
  %v54 = vld [vmem:[%s3 + $0x8] sm:$0xf]
  %v55 = vld [vmem:[%s3 + $0xc] sm:$0xff]
  %v56 = vld [vmem:[%s3 + $0x14] sm:$0xf]
  %v57 = vld [vmem:[%s3 + $0x18] sm:$0xff]
  %v58 = vld [vmem:[%s3 + $0x20] sm:$0xf]
  %v59 = vld [vmem:[%s3 + $0x24] sm:$0xff]
  %v60 = vld [vmem:[%s3 + $0x2c] sm:$0xf]
  %v61 = vld [vmem:[%s3 + $0x30] sm:$0xff]
  %v62 = vld [vmem:[%s3 + $0x38] sm:$0xf]
  %v63 = vld [vmem:[%s3 + $0x3c] sm:$0xff]
  %v64 = vld [vmem:[%s3 + $0x44] sm:$0xf]
  %v65 = vld [vmem:[%s3 + $0x48] sm:$0xff]
  %v66 = vld [vmem:[%s3 + $0x50] sm:$0xf]
  %v67 = vld [vmem:[%s3 + $0x54] sm:$0xff]
  %v68 = vld [vmem:[%s3 + $0x5c] sm:$0xf]
  %v69 = vld [vmem:[%s3 + $0x60] sm:$0xff]
  %v70 = vld [vmem:[%s3 + $0x68] sm:$0xf]
  %v71 = vld [vmem:[%s3 + $0x6c] sm:$0xff]
  %v72 = vld [vmem:[%s3 + $0x74] sm:$0xf]
  %v73 = vld [vmem:[%s3 + $0x78] sm:$0xff]
  %v74 = vld [vmem:[%s3 + $0x80] sm:$0xf]
  %v75 = vld [vmem:[%s3 + $0x84] sm:$0xff]
  %v76 = vld [vmem:[%s3 + $0x8c] sm:$0xf]
  %v77 = vld [vmem:[%s3 + $0x90] sm:$0xff]
  %v78 = vld [vmem:[%s3 + $0x98] sm:$0xf]
  %v79 = vld [vmem:[%s3 + $0x9c] sm:$0xff]
  %v80 = vld [vmem:[%s3 + $0xa4] sm:$0xf]
  %v81 = vld [vmem:[%s3 + $0xa8] sm:$0xff]
  %v82 = vld [vmem:[%s3 + $0xb0] sm:$0xf]
  %v83 = vld [vmem:[%s3 + $0xb4] sm:$0xff]
  %v84 = vld [vmem:[%s3 + $0xbc] sm:$0xf]
  %v85 = vld [vmem:[%s2] sm:$0x7]
  %v86 = vld [vmem:[%s4] sm:$0x7]
  %v87 = vld [vmem:[%s0] sm:$0xff]
  %v88 = vld [vmem:[%s0 + $0x8] sm:$0xff]
  %v89 = vld [vmem:[%s0 + $0x10] sm:$0xff]
  %v91 = vlaneseq
  %v92 = vshrl.u32 %v91, 7
  %v93 = vsub.s32 0, %v92
  %v94 = vrot.slane %v85, %v93
  %v95 = vlaneseq
  %v96 = vshrl.u32 %v95, 7
  %v97 = vsub.s32 1, %v96
  %v98 = vrot.slane %v85, %v97
  %v99 = vlaneseq
  %v100 = vshrl.u32 %v99, 7
  %v101 = vsub.s32 2, %v100
  %v102 = vrot.slane %v85, %v101
  %v138 = vunpack.c.l.b16 %v21
  %v139 = vunpack.c.h.b16 %v21
  %v140 = vunpack.c.l.b16 %v22
  %v141 = vunpack.c.l.b16 %v23
  %v142 = vunpack.c.h.b16 %v23
  %v143 = vunpack.c.l.b16 %v24
  %v144 = vunpack.c.l.b16 %v25
  %v145 = vunpack.c.h.b16 %v25
  %v146 = vunpack.c.l.b16 %v26
  %v147 = vunpack.c.l.b16 %v27
  %v148 = vunpack.c.h.b16 %v27
  %v149 = vunpack.c.l.b16 %v28
  %v150 = vunpack.c.l.b16 %v29
  %v151 = vunpack.c.h.b16 %v29
  %v152 = vunpack.c.l.b16 %v30
  %v153 = vunpack.c.l.b16 %v31
  %v154 = vunpack.c.h.b16 %v31
  %v155 = vunpack.c.l.b16 %v32
  %v156 = vunpack.c.l.b16 %v33
  %v157 = vunpack.c.h.b16 %v33
  %v158 = vunpack.c.l.b16 %v34
  %v159 = vunpack.c.l.b16 %v35
  %v160 = vunpack.c.h.b16 %v35
  %v161 = vunpack.c.l.b16 %v36
  %v162 = vunpack.c.l.b16 %v37
  %v163 = vunpack.c.h.b16 %v37
  %v164 = vunpack.c.l.b16 %v38
  %v165 = vunpack.c.l.b16 %v39
  %v166 = vunpack.c.h.b16 %v39
  %v167 = vunpack.c.l.b16 %v40
  %v168 = vunpack.c.l.b16 %v41
  %v169 = vunpack.c.h.b16 %v41
  %v170 = vunpack.c.l.b16 %v42
  %v171 = vunpack.c.l.b16 %v43
  %v172 = vunpack.c.h.b16 %v43
  %v173 = vunpack.c.l.b16 %v44
  %v174 = vunpack.c.l.b16 %v45
  %v175 = vunpack.c.h.b16 %v45
  %v176 = vunpack.c.l.b16 %v46
  %v177 = vunpack.c.l.b16 %v47
  %v178 = vunpack.c.h.b16 %v47
  %v179 = vunpack.c.l.b16 %v48
  %v180 = vunpack.c.l.b16 %v49
  %v181 = vunpack.c.h.b16 %v49
  %v182 = vunpack.c.l.b16 %v50
  %v183 = vunpack.c.l.b16 %v51
  %v184 = vunpack.c.h.b16 %v51
  %v185 = vunpack.c.l.b16 %v52
  %v186 = vpack.c.b16 %v141, %v138
  %v187 = vpack.c.b16 %v142, %v139
  %v188 = vpack.c.b16 %v143, %v140
  %v189 = vpack.c.b16 %v147, %v144
  %v190 = vpack.c.b16 %v148, %v145
  %v191 = vpack.c.b16 %v149, %v146
  %v192 = vpack.c.b16 %v153, %v150
  %v193 = vpack.c.b16 %v154, %v151
  %v194 = vpack.c.b16 %v155, %v152
  %v195 = vpack.c.b16 %v159, %v156
  %v196 = vpack.c.b16 %v160, %v157
  %v197 = vpack.c.b16 %v161, %v158
  %v198 = vpack.c.b16 %v165, %v162
  %v199 = vpack.c.b16 %v166, %v163
  %v200 = vpack.c.b16 %v167, %v164
  %v201 = vpack.c.b16 %v171, %v168
  %v202 = vpack.c.b16 %v172, %v169
  %v203 = vpack.c.b16 %v173, %v170
  %v204 = vpack.c.b16 %v177, %v174
  %v205 = vpack.c.b16 %v178, %v175
  %v206 = vpack.c.b16 %v179, %v176
  %v207 = vpack.c.b16 %v183, %v180
  %v208 = vpack.c.b16 %v184, %v181
  %v209 = vpack.c.b16 %v185, %v182
  %234 = vmatprep.subr.bf16.mxu0 %v187
  %235 = vmatpush1.bf16.msra.mxu0 %v186
  %236 = vmatprep.subr.bf16.mxu0 %v190
  %237 = vmatpush1.bf16.msra.mxu0 %v189
  %238 = vmatprep.subr.bf16.mxu0 %v193
  %239 = vmatpush1.bf16.msra.mxu0 %v192
  %240 = vmatprep.subr.bf16.mxu0 %v196
  %241 = vmatpush1.bf16.msra.mxu0 %v195
  %242 = vmatprep.subr.bf16.mxu0 %v199
  %243 = vmatpush1.bf16.msra.mxu0 %v198
  %244 = vmatprep.subr.bf16.mxu0 %v202
  %245 = vmatpush1.bf16.msra.mxu0 %v201
  %246 = vmatprep.subr.bf16.mxu0 %v205
  %247 = vmatpush1.bf16.msra.mxu0 %v204
  %248 = vmatprep.subr.bf16.mxu0 %v208
  %249 = vmatpush1.bf16.msra.mxu0 %v207
  %250 = vmatprep.subr.bf16.mxu0 0
  %251 = vmatpush1.bf16.msra.mxu0 0
  %252 = vmatprep.subr.bf16.mxu0 0
  %253 = vmatpush1.bf16.msra.mxu0 0
  %254 = vmatprep.subr.bf16.mxu0 0
  %255 = vmatpush1.bf16.msra.mxu0 0
  %256 = vmatprep.subr.bf16.mxu0 0
  %257 = vmatpush1.bf16.msra.mxu0 0
  %258 = vmatprep.subr.bf16.mxu0 0
  %259 = vmatpush1.bf16.msra.mxu0 0
  %260 = vmatprep.subr.bf16.mxu0 0
  %261 = vmatpush1.bf16.msra.mxu0 0
  %262 = vmatprep.subr.bf16.mxu0 0
  %263 = vmatpush1.bf16.msra.mxu0 0
  %264 = vmatprep.subr.bf16.mxu0 0
  %265 = vmatpush1.bf16.msra.mxu0 0
  %266 = vmatprep.mubr.bf16.mxu0 0
  %267 = vmatmul.mubr.bf16.gmra.mrb[0].mxu0 0
  %v268 = vpop.f32.mrb[0].mxu0
  %v269 = vadd.f32 %v94, %v268
  %v270 = vpop.f32.mrb[0].mxu0
  %v271 = vadd.f32 %v98, %v270
  %v272 = vpop.f32.mrb[0].mxu0
  %v273 = vpop.f32.mrb[0].mxu0
  %274 = vdwg.mxu0
  %275 = vmatprep.subr.bf16.mxu0 0
  %276 = vmatpush1.bf16.msra.mxu0 %v188
  %277 = vmatprep.subr.bf16.mxu0 0
  %278 = vmatpush1.bf16.msra.mxu0 %v191
  %279 = vmatprep.subr.bf16.mxu0 0
  %280 = vmatpush1.bf16.msra.mxu0 %v194
  %281 = vmatprep.subr.bf16.mxu0 0
  %282 = vmatpush1.bf16.msra.mxu0 %v197
  %283 = vmatprep.subr.bf16.mxu0 0
  %284 = vmatpush1.bf16.msra.mxu0 %v200
  %285 = vmatprep.subr.bf16.mxu0 0
  %286 = vmatpush1.bf16.msra.mxu0 %v203
  %287 = vmatprep.subr.bf16.mxu0 0
  %288 = vmatpush1.bf16.msra.mxu0 %v206
  %289 = vmatprep.subr.bf16.mxu0 0
  %290 = vmatpush1.bf16.msra.mxu0 %v209
  %291 = vmatprep.subr.bf16.mxu0 0
  %292 = vmatpush1.bf16.msra.mxu0 0
  %293 = vmatprep.subr.bf16.mxu0 0
  %294 = vmatpush1.bf16.msra.mxu0 0
  %295 = vmatprep.subr.bf16.mxu0 0
  %296 = vmatpush1.bf16.msra.mxu0 0
  %297 = vmatprep.subr.bf16.mxu0 0
  %298 = vmatpush1.bf16.msra.mxu0 0
  %299 = vmatprep.subr.bf16.mxu0 0
  %300 = vmatpush1.bf16.msra.mxu0 0
  %301 = vmatprep.subr.bf16.mxu0 0
  %302 = vmatpush1.bf16.msra.mxu0 0
  %303 = vmatprep.subr.bf16.mxu0 0
  %304 = vmatpush1.bf16.msra.mxu0 0
  %305 = vmatprep.subr.bf16.mxu0 0
  %306 = vmatpush1.bf16.msra.mxu0 0
  %307 = vmatprep.mubr.bf16.mxu0 0
  %308 = vmatmul.mubr.bf16.gmra.mrb[0].mxu0 0
  %v309 = vpop.f32.mrb[0].mxu0
  %v310 = vadd.f32 %v102, %v309
  %v311 = vpop.f32.mrb[0].mxu0
  %v312 = vpop.f32.mrb[0].mxu0
  %v313 = vpop.f32.mrb[0].mxu0
  %314 = vdwg.mxu0
  %v315 = vadd.f32 %v87, %v269
  %v316 = vxor.u32 %v315, 2147483648
  %v317 = vmul.f32 %v316, 1.442695
  %v318 = vpow.pop %v317
  %v319 = vadd.f32 %v318, 1.0
  %v320 = vrcp.pop %v319
  %v321 = vmul.f32 1.0, %v320
  %v322 = vadd.f32 %v88, %v271
  %v323 = vxor.u32 %v322, 2147483648
  %v324 = vmul.f32 %v323, 1.442695
  %v325 = vpow.pop %v324
  %v326 = vadd.f32 %v325, 1.0
  %v327 = vrcp.pop %v326
  %v328 = vmul.f32 1.0, %v327
  %v329 = vmul.f32 %v321, %v310
  %v330 = vadd.f32 %v89, %v329
  %v331 = vtanh.pop %v330
  %v332 = vsub.f32 1.0, %v328
  %v333 = vmul.f32 %v332, %v331
  %v334 = vmul.f32 %v328, 0.0
  %v335 = vadd.f32 %v333, %v334
  %s336 = scalar_lea.vmem %s0, 144
  %v337 = vld [vmem:[%s336 + $0x18] sm:$0xff]
  %v338 = vld [vmem:[%s336 + $0x20] sm:$0xff]
  %v339 = vld [vmem:[%s336 + $0x28] sm:$0xff]
  %v341 = vlaneseq
  %v342 = vshrl.u32 %v341, 7
  %v343 = vsub.s32 0, %v342
  %v344 = vrot.slane %v86, %v343
  %v345 = vlaneseq
  %v346 = vshrl.u32 %v345, 7
  %v347 = vsub.s32 1, %v346
  %v348 = vrot.slane %v86, %v347
  %v349 = vlaneseq
  %v350 = vshrl.u32 %v349, 7
  %v351 = vsub.s32 2, %v350
  %v352 = vrot.slane %v86, %v351
  %v388 = vunpack.c.l.b16 %v53
  %v389 = vunpack.c.h.b16 %v53
  %v390 = vunpack.c.l.b16 %v54
  %v391 = vunpack.c.l.b16 %v55
  %v392 = vunpack.c.h.b16 %v55
  %v393 = vunpack.c.l.b16 %v56
  %v394 = vunpack.c.l.b16 %v57
  %v395 = vunpack.c.h.b16 %v57
  %v396 = vunpack.c.l.b16 %v58
  %v397 = vunpack.c.l.b16 %v59
  %v398 = vunpack.c.h.b16 %v59
  %v399 = vunpack.c.l.b16 %v60
  %v400 = vunpack.c.l.b16 %v61
  %v401 = vunpack.c.h.b16 %v61
  %v402 = vunpack.c.l.b16 %v62
  %v403 = vunpack.c.l.b16 %v63
  %v404 = vunpack.c.h.b16 %v63
  %v405 = vunpack.c.l.b16 %v64
  %v406 = vunpack.c.l.b16 %v65
  %v407 = vunpack.c.h.b16 %v65
  %v408 = vunpack.c.l.b16 %v66
  %v409 = vunpack.c.l.b16 %v67
  %v410 = vunpack.c.h.b16 %v67
  %v411 = vunpack.c.l.b16 %v68
  %v412 = vunpack.c.l.b16 %v69
  %v413 = vunpack.c.h.b16 %v69
  %v414 = vunpack.c.l.b16 %v70
  %v415 = vunpack.c.l.b16 %v71
  %v416 = vunpack.c.h.b16 %v71
  %v417 = vunpack.c.l.b16 %v72
  %v418 = vunpack.c.l.b16 %v73
  %v419 = vunpack.c.h.b16 %v73
  %v420 = vunpack.c.l.b16 %v74
  %v421 = vunpack.c.l.b16 %v75
  %v422 = vunpack.c.h.b16 %v75
  %v423 = vunpack.c.l.b16 %v76
  %v424 = vunpack.c.l.b16 %v77
  %v425 = vunpack.c.h.b16 %v77
  %v426 = vunpack.c.l.b16 %v78
  %v427 = vunpack.c.l.b16 %v79
  %v428 = vunpack.c.h.b16 %v79
  %v429 = vunpack.c.l.b16 %v80
  %v430 = vunpack.c.l.b16 %v81
  %v431 = vunpack.c.h.b16 %v81
  %v432 = vunpack.c.l.b16 %v82
  %v433 = vunpack.c.l.b16 %v83
  %v434 = vunpack.c.h.b16 %v83
  %v435 = vunpack.c.l.b16 %v84
  %v436 = vpack.c.b16 %v391, %v388
  %v437 = vpack.c.b16 %v392, %v389
  %v438 = vpack.c.b16 %v393, %v390
  %v439 = vpack.c.b16 %v397, %v394
  %v440 = vpack.c.b16 %v398, %v395
  %v441 = vpack.c.b16 %v399, %v396
  %v442 = vpack.c.b16 %v403, %v400
  %v443 = vpack.c.b16 %v404, %v401
  %v444 = vpack.c.b16 %v405, %v402
  %v445 = vpack.c.b16 %v409, %v406
  %v446 = vpack.c.b16 %v410, %v407
  %v447 = vpack.c.b16 %v411, %v408
  %v448 = vpack.c.b16 %v415, %v412
  %v449 = vpack.c.b16 %v416, %v413
  %v450 = vpack.c.b16 %v417, %v414
  %v451 = vpack.c.b16 %v421, %v418
  %v452 = vpack.c.b16 %v422, %v419
  %v453 = vpack.c.b16 %v423, %v420
  %v454 = vpack.c.b16 %v427, %v424
  %v455 = vpack.c.b16 %v428, %v425
  %v456 = vpack.c.b16 %v429, %v426
  %v457 = vpack.c.b16 %v433, %v430
  %v458 = vpack.c.b16 %v434, %v431
  %v459 = vpack.c.b16 %v435, %v432
  %484 = vmatprep.subr.bf16.mxu0 %v437
  %485 = vmatpush1.bf16.msra.mxu0 %v436
  %486 = vmatprep.subr.bf16.mxu0 %v440
  %487 = vmatpush1.bf16.msra.mxu0 %v439
  %488 = vmatprep.subr.bf16.mxu0 %v443
  %489 = vmatpush1.bf16.msra.mxu0 %v442
  %490 = vmatprep.subr.bf16.mxu0 %v446
  %491 = vmatpush1.bf16.msra.mxu0 %v445
  %492 = vmatprep.subr.bf16.mxu0 %v449
  %493 = vmatpush1.bf16.msra.mxu0 %v448
  %494 = vmatprep.subr.bf16.mxu0 %v452
  %495 = vmatpush1.bf16.msra.mxu0 %v451
  %496 = vmatprep.subr.bf16.mxu0 %v455
  %497 = vmatpush1.bf16.msra.mxu0 %v454
  %498 = vmatprep.subr.bf16.mxu0 %v458
  %499 = vmatpush1.bf16.msra.mxu0 %v457
  %500 = vmatprep.subr.bf16.mxu0 0
  %501 = vmatpush1.bf16.msra.mxu0 0
  %502 = vmatprep.subr.bf16.mxu0 0
  %503 = vmatpush1.bf16.msra.mxu0 0
  %504 = vmatprep.subr.bf16.mxu0 0
  %505 = vmatpush1.bf16.msra.mxu0 0
  %506 = vmatprep.subr.bf16.mxu0 0
  %507 = vmatpush1.bf16.msra.mxu0 0
  %508 = vmatprep.subr.bf16.mxu0 0
  %509 = vmatpush1.bf16.msra.mxu0 0
  %510 = vmatprep.subr.bf16.mxu0 0
  %511 = vmatpush1.bf16.msra.mxu0 0
  %512 = vmatprep.subr.bf16.mxu0 0
  %513 = vmatpush1.bf16.msra.mxu0 0
  %514 = vmatprep.subr.bf16.mxu0 0
  %515 = vmatpush1.bf16.msra.mxu0 0
  %516 = vmatprep.mubr.bf16.mxu0 0
  %517 = vmatmul.mubr.bf16.gmra.mrb[0].mxu0 0
  %v518 = vpop.f32.mrb[0].mxu0
  %v519 = vadd.f32 %v344, %v518
  %v520 = vpop.f32.mrb[0].mxu0
  %v521 = vadd.f32 %v348, %v520
  %v522 = vpop.f32.mrb[0].mxu0
  %v523 = vpop.f32.mrb[0].mxu0
  %524 = vdwg.mxu0
  %525 = vmatprep.subr.bf16.mxu0 0
  %526 = vmatpush1.bf16.msra.mxu0 %v438
  %527 = vmatprep.subr.bf16.mxu0 0
  %528 = vmatpush1.bf16.msra.mxu0 %v441
  %529 = vmatprep.subr.bf16.mxu0 0
  %530 = vmatpush1.bf16.msra.mxu0 %v444
  %531 = vmatprep.subr.bf16.mxu0 0
  %532 = vmatpush1.bf16.msra.mxu0 %v447
  %533 = vmatprep.subr.bf16.mxu0 0
  %534 = vmatpush1.bf16.msra.mxu0 %v450
  %535 = vmatprep.subr.bf16.mxu0 0
  %536 = vmatpush1.bf16.msra.mxu0 %v453
  %537 = vmatprep.subr.bf16.mxu0 0
  %538 = vmatpush1.bf16.msra.mxu0 %v456
  %539 = vmatprep.subr.bf16.mxu0 0
  %540 = vmatpush1.bf16.msra.mxu0 %v459
  %541 = vmatprep.subr.bf16.mxu0 0
  %542 = vmatpush1.bf16.msra.mxu0 0
  %543 = vmatprep.subr.bf16.mxu0 0
  %544 = vmatpush1.bf16.msra.mxu0 0
  %545 = vmatprep.subr.bf16.mxu0 0
  %546 = vmatpush1.bf16.msra.mxu0 0
  %547 = vmatprep.subr.bf16.mxu0 0
  %548 = vmatpush1.bf16.msra.mxu0 0
  %549 = vmatprep.subr.bf16.mxu0 0
  %550 = vmatpush1.bf16.msra.mxu0 0
  %551 = vmatprep.subr.bf16.mxu0 0
  %552 = vmatpush1.bf16.msra.mxu0 0
  %553 = vmatprep.subr.bf16.mxu0 0
  %554 = vmatpush1.bf16.msra.mxu0 0
  %555 = vmatprep.subr.bf16.mxu0 0
  %556 = vmatpush1.bf16.msra.mxu0 0
  %557 = vmatprep.mubr.bf16.mxu0 0
  %558 = vmatmul.mubr.bf16.gmra.mrb[0].mxu0 0
  %v559 = vpop.f32.mrb[0].mxu0
  %v560 = vadd.f32 %v352, %v559
  %v561 = vpop.f32.mrb[0].mxu0
  %v562 = vpop.f32.mrb[0].mxu0
  %v563 = vpop.f32.mrb[0].mxu0
  %564 = vdwg.mxu0
  %v565 = vadd.f32 %v337, %v519
  %v566 = vxor.u32 %v565, 2147483648
  %v567 = vmul.f32 %v566, 1.442695
  %v568 = vpow.pop %v567
  %v569 = vadd.f32 %v568, 1.0
  %v570 = vrcp.pop %v569
  %v571 = vmul.f32 1.0, %v570
  %v572 = vadd.f32 %v338, %v521
  %v573 = vxor.u32 %v572, 2147483648
  %v574 = vmul.f32 %v573, 1.442695
  %v575 = vpow.pop %v574
  %v576 = vadd.f32 %v575, 1.0
  %v577 = vrcp.pop %v576
  %v578 = vmul.f32 1.0, %v577
  %v579 = vmul.f32 %v571, %v560
  %v580 = vadd.f32 %v339, %v579
  %v581 = vtanh.pop %v580
  %v582 = vsub.f32 1.0, %v578
  %v583 = vmul.f32 %v582, %v581
  %v584 = vmul.f32 %v578, 0.0
  %v585 = vadd.f32 %v583, %v584
  %586 = vst [vmem:[%s5] sm:$0xff] %v335
  %s587 = scalar_lea.vmem %s5, 48
  %588 = vst [vmem:[%s587 + $0x8] sm:$0xff] %v585
  %s589 = scalar_lea.vmem %s0, 48
  %v590 = vld [vmem:[%s589] sm:$0xff]
  %v591 = vld [vmem:[%s589 + $0x8] sm:$0xff]
  %v592 = vld [vmem:[%s589 + $0x10] sm:$0xff]
  %v593 = vpack.c.bf16 %v335, %v335
  %594 = vmatprep.subr.bf16.mxu0 %v187
  %595 = vmatpush1.bf16.msra.mxu0 %v186
  %596 = vmatprep.subr.bf16.mxu0 %v190
  %597 = vmatpush1.bf16.msra.mxu0 %v189
  %598 = vmatprep.subr.bf16.mxu0 %v193
  %599 = vmatpush1.bf16.msra.mxu0 %v192
  %600 = vmatprep.subr.bf16.mxu0 %v196
  %601 = vmatpush1.bf16.msra.mxu0 %v195
  %602 = vmatprep.subr.bf16.mxu0 %v199
  %603 = vmatpush1.bf16.msra.mxu0 %v198
  %604 = vmatprep.subr.bf16.mxu0 %v202
  %605 = vmatpush1.bf16.msra.mxu0 %v201
  %606 = vmatprep.subr.bf16.mxu0 %v205
  %607 = vmatpush1.bf16.msra.mxu0 %v204
  %608 = vmatprep.subr.bf16.mxu0 %v208
  %609 = vmatpush1.bf16.msra.mxu0 %v207
  %610 = vmatprep.subr.bf16.mxu0 0
  %611 = vmatpush1.bf16.msra.mxu0 0
  %612 = vmatprep.subr.bf16.mxu0 0
  %613 = vmatpush1.bf16.msra.mxu0 0
  %614 = vmatprep.subr.bf16.mxu0 0
  %615 = vmatpush1.bf16.msra.mxu0 0
  %616 = vmatprep.subr.bf16.mxu0 0
  %617 = vmatpush1.bf16.msra.mxu0 0
  %618 = vmatprep.subr.bf16.mxu0 0
  %619 = vmatpush1.bf16.msra.mxu0 0
  %620 = vmatprep.subr.bf16.mxu0 0
  %621 = vmatpush1.bf16.msra.mxu0 0
  %622 = vmatprep.subr.bf16.mxu0 0
  %623 = vmatpush1.bf16.msra.mxu0 0
  %624 = vmatprep.subr.bf16.mxu0 0
  %625 = vmatpush1.bf16.msra.mxu0 0
  %626 = vmatprep.mubr.bf16.mxu0 0
  %627 = vmatmul.mubr.bf16.gmra.mrb[0].mxu0 %v593
  %v628 = vpop.f32.mrb[0].mxu0
  %v629 = vadd.f32 %v94, %v628
  %v630 = vpop.f32.mrb[0].mxu0
  %v631 = vadd.f32 %v98, %v630
  %v632 = vpop.f32.mrb[0].mxu0
  %v633 = vpop.f32.mrb[0].mxu0
  %634 = vdwg.mxu0
  %635 = vmatprep.subr.bf16.mxu0 0
  %636 = vmatpush1.bf16.msra.mxu0 %v188
  %637 = vmatprep.subr.bf16.mxu0 0
  %638 = vmatpush1.bf16.msra.mxu0 %v191
  %639 = vmatprep.subr.bf16.mxu0 0
  %640 = vmatpush1.bf16.msra.mxu0 %v194
  %641 = vmatprep.subr.bf16.mxu0 0
  %642 = vmatpush1.bf16.msra.mxu0 %v197
  %643 = vmatprep.subr.bf16.mxu0 0
  %644 = vmatpush1.bf16.msra.mxu0 %v200
  %645 = vmatprep.subr.bf16.mxu0 0
  %646 = vmatpush1.bf16.msra.mxu0 %v203
  %647 = vmatprep.subr.bf16.mxu0 0
  %648 = vmatpush1.bf16.msra.mxu0 %v206
  %649 = vmatprep.subr.bf16.mxu0 0
  %650 = vmatpush1.bf16.msra.mxu0 %v209
  %651 = vmatprep.subr.bf16.mxu0 0
  %652 = vmatpush1.bf16.msra.mxu0 0
  %653 = vmatprep.subr.bf16.mxu0 0
  %654 = vmatpush1.bf16.msra.mxu0 0
  %655 = vmatprep.subr.bf16.mxu0 0
  %656 = vmatpush1.bf16.msra.mxu0 0
  %657 = vmatprep.subr.bf16.mxu0 0
  %658 = vmatpush1.bf16.msra.mxu0 0
  %659 = vmatprep.subr.bf16.mxu0 0
  %660 = vmatpush1.bf16.msra.mxu0 0
  %661 = vmatprep.subr.bf16.mxu0 0
  %662 = vmatpush1.bf16.msra.mxu0 0
  %663 = vmatprep.subr.bf16.mxu0 0
  %664 = vmatpush1.bf16.msra.mxu0 0
  %665 = vmatprep.subr.bf16.mxu0 0
  %666 = vmatpush1.bf16.msra.mxu0 0
  %667 = vmatprep.mubr.bf16.mxu0 0
  %668 = vmatmul.mubr.bf16.gmra.mrb[0].mxu0 %v593
  %v669 = vpop.f32.mrb[0].mxu0
  %v670 = vadd.f32 %v102, %v669
  %v671 = vpop.f32.mrb[0].mxu0
  %v672 = vpop.f32.mrb[0].mxu0
  %v673 = vpop.f32.mrb[0].mxu0
  %674 = vdwg.mxu0
  %v675 = vadd.f32 %v590, %v629
  %v676 = vxor.u32 %v675, 2147483648
  %v677 = vmul.f32 %v676, 1.442695
  %v678 = vpow.pop %v677
  %v679 = vadd.f32 %v678, 1.0
  %v680 = vrcp.pop %v679
  %v681 = vmul.f32 1.0, %v680
  %v682 = vadd.f32 %v591, %v631
  %v683 = vxor.u32 %v682, 2147483648
  %v684 = vmul.f32 %v683, 1.442695
  %v685 = vpow.pop %v684
  %v686 = vadd.f32 %v685, 1.0
  %v687 = vrcp.pop %v686
  %v688 = vmul.f32 1.0, %v687
  %v689 = vmul.f32 %v681, %v670
  %v690 = vadd.f32 %v592, %v689
  %v691 = vtanh.pop %v690
  %v692 = vsub.f32 1.0, %v688
  %v693 = vmul.f32 %v692, %v691
  %v694 = vmul.f32 %v688, %v335
  %v695 = vadd.f32 %v693, %v694
  %s696 = scalar_lea.vmem %s0, 96
  %v697 = vld [vmem:[%s696 + $0x18] sm:$0xff]
  %v698 = vld [vmem:[%s696 + $0x20] sm:$0xff]
  %v699 = vld [vmem:[%s696 + $0x28] sm:$0xff]
  %v700 = vpack.c.bf16 %v585, %v585
  %701 = vmatprep.subr.bf16.mxu0 %v437
  %702 = vmatpush1.bf16.msra.mxu0 %v436
  %703 = vmatprep.subr.bf16.mxu0 %v440
  %704 = vmatpush1.bf16.msra.mxu0 %v439
  %705 = vmatprep.subr.bf16.mxu0 %v443
  %706 = vmatpush1.bf16.msra.mxu0 %v442
  %707 = vmatprep.subr.bf16.mxu0 %v446
  %708 = vmatpush1.bf16.msra.mxu0 %v445
  %709 = vmatprep.subr.bf16.mxu0 %v449
  %710 = vmatpush1.bf16.msra.mxu0 %v448
  %711 = vmatprep.subr.bf16.mxu0 %v452
  %712 = vmatpush1.bf16.msra.mxu0 %v451
  %713 = vmatprep.subr.bf16.mxu0 %v455
  %714 = vmatpush1.bf16.msra.mxu0 %v454
  %715 = vmatprep.subr.bf16.mxu0 %v458
  %716 = vmatpush1.bf16.msra.mxu0 %v457
  %717 = vmatprep.subr.bf16.mxu0 0
  %718 = vmatpush1.bf16.msra.mxu0 0
  %719 = vmatprep.subr.bf16.mxu0 0
  %720 = vmatpush1.bf16.msra.mxu0 0
  %721 = vmatprep.subr.bf16.mxu0 0
  %722 = vmatpush1.bf16.msra.mxu0 0
  %723 = vmatprep.subr.bf16.mxu0 0
  %724 = vmatpush1.bf16.msra.mxu0 0
  %725 = vmatprep.subr.bf16.mxu0 0
  %726 = vmatpush1.bf16.msra.mxu0 0
  %727 = vmatprep.subr.bf16.mxu0 0
  %728 = vmatpush1.bf16.msra.mxu0 0
  %729 = vmatprep.subr.bf16.mxu0 0
  %730 = vmatpush1.bf16.msra.mxu0 0
  %731 = vmatprep.subr.bf16.mxu0 0
  %732 = vmatpush1.bf16.msra.mxu0 0
  %733 = vmatprep.mubr.bf16.mxu0 0
  %734 = vmatmul.mubr.bf16.gmra.mrb[0].mxu0 %v700
  %v735 = vpop.f32.mrb[0].mxu0
  %v736 = vadd.f32 %v344, %v735
  %v737 = vpop.f32.mrb[0].mxu0
  %v738 = vadd.f32 %v348, %v737
  %v739 = vpop.f32.mrb[0].mxu0
  %v740 = vpop.f32.mrb[0].mxu0
  %741 = vdwg.mxu0
  %742 = vmatprep.subr.bf16.mxu0 0
  %743 = vmatpush1.bf16.msra.mxu0 %v438
  %744 = vmatprep.subr.bf16.mxu0 0
  %745 = vmatpush1.bf16.msra.mxu0 %v441
  %746 = vmatprep.subr.bf16.mxu0 0
  %747 = vmatpush1.bf16.msra.mxu0 %v444
  %748 = vmatprep.subr.bf16.mxu0 0
  %749 = vmatpush1.bf16.msra.mxu0 %v447
  %750 = vmatprep.subr.bf16.mxu0 0
  %751 = vmatpush1.bf16.msra.mxu0 %v450
  %752 = vmatprep.subr.bf16.mxu0 0
  %753 = vmatpush1.bf16.msra.mxu0 %v453
  %754 = vmatprep.subr.bf16.mxu0 0
  %755 = vmatpush1.bf16.msra.mxu0 %v456
  %756 = vmatprep.subr.bf16.mxu0 0
  %757 = vmatpush1.bf16.msra.mxu0 %v459
  %758 = vmatprep.subr.bf16.mxu0 0
  %759 = vmatpush1.bf16.msra.mxu0 0
  %760 = vmatprep.subr.bf16.mxu0 0
  %761 = vmatpush1.bf16.msra.mxu0 0
  %762 = vmatprep.subr.bf16.mxu0 0
  %763 = vmatpush1.bf16.msra.mxu0 0
  %764 = vmatprep.subr.bf16.mxu0 0
  %765 = vmatpush1.bf16.msra.mxu0 0
  %766 = vmatprep.subr.bf16.mxu0 0
  %767 = vmatpush1.bf16.msra.mxu0 0
  %768 = vmatprep.subr.bf16.mxu0 0
  %769 = vmatpush1.bf16.msra.mxu0 0
  %770 = vmatprep.subr.bf16.mxu0 0
  %771 = vmatpush1.bf16.msra.mxu0 0
  %772 = vmatprep.subr.bf16.mxu0 0
  %773 = vmatpush1.bf16.msra.mxu0 0
  %774 = vmatprep.mubr.bf16.mxu0 0
  %775 = vmatmul.mubr.bf16.gmra.mrb[0].mxu0 %v700
  %v776 = vpop.f32.mrb[0].mxu0
  %v777 = vadd.f32 %v352, %v776
  %v778 = vpop.f32.mrb[0].mxu0
  %v779 = vpop.f32.mrb[0].mxu0
  %v780 = vpop.f32.mrb[0].mxu0
  %781 = vdwg.mxu0
  %v782 = vadd.f32 %v697, %v736
  %v783 = vxor.u32 %v782, 2147483648
  %v784 = vmul.f32 %v783, 1.442695
  %v785 = vpow.pop %v784
  %v786 = vadd.f32 %v785, 1.0
  %v787 = vrcp.pop %v786
  %v788 = vmul.f32 1.0, %v787
  %v789 = vadd.f32 %v698, %v738
  %v790 = vxor.u32 %v789, 2147483648
  %v791 = vmul.f32 %v790, 1.442695
  %v792 = vpow.pop %v791
  %v793 = vadd.f32 %v792, 1.0
  %v794 = vrcp.pop %v793
  %v795 = vmul.f32 1.0, %v794
  %v796 = vmul.f32 %v788, %v777
  %v797 = vadd.f32 %v699, %v796
  %v798 = vtanh.pop %v797
  %v799 = vsub.f32 1.0, %v795
  %v800 = vmul.f32 %v799, %v798
  %v801 = vmul.f32 %v795, %v585
  %v802 = vadd.f32 %v800, %v801
  %s803 = scalar_lea.vmem %s5, 16
  %804 = vst [vmem:[%s803] sm:$0xff] %v695
  %s805 = scalar_lea.vmem %s5, 32
  %806 = vst [vmem:[%s805 + $0x8] sm:$0xff] %v802
  %v807 = vld [vmem:[%s696] sm:$0xff]
  %v808 = vld [vmem:[%s696 + $0x8] sm:$0xff]
  %v809 = vld [vmem:[%s696 + $0x10] sm:$0xff]
  %v810 = vpack.c.bf16 %v695, %v695
  %811 = vmatprep.subr.bf16.mxu0 %v187
  %812 = vmatpush1.bf16.msra.mxu0 %v186
  %813 = vmatprep.subr.bf16.mxu0 %v190
  %814 = vmatpush1.bf16.msra.mxu0 %v189
  %815 = vmatprep.subr.bf16.mxu0 %v193
  %816 = vmatpush1.bf16.msra.mxu0 %v192
  %817 = vmatprep.subr.bf16.mxu0 %v196
  %818 = vmatpush1.bf16.msra.mxu0 %v195
  %819 = vmatprep.subr.bf16.mxu0 %v199
  %820 = vmatpush1.bf16.msra.mxu0 %v198
  %821 = vmatprep.subr.bf16.mxu0 %v202
  %822 = vmatpush1.bf16.msra.mxu0 %v201
  %823 = vmatprep.subr.bf16.mxu0 %v205
  %824 = vmatpush1.bf16.msra.mxu0 %v204
  %825 = vmatprep.subr.bf16.mxu0 %v208
  %826 = vmatpush1.bf16.msra.mxu0 %v207
  %827 = vmatprep.subr.bf16.mxu0 0
  %828 = vmatpush1.bf16.msra.mxu0 0
  %829 = vmatprep.subr.bf16.mxu0 0
  %830 = vmatpush1.bf16.msra.mxu0 0
  %831 = vmatprep.subr.bf16.mxu0 0
  %832 = vmatpush1.bf16.msra.mxu0 0
  %833 = vmatprep.subr.bf16.mxu0 0
  %834 = vmatpush1.bf16.msra.mxu0 0
  %835 = vmatprep.subr.bf16.mxu0 0
  %836 = vmatpush1.bf16.msra.mxu0 0
  %837 = vmatprep.subr.bf16.mxu0 0
  %838 = vmatpush1.bf16.msra.mxu0 0
  %839 = vmatprep.subr.bf16.mxu0 0
  %840 = vmatpush1.bf16.msra.mxu0 0
  %841 = vmatprep.subr.bf16.mxu0 0
  %842 = vmatpush1.bf16.msra.mxu0 0
  %843 = vmatprep.mubr.bf16.mxu0 0
  %844 = vmatmul.mubr.bf16.gmra.mrb[0].mxu0 %v810
  %v845 = vpop.f32.mrb[0].mxu0
  %v846 = vadd.f32 %v94, %v845
  %v847 = vpop.f32.mrb[0].mxu0
  %v848 = vadd.f32 %v98, %v847
  %v849 = vpop.f32.mrb[0].mxu0
  %v850 = vpop.f32.mrb[0].mxu0
  %851 = vdwg.mxu0
  %852 = vmatprep.subr.bf16.mxu0 0
  %853 = vmatpush1.bf16.msra.mxu0 %v188
  %854 = vmatprep.subr.bf16.mxu0 0
  %855 = vmatpush1.bf16.msra.mxu0 %v191
  %856 = vmatprep.subr.bf16.mxu0 0
  %857 = vmatpush1.bf16.msra.mxu0 %v194
  %858 = vmatprep.subr.bf16.mxu0 0
  %859 = vmatpush1.bf16.msra.mxu0 %v197
  %860 = vmatprep.subr.bf16.mxu0 0
  %861 = vmatpush1.bf16.msra.mxu0 %v200
  %862 = vmatprep.subr.bf16.mxu0 0
  %863 = vmatpush1.bf16.msra.mxu0 %v203
  %864 = vmatprep.subr.bf16.mxu0 0
  %865 = vmatpush1.bf16.msra.mxu0 %v206
  %866 = vmatprep.subr.bf16.mxu0 0
  %867 = vmatpush1.bf16.msra.mxu0 %v209
  %868 = vmatprep.subr.bf16.mxu0 0
  %869 = vmatpush1.bf16.msra.mxu0 0
  %870 = vmatprep.subr.bf16.mxu0 0
  %871 = vmatpush1.bf16.msra.mxu0 0
  %872 = vmatprep.subr.bf16.mxu0 0
  %873 = vmatpush1.bf16.msra.mxu0 0
  %874 = vmatprep.subr.bf16.mxu0 0
  %875 = vmatpush1.bf16.msra.mxu0 0
  %876 = vmatprep.subr.bf16.mxu0 0
  %877 = vmatpush1.bf16.msra.mxu0 0
  %878 = vmatprep.subr.bf16.mxu0 0
  %879 = vmatpush1.bf16.msra.mxu0 0
  %880 = vmatprep.subr.bf16.mxu0 0
  %881 = vmatpush1.bf16.msra.mxu0 0
  %882 = vmatprep.subr.bf16.mxu0 0
  %883 = vmatpush1.bf16.msra.mxu0 0
  %884 = vmatprep.mubr.bf16.mxu0 0
  %885 = vmatmul.mubr.bf16.gmra.mrb[0].mxu0 %v810
  %v886 = vpop.f32.mrb[0].mxu0
  %v887 = vadd.f32 %v102, %v886
  %v888 = vpop.f32.mrb[0].mxu0
  %v889 = vpop.f32.mrb[0].mxu0
  %v890 = vpop.f32.mrb[0].mxu0
  %891 = vdwg.mxu0
  %v892 = vadd.f32 %v807, %v846
  %v893 = vxor.u32 %v892, 2147483648
  %v894 = vmul.f32 %v893, 1.442695
  %v895 = vpow.pop %v894
  %v896 = vadd.f32 %v895, 1.0
  %v897 = vrcp.pop %v896
  %v898 = vmul.f32 1.0, %v897
  %v899 = vadd.f32 %v808, %v848
  %v900 = vxor.u32 %v899, 2147483648
  %v901 = vmul.f32 %v900, 1.442695
  %v902 = vpow.pop %v901
  %v903 = vadd.f32 %v902, 1.0
  %v904 = vrcp.pop %v903
  %v905 = vmul.f32 1.0, %v904
  %v906 = vmul.f32 %v898, %v887
  %v907 = vadd.f32 %v809, %v906
  %v908 = vtanh.pop %v907
  %v909 = vsub.f32 1.0, %v905
  %v910 = vmul.f32 %v909, %v908
  %v911 = vmul.f32 %v905, %v695
  %v912 = vadd.f32 %v910, %v911
  %v913 = vld [vmem:[%s589 + $0x18] sm:$0xff]
  %v914 = vld [vmem:[%s589 + $0x20] sm:$0xff]
  %v915 = vld [vmem:[%s589 + $0x28] sm:$0xff]
  %v916 = vpack.c.bf16 %v802, %v802
  %917 = vmatprep.subr.bf16.mxu0 %v437
  %918 = vmatpush1.bf16.msra.mxu0 %v436
  %919 = vmatprep.subr.bf16.mxu0 %v440
  %920 = vmatpush1.bf16.msra.mxu0 %v439
  %921 = vmatprep.subr.bf16.mxu0 %v443
  %922 = vmatpush1.bf16.msra.mxu0 %v442
  %923 = vmatprep.subr.bf16.mxu0 %v446
  %924 = vmatpush1.bf16.msra.mxu0 %v445
  %925 = vmatprep.subr.bf16.mxu0 %v449
  %926 = vmatpush1.bf16.msra.mxu0 %v448
  %927 = vmatprep.subr.bf16.mxu0 %v452
  %928 = vmatpush1.bf16.msra.mxu0 %v451
  %929 = vmatprep.subr.bf16.mxu0 %v455
  %930 = vmatpush1.bf16.msra.mxu0 %v454
  %931 = vmatprep.subr.bf16.mxu0 %v458
  %932 = vmatpush1.bf16.msra.mxu0 %v457
  %933 = vmatprep.subr.bf16.mxu0 0
  %934 = vmatpush1.bf16.msra.mxu0 0
  %935 = vmatprep.subr.bf16.mxu0 0
  %936 = vmatpush1.bf16.msra.mxu0 0
  %937 = vmatprep.subr.bf16.mxu0 0
  %938 = vmatpush1.bf16.msra.mxu0 0
  %939 = vmatprep.subr.bf16.mxu0 0
  %940 = vmatpush1.bf16.msra.mxu0 0
  %941 = vmatprep.subr.bf16.mxu0 0
  %942 = vmatpush1.bf16.msra.mxu0 0
  %943 = vmatprep.subr.bf16.mxu0 0
  %944 = vmatpush1.bf16.msra.mxu0 0
  %945 = vmatprep.subr.bf16.mxu0 0
  %946 = vmatpush1.bf16.msra.mxu0 0
  %947 = vmatprep.subr.bf16.mxu0 0
  %948 = vmatpush1.bf16.msra.mxu0 0
  %949 = vmatprep.mubr.bf16.mxu0 0
  %950 = vmatmul.mubr.bf16.gmra.mrb[0].mxu0 %v916
  %v951 = vpop.f32.mrb[0].mxu0
  %v952 = vadd.f32 %v344, %v951
  %v953 = vpop.f32.mrb[0].mxu0
  %v954 = vadd.f32 %v348, %v953
  %v955 = vpop.f32.mrb[0].mxu0
  %v956 = vpop.f32.mrb[0].mxu0
  %957 = vdwg.mxu0
  %958 = vmatprep.subr.bf16.mxu0 0
  %959 = vmatpush1.bf16.msra.mxu0 %v438
  %960 = vmatprep.subr.bf16.mxu0 0
  %961 = vmatpush1.bf16.msra.mxu0 %v441
  %962 = vmatprep.subr.bf16.mxu0 0
  %963 = vmatpush1.bf16.msra.mxu0 %v444
  %964 = vmatprep.subr.bf16.mxu0 0
  %965 = vmatpush1.bf16.msra.mxu0 %v447
  %966 = vmatprep.subr.bf16.mxu0 0
  %967 = vmatpush1.bf16.msra.mxu0 %v450
  %968 = vmatprep.subr.bf16.mxu0 0
  %969 = vmatpush1.bf16.msra.mxu0 %v453
  %970 = vmatprep.subr.bf16.mxu0 0
  %971 = vmatpush1.bf16.msra.mxu0 %v456
  %972 = vmatprep.subr.bf16.mxu0 0
  %973 = vmatpush1.bf16.msra.mxu0 %v459
  %974 = vmatprep.subr.bf16.mxu0 0
  %975 = vmatpush1.bf16.msra.mxu0 0
  %976 = vmatprep.subr.bf16.mxu0 0
  %977 = vmatpush1.bf16.msra.mxu0 0
  %978 = vmatprep.subr.bf16.mxu0 0
  %979 = vmatpush1.bf16.msra.mxu0 0
  %980 = vmatprep.subr.bf16.mxu0 0
  %981 = vmatpush1.bf16.msra.mxu0 0
  %982 = vmatprep.subr.bf16.mxu0 0
  %983 = vmatpush1.bf16.msra.mxu0 0
  %984 = vmatprep.subr.bf16.mxu0 0
  %985 = vmatpush1.bf16.msra.mxu0 0
  %986 = vmatprep.subr.bf16.mxu0 0
  %987 = vmatpush1.bf16.msra.mxu0 0
  %988 = vmatprep.subr.bf16.mxu0 0
  %989 = vmatpush1.bf16.msra.mxu0 0
  %990 = vmatprep.mubr.bf16.mxu0 0
  %991 = vmatmul.mubr.bf16.gmra.mrb[0].mxu0 %v916
  %v992 = vpop.f32.mrb[0].mxu0
  %v993 = vadd.f32 %v352, %v992
  %v994 = vpop.f32.mrb[0].mxu0
  %v995 = vpop.f32.mrb[0].mxu0
  %v996 = vpop.f32.mrb[0].mxu0
  %997 = vdwg.mxu0
  %v998 = vadd.f32 %v913, %v952
  %v999 = vxor.u32 %v998, 2147483648
  %v1000 = vmul.f32 %v999, 1.442695
  %v1001 = vpow.pop %v1000
  %v1002 = vadd.f32 %v1001, 1.0
  %v1003 = vrcp.pop %v1002
  %v1004 = vmul.f32 1.0, %v1003
  %v1005 = vadd.f32 %v914, %v954
  %v1006 = vxor.u32 %v1005, 2147483648
  %v1007 = vmul.f32 %v1006, 1.442695
  %v1008 = vpow.pop %v1007
  %v1009 = vadd.f32 %v1008, 1.0
  %v1010 = vrcp.pop %v1009
  %v1011 = vmul.f32 1.0, %v1010
  %v1012 = vmul.f32 %v1004, %v993
  %v1013 = vadd.f32 %v915, %v1012
  %v1014 = vtanh.pop %v1013
  %v1015 = vsub.f32 1.0, %v1011
  %v1016 = vmul.f32 %v1015, %v1014
  %v1017 = vmul.f32 %v1011, %v802
  %v1018 = vadd.f32 %v1016, %v1017
  %1019 = vst [vmem:[%s805] sm:$0xff] %v912
  %1020 = vst [vmem:[%s803 + $0x8] sm:$0xff] %v1018
  %v1021 = vld [vmem:[%s336] sm:$0xff]
  %v1022 = vld [vmem:[%s336 + $0x8] sm:$0xff]
  %v1023 = vld [vmem:[%s336 + $0x10] sm:$0xff]
  %v1024 = vpack.c.bf16 %v912, %v912
  %1025 = vmatprep.subr.bf16.mxu0 %v187
  %1026 = vmatpush1.bf16.msra.mxu0 %v186
  %1027 = vmatprep.subr.bf16.mxu0 %v190
  %1028 = vmatpush1.bf16.msra.mxu0 %v189
  %1029 = vmatprep.subr.bf16.mxu0 %v193
  %1030 = vmatpush1.bf16.msra.mxu0 %v192
  %1031 = vmatprep.subr.bf16.mxu0 %v196
  %1032 = vmatpush1.bf16.msra.mxu0 %v195
  %1033 = vmatprep.subr.bf16.mxu0 %v199
  %1034 = vmatpush1.bf16.msra.mxu0 %v198
  %1035 = vmatprep.subr.bf16.mxu0 %v202
  %1036 = vmatpush1.bf16.msra.mxu0 %v201
  %1037 = vmatprep.subr.bf16.mxu0 %v205
  %1038 = vmatpush1.bf16.msra.mxu0 %v204
  %1039 = vmatprep.subr.bf16.mxu0 %v208
  %1040 = vmatpush1.bf16.msra.mxu0 %v207
  %1041 = vmatprep.subr.bf16.mxu0 0
  %1042 = vmatpush1.bf16.msra.mxu0 0
  %1043 = vmatprep.subr.bf16.mxu0 0
  %1044 = vmatpush1.bf16.msra.mxu0 0
  %1045 = vmatprep.subr.bf16.mxu0 0
  %1046 = vmatpush1.bf16.msra.mxu0 0
  %1047 = vmatprep.subr.bf16.mxu0 0
  %1048 = vmatpush1.bf16.msra.mxu0 0
  %1049 = vmatprep.subr.bf16.mxu0 0
  %1050 = vmatpush1.bf16.msra.mxu0 0
  %1051 = vmatprep.subr.bf16.mxu0 0
  %1052 = vmatpush1.bf16.msra.mxu0 0
  %1053 = vmatprep.subr.bf16.mxu0 0
  %1054 = vmatpush1.bf16.msra.mxu0 0
  %1055 = vmatprep.subr.bf16.mxu0 0
  %1056 = vmatpush1.bf16.msra.mxu0 0
  %1057 = vmatprep.mubr.bf16.mxu0 0
  %1058 = vmatmul.mubr.bf16.gmra.mrb[0].mxu0 %v1024
  %v1059 = vpop.f32.mrb[0].mxu0
  %v1060 = vadd.f32 %v94, %v1059
  %v1061 = vpop.f32.mrb[0].mxu0
  %v1062 = vadd.f32 %v98, %v1061
  %v1063 = vpop.f32.mrb[0].mxu0
  %v1064 = vpop.f32.mrb[0].mxu0
  %1065 = vdwg.mxu0
  %1066 = vmatprep.subr.bf16.mxu0 0
  %1067 = vmatpush1.bf16.msra.mxu0 %v188
  %1068 = vmatprep.subr.bf16.mxu0 0
  %1069 = vmatpush1.bf16.msra.mxu0 %v191
  %1070 = vmatprep.subr.bf16.mxu0 0
  %1071 = vmatpush1.bf16.msra.mxu0 %v194
  %1072 = vmatprep.subr.bf16.mxu0 0
  %1073 = vmatpush1.bf16.msra.mxu0 %v197
  %1074 = vmatprep.subr.bf16.mxu0 0
  %1075 = vmatpush1.bf16.msra.mxu0 %v200
  %1076 = vmatprep.subr.bf16.mxu0 0
  %1077 = vmatpush1.bf16.msra.mxu0 %v203
  %1078 = vmatprep.subr.bf16.mxu0 0
  %1079 = vmatpush1.bf16.msra.mxu0 %v206
  %1080 = vmatprep.subr.bf16.mxu0 0
  %1081 = vmatpush1.bf16.msra.mxu0 %v209
  %1082 = vmatprep.subr.bf16.mxu0 0
  %1083 = vmatpush1.bf16.msra.mxu0 0
  %1084 = vmatprep.subr.bf16.mxu0 0
  %1085 = vmatpush1.bf16.msra.mxu0 0
  %1086 = vmatprep.subr.bf16.mxu0 0
  %1087 = vmatpush1.bf16.msra.mxu0 0
  %1088 = vmatprep.subr.bf16.mxu0 0
  %1089 = vmatpush1.bf16.msra.mxu0 0
  %1090 = vmatprep.subr.bf16.mxu0 0
  %1091 = vmatpush1.bf16.msra.mxu0 0
  %1092 = vmatprep.subr.bf16.mxu0 0
  %1093 = vmatpush1.bf16.msra.mxu0 0
  %1094 = vmatprep.subr.bf16.mxu0 0
  %1095 = vmatpush1.bf16.msra.mxu0 0
  %1096 = vmatprep.subr.bf16.mxu0 0
  %1097 = vmatpush1.bf16.msra.mxu0 0
  %1098 = vmatprep.mubr.bf16.mxu0 0
  %1099 = vmatmul.mubr.bf16.gmra.mrb[0].mxu0 %v1024
  %v1100 = vpop.f32.mrb[0].mxu0
  %v1101 = vadd.f32 %v102, %v1100
  %v1102 = vpop.f32.mrb[0].mxu0
  %v1103 = vpop.f32.mrb[0].mxu0
  %v1104 = vpop.f32.mrb[0].mxu0
  %1105 = vdwg.mxu0
  %v1106 = vadd.f32 %v1021, %v1060
  %v1107 = vxor.u32 %v1106, 2147483648
  %v1108 = vmul.f32 %v1107, 1.442695
  %v1109 = vpow.pop %v1108
  %v1110 = vadd.f32 %v1109, 1.0
  %v1111 = vrcp.pop %v1110
  %v1112 = vmul.f32 1.0, %v1111
  %v1113 = vadd.f32 %v1022, %v1062
  %v1114 = vxor.u32 %v1113, 2147483648
  %v1115 = vmul.f32 %v1114, 1.442695
  %v1116 = vpow.pop %v1115
  %v1117 = vadd.f32 %v1116, 1.0
  %v1118 = vrcp.pop %v1117
  %v1119 = vmul.f32 1.0, %v1118
  %v1120 = vmul.f32 %v1112, %v1101
  %v1121 = vadd.f32 %v1023, %v1120
  %v1122 = vtanh.pop %v1121
  %v1123 = vsub.f32 1.0, %v1119
  %v1124 = vmul.f32 %v1123, %v1122
  %v1125 = vmul.f32 %v1119, %v912
  %v1126 = vadd.f32 %v1124, %v1125
  %v1127 = vld [vmem:[%s0 + $0x18] sm:$0xff]
  %v1128 = vld [vmem:[%s0 + $0x20] sm:$0xff]
  %v1129 = vld [vmem:[%s0 + $0x28] sm:$0xff]
  %v1130 = vpack.c.bf16 %v1018, %v1018
  %1131 = vmatprep.subr.bf16.mxu0 %v437
  %1132 = vmatpush1.bf16.msra.mxu0 %v436
  %1133 = vmatprep.subr.bf16.mxu0 %v440
  %1134 = vmatpush1.bf16.msra.mxu0 %v439
  %1135 = vmatprep.subr.bf16.mxu0 %v443
  %1136 = vmatpush1.bf16.msra.mxu0 %v442
  %1137 = vmatprep.subr.bf16.mxu0 %v446
  %1138 = vmatpush1.bf16.msra.mxu0 %v445
  %1139 = vmatprep.subr.bf16.mxu0 %v449
  %1140 = vmatpush1.bf16.msra.mxu0 %v448
  %1141 = vmatprep.subr.bf16.mxu0 %v452
  %1142 = vmatpush1.bf16.msra.mxu0 %v451
  %1143 = vmatprep.subr.bf16.mxu0 %v455
  %1144 = vmatpush1.bf16.msra.mxu0 %v454
  %1145 = vmatprep.subr.bf16.mxu0 %v458
  %1146 = vmatpush1.bf16.msra.mxu0 %v457
  %1147 = vmatprep.subr.bf16.mxu0 0
  %1148 = vmatpush1.bf16.msra.mxu0 0
  %1149 = vmatprep.subr.bf16.mxu0 0
  %1150 = vmatpush1.bf16.msra.mxu0 0
  %1151 = vmatprep.subr.bf16.mxu0 0
  %1152 = vmatpush1.bf16.msra.mxu0 0
  %1153 = vmatprep.subr.bf16.mxu0 0
  %1154 = vmatpush1.bf16.msra.mxu0 0
  %1155 = vmatprep.subr.bf16.mxu0 0
  %1156 = vmatpush1.bf16.msra.mxu0 0
  %1157 = vmatprep.subr.bf16.mxu0 0
  %1158 = vmatpush1.bf16.msra.mxu0 0
  %1159 = vmatprep.subr.bf16.mxu0 0
  %1160 = vmatpush1.bf16.msra.mxu0 0
  %1161 = vmatprep.subr.bf16.mxu0 0
  %1162 = vmatpush1.bf16.msra.mxu0 0
  %1163 = vmatprep.mubr.bf16.mxu0 0
  %1164 = vmatmul.mubr.bf16.gmra.mrb[0].mxu0 %v1130
  %v1165 = vpop.f32.mrb[0].mxu0
  %v1166 = vadd.f32 %v344, %v1165
  %v1167 = vpop.f32.mrb[0].mxu0
  %v1168 = vadd.f32 %v348, %v1167
  %v1169 = vpop.f32.mrb[0].mxu0
  %v1170 = vpop.f32.mrb[0].mxu0
  %1171 = vdwg.mxu0
  %1172 = vmatprep.subr.bf16.mxu0 0
  %1173 = vmatpush1.bf16.msra.mxu0 %v438
  %1174 = vmatprep.subr.bf16.mxu0 0
  %1175 = vmatpush1.bf16.msra.mxu0 %v441
  %1176 = vmatprep.subr.bf16.mxu0 0
  %1177 = vmatpush1.bf16.msra.mxu0 %v444
  %1178 = vmatprep.subr.bf16.mxu0 0
  %1179 = vmatpush1.bf16.msra.mxu0 %v447
  %1180 = vmatprep.subr.bf16.mxu0 0
  %1181 = vmatpush1.bf16.msra.mxu0 %v450
  %1182 = vmatprep.subr.bf16.mxu0 0
  %1183 = vmatpush1.bf16.msra.mxu0 %v453
  %1184 = vmatprep.subr.bf16.mxu0 0
  %1185 = vmatpush1.bf16.msra.mxu0 %v456
  %1186 = vmatprep.subr.bf16.mxu0 0
  %1187 = vmatpush1.bf16.msra.mxu0 %v459
  %1188 = vmatprep.subr.bf16.mxu0 0
  %1189 = vmatpush1.bf16.msra.mxu0 0
  %1190 = vmatprep.subr.bf16.mxu0 0
  %1191 = vmatpush1.bf16.msra.mxu0 0
  %1192 = vmatprep.subr.bf16.mxu0 0
  %1193 = vmatpush1.bf16.msra.mxu0 0
  %1194 = vmatprep.subr.bf16.mxu0 0
  %1195 = vmatpush1.bf16.msra.mxu0 0
  %1196 = vmatprep.subr.bf16.mxu0 0
  %1197 = vmatpush1.bf16.msra.mxu0 0
  %1198 = vmatprep.subr.bf16.mxu0 0
  %1199 = vmatpush1.bf16.msra.mxu0 0
  %1200 = vmatprep.subr.bf16.mxu0 0
  %1201 = vmatpush1.bf16.msra.mxu0 0
  %1202 = vmatprep.subr.bf16.mxu0 0
  %1203 = vmatpush1.bf16.msra.mxu0 0
  %1204 = vmatprep.mubr.bf16.mxu0 0
  %1205 = vmatmul.mubr.bf16.gmra.mrb[0].mxu0 %v1130
  %v1206 = vpop.f32.mrb[0].mxu0
  %v1207 = vadd.f32 %v352, %v1206
  %v1208 = vpop.f32.mrb[0].mxu0
  %v1209 = vpop.f32.mrb[0].mxu0
  %v1210 = vpop.f32.mrb[0].mxu0
  %1211 = vdwg.mxu0
  %v1212 = vadd.f32 %v1127, %v1166
  %v1213 = vxor.u32 %v1212, 2147483648
  %v1214 = vmul.f32 %v1213, 1.442695
  %v1215 = vpow.pop %v1214
  %v1216 = vadd.f32 %v1215, 1.0
  %v1217 = vrcp.pop %v1216
  %v1218 = vmul.f32 1.0, %v1217
  %v1219 = vadd.f32 %v1128, %v1168
  %v1220 = vxor.u32 %v1219, 2147483648
  %v1221 = vmul.f32 %v1220, 1.442695
  %v1222 = vpow.pop %v1221
  %v1223 = vadd.f32 %v1222, 1.0
  %v1224 = vrcp.pop %v1223
  %v1225 = vmul.f32 1.0, %v1224
  %v1226 = vmul.f32 %v1218, %v1207
  %v1227 = vadd.f32 %v1129, %v1226
  %v1228 = vtanh.pop %v1227
  %v1229 = vsub.f32 1.0, %v1225
  %v1230 = vmul.f32 %v1229, %v1228
  %v1231 = vmul.f32 %v1225, %v1018
  %v1232 = vadd.f32 %v1230, %v1231
  %1233 = vst [vmem:[%s587] sm:$0xff] %v1126
  %1234 = vst [vmem:[%s5 + $0x8] sm:$0xff] %v1232
  // Predicated region
  $region22: #{_lambda_.4} parent=0 // pred_check
    _
  $region23: #{_lambda_.4} parent=0 // pred_check_branch
    %1236 = sbr.rel (0) target = $region25
  $region24: #{_lambda_.4} parent=0 // pred_region
    _
  $region25: #{_lambda_.4} parent=0 // pred_fallthru
    _
  // Predicated region
  $region26: #{_lambda_.4} parent=0 // pred_check
    _
  $region27: #{_lambda_.4} parent=0 // pred_check_branch
    %1238 = sbr.rel (0) target = $region29
  $region28: #{_lambda_.4} parent=0 // pred_region
    _
  $region29: #{_lambda_.4} parent=0 // pred_fallthru
    _

// kernel: _lambda_.5
$region0: #{_lambda_.5}
  #allocation0 [shape = 'u32[]', space=smem, size = 0x4, offset = 0x4, fixed_abs, tag = 'smem constant byte address 0x4 - core index']
  #allocation1 [shape = 'u32[144,128]{1,0:T(1,128)}', space=vmem, size = 0x12000, scoped, tag = 'internal scratch']
  #allocation2 [shape = 'f32[4,8,256]{2,1,0:T(8,128)}', space=vmem, size = 0x8000, scoped, tag = 'scratch operand']
  #allocation3 [shape = 'f32[4,8,256]{2,1,0:T(8,128)}', space=vmem, size = 0x8000, scoped, tag = 'scratch operand']
  %s0 = inlined_call_operand.vmem [shape: f32[4,8,256], index: 0, kind: input, shape index: {}]
  %s1 = inlined_call_operand.vmem [shape: bf16[256,256], index: 1, kind: input, shape index: {}]
  %s2 = inlined_call_operand.vmem [shape: bf16[256,256], index: 2, kind: input, shape index: {}]
  %s3 = inlined_call_operand.vmem [shape: bf16[256,256], index: 3, kind: input, shape index: {}]
  %s4 = inlined_call_operand.vmem [shape: f32[1,256], index: 4, kind: input, shape index: {}]
  %s5 = inlined_call_operand.vmem [shape: f32[1,256], index: 5, kind: input, shape index: {}]
  %s6 = inlined_call_operand.vmem [shape: bf16[256,128], index: 6, kind: input, shape index: {}]
  %s7 = inlined_call_operand.vmem [shape: f32[1,128], index: 7, kind: input, shape index: {}]
  %s8 = inlined_call_operand.vmem [shape: f32[4,8,128], index: 8, kind: output, shape index: {}]
  %s9 = sld [smem:[#allocation0]]
  $region42: #{_lambda_.5} parent=0
    _
  %s11 = ssub.s32 1, %s9
  %s12 = scalar_select 0, %s11, %s9
  // Predicated region
  $region2: #{_lambda_.5} parent=0 // pred_check
    _
  $region3: #{_lambda_.5} parent=0 // pred_check_branch
    %14 = sbr.rel (0) target = $region5
  $region4: #{_lambda_.5} parent=0 // pred_region
    _
  $region5: #{_lambda_.5} parent=0 // pred_fallthru
    _
  // Predicated region
  $region6: #{_lambda_.5} parent=0 // pred_check
    _
  $region7: #{_lambda_.5} parent=0 // pred_check_branch
    %16 = sbr.rel (0) target = $region9
  $region8: #{_lambda_.5} parent=0 // pred_region
    _
  $region9: #{_lambda_.5} parent=0 // pred_fallthru
    _
  // Predicated region
  $region10: #{_lambda_.5} parent=0 // pred_check
    _
  $region11: #{_lambda_.5} parent=0 // pred_check_branch
    %18 = sbr.rel (0) target = $region13
  $region12: #{_lambda_.5} parent=0 // pred_region
    _
  $region13: #{_lambda_.5} parent=0 // pred_fallthru
    _
  // Predicated region
  $region14: #{_lambda_.5} parent=0 // pred_check
    _
  $region15: #{_lambda_.5} parent=0 // pred_check_branch
    %20 = sbr.rel (0) target = $region17
  $region16: #{_lambda_.5} parent=0 // pred_region
    _
  $region17: #{_lambda_.5} parent=0 // pred_fallthru
    _
  // Predicated region
  $region18: #{_lambda_.5} parent=0 // pred_check
    _
  $region19: #{_lambda_.5} parent=0 // pred_check_branch
    %22 = sbr.rel (0) target = $region21
  $region20: #{_lambda_.5} parent=0 // pred_region
    _
  $region21: #{_lambda_.5} parent=0 // pred_fallthru
    _
  // Predicated region
  $region22: #{_lambda_.5} parent=0 // pred_check
    _
  $region23: #{_lambda_.5} parent=0 // pred_check_branch
    %24 = sbr.rel (0) target = $region25
  $region24: #{_lambda_.5} parent=0 // pred_region
    _
  $region25: #{_lambda_.5} parent=0 // pred_fallthru
    _
  // Predicated region
  $region26: #{_lambda_.5} parent=0 // pred_check
    _
  $region27: #{_lambda_.5} parent=0 // pred_check_branch
    %26 = sbr.rel (0) target = $region29
  $region28: #{_lambda_.5} parent=0 // pred_region
    _
  $region29: #{_lambda_.5} parent=0 // pred_fallthru
    _
  // Predicated region
  $region30: #{_lambda_.5} parent=0 // pred_check
    _
  $region31: #{_lambda_.5} parent=0 // pred_check_branch
    %28 = sbr.rel (0) target = $region33
  $region32: #{_lambda_.5} parent=0 // pred_region
    _
  $region33: #{_lambda_.5} parent=0 // pred_fallthru
    _
  %v30 = vld [vmem:[%s0] sm:$0xff]
  %v31 = vld [vmem:[%s0 + $0x8] sm:$0xff]
  %v32 = vld [vmem:[%s0 + $0x10] sm:$0xff]
  %v33 = vld [vmem:[%s0 + $0x18] sm:$0xff]
  %v34 = vld [vmem:[%s0 + $0x20] sm:$0xff]
  %v35 = vld [vmem:[%s0 + $0x28] sm:$0xff]
  %v36 = vld [vmem:[%s0 + $0x30] sm:$0xff]
  %v37 = vld [vmem:[%s0 + $0x38] sm:$0xff]
  %v38 = vpack.c.bf16 %v32, %v30
  %v39 = vpack.c.bf16 %v33, %v31
  %v40 = vpack.c.bf16 %v36, %v34
  %v41 = vpack.c.bf16 %v37, %v35
  %v42 = vld [vmem:[%s1] sm:$0xff]
  %v43 = vld [vmem:[%s1 + $0x8] sm:$0xff]
  %v44 = vld [vmem:[%s1 + $0x10] sm:$0xff]
  %v45 = vld [vmem:[%s1 + $0x18] sm:$0xff]
  %v46 = vld [vmem:[%s1 + $0x20] sm:$0xff]
  %v47 = vld [vmem:[%s1 + $0x28] sm:$0xff]
  %v48 = vld [vmem:[%s1 + $0x30] sm:$0xff]
  %v49 = vld [vmem:[%s1 + $0x38] sm:$0xff]
  %v50 = vld [vmem:[%s1 + $0x40] sm:$0xff]
  %v51 = vld [vmem:[%s1 + $0x48] sm:$0xff]
  %v52 = vld [vmem:[%s1 + $0x50] sm:$0xff]
  %v53 = vld [vmem:[%s1 + $0x58] sm:$0xff]
  %v54 = vld [vmem:[%s1 + $0x60] sm:$0xff]
  %v55 = vld [vmem:[%s1 + $0x68] sm:$0xff]
  %v56 = vld [vmem:[%s1 + $0x70] sm:$0xff]
  %v57 = vld [vmem:[%s1 + $0x78] sm:$0xff]
  %v58 = vld [vmem:[%s1 + $0x80] sm:$0xff]
  %v59 = vld [vmem:[%s1 + $0x88] sm:$0xff]
  %v60 = vld [vmem:[%s1 + $0x90] sm:$0xff]
  %v61 = vld [vmem:[%s1 + $0x98] sm:$0xff]
  %v62 = vld [vmem:[%s1 + $0xa0] sm:$0xff]
  %v63 = vld [vmem:[%s1 + $0xa8] sm:$0xff]
  %v64 = vld [vmem:[%s1 + $0xb0] sm:$0xff]
  %v65 = vld [vmem:[%s1 + $0xb8] sm:$0xff]
  %v66 = vld [vmem:[%s1 + $0xc0] sm:$0xff]
  %v67 = vld [vmem:[%s1 + $0xc8] sm:$0xff]
  %v68 = vld [vmem:[%s1 + $0xd0] sm:$0xff]
  %v69 = vld [vmem:[%s1 + $0xd8] sm:$0xff]
  %v70 = vld [vmem:[%s1 + $0xe0] sm:$0xff]
  %v71 = vld [vmem:[%s1 + $0xe8] sm:$0xff]
  %v72 = vld [vmem:[%s1 + $0xf0] sm:$0xff]
  %v73 = vld [vmem:[%s1 + $0xf8] sm:$0xff]
  %v106 = vunpack.c.l.b16 %v42
  %v107 = vunpack.c.h.b16 %v42
  %v108 = vunpack.c.l.b16 %v43
  %v109 = vunpack.c.h.b16 %v43
  %v110 = vunpack.c.l.b16 %v44
  %v111 = vunpack.c.h.b16 %v44
  %v112 = vunpack.c.l.b16 %v45
  %v113 = vunpack.c.h.b16 %v45
  %v114 = vunpack.c.l.b16 %v46
  %v115 = vunpack.c.h.b16 %v46
  %v116 = vunpack.c.l.b16 %v47
  %v117 = vunpack.c.h.b16 %v47
  %v118 = vunpack.c.l.b16 %v48
  %v119 = vunpack.c.h.b16 %v48
  %v120 = vunpack.c.l.b16 %v49
  %v121 = vunpack.c.h.b16 %v49
  %v122 = vunpack.c.l.b16 %v50
  %v123 = vunpack.c.h.b16 %v50
  %v124 = vunpack.c.l.b16 %v51
  %v125 = vunpack.c.h.b16 %v51
  %v126 = vunpack.c.l.b16 %v52
  %v127 = vunpack.c.h.b16 %v52
  %v128 = vunpack.c.l.b16 %v53
  %v129 = vunpack.c.h.b16 %v53
  %v130 = vunpack.c.l.b16 %v54
  %v131 = vunpack.c.h.b16 %v54
  %v132 = vunpack.c.l.b16 %v55
  %v133 = vunpack.c.h.b16 %v55
  %v134 = vunpack.c.l.b16 %v56
  %v135 = vunpack.c.h.b16 %v56
  %v136 = vunpack.c.l.b16 %v57
  %v137 = vunpack.c.h.b16 %v57
  %v138 = vunpack.c.l.b16 %v58
  %v139 = vunpack.c.h.b16 %v58
  %v140 = vunpack.c.l.b16 %v59
  %v141 = vunpack.c.h.b16 %v59
  %v142 = vunpack.c.l.b16 %v60
  %v143 = vunpack.c.h.b16 %v60
  %v144 = vunpack.c.l.b16 %v61
  %v145 = vunpack.c.h.b16 %v61
  %v146 = vunpack.c.l.b16 %v62
  %v147 = vunpack.c.h.b16 %v62
  %v148 = vunpack.c.l.b16 %v63
  %v149 = vunpack.c.h.b16 %v63
  %v150 = vunpack.c.l.b16 %v64
  %v151 = vunpack.c.h.b16 %v64
  %v152 = vunpack.c.l.b16 %v65
  %v153 = vunpack.c.h.b16 %v65
  %v154 = vunpack.c.l.b16 %v66
  %v155 = vunpack.c.h.b16 %v66
  %v156 = vunpack.c.l.b16 %v67
  %v157 = vunpack.c.h.b16 %v67
  %v158 = vunpack.c.l.b16 %v68
  %v159 = vunpack.c.h.b16 %v68
  %v160 = vunpack.c.l.b16 %v69
  %v161 = vunpack.c.h.b16 %v69
  %v162 = vunpack.c.l.b16 %v70
  %v163 = vunpack.c.h.b16 %v70
  %v164 = vunpack.c.l.b16 %v71
  %v165 = vunpack.c.h.b16 %v71
  %v166 = vunpack.c.l.b16 %v72
  %v167 = vunpack.c.h.b16 %v72
  %v168 = vunpack.c.l.b16 %v73
  %v169 = vunpack.c.h.b16 %v73
  %v170 = vpack.c.b16 %v108, %v106
  %v171 = vpack.c.b16 %v109, %v107
  %v172 = vpack.c.b16 %v112, %v110
  %v173 = vpack.c.b16 %v113, %v111
  %v174 = vpack.c.b16 %v116, %v114
  %v175 = vpack.c.b16 %v117, %v115
  %v176 = vpack.c.b16 %v120, %v118
  %v177 = vpack.c.b16 %v121, %v119
  %v178 = vpack.c.b16 %v124, %v122
  %v179 = vpack.c.b16 %v125, %v123
  %v180 = vpack.c.b16 %v128, %v126
  %v181 = vpack.c.b16 %v129, %v127
  %v182 = vpack.c.b16 %v132, %v130
  %v183 = vpack.c.b16 %v133, %v131
  %v184 = vpack.c.b16 %v136, %v134
  %v185 = vpack.c.b16 %v137, %v135
  %v186 = vpack.c.b16 %v140, %v138
  %v187 = vpack.c.b16 %v141, %v139
  %v188 = vpack.c.b16 %v144, %v142
  %v189 = vpack.c.b16 %v145, %v143
  %v190 = vpack.c.b16 %v148, %v146
  %v191 = vpack.c.b16 %v149, %v147
  %v192 = vpack.c.b16 %v152, %v150
  %v193 = vpack.c.b16 %v153, %v151
  %v194 = vpack.c.b16 %v156, %v154
  %v195 = vpack.c.b16 %v157, %v155
  %v196 = vpack.c.b16 %v160, %v158
  %v197 = vpack.c.b16 %v161, %v159
  %v198 = vpack.c.b16 %v164, %v162
  %v199 = vpack.c.b16 %v165, %v163
  %v200 = vpack.c.b16 %v168, %v166
  %v201 = vpack.c.b16 %v169, %v167
  %234 = vmatprep.subr.bf16.mxu0 %v171
  %235 = vmatpush1.bf16.msra.mxu0 %v170
  %236 = vmatprep.subr.bf16.mxu0 %v173
  %237 = vmatpush1.bf16.msra.mxu0 %v172
  %238 = vmatprep.subr.bf16.mxu0 %v175
  %239 = vmatpush1.bf16.msra.mxu0 %v174
  %240 = vmatprep.subr.bf16.mxu0 %v177
  %241 = vmatpush1.bf16.msra.mxu0 %v176
  %242 = vmatprep.subr.bf16.mxu0 %v179
  %243 = vmatpush1.bf16.msra.mxu0 %v178
  %244 = vmatprep.subr.bf16.mxu0 %v181
  %245 = vmatpush1.bf16.msra.mxu0 %v180
  %246 = vmatprep.subr.bf16.mxu0 %v183
  %247 = vmatpush1.bf16.msra.mxu0 %v182
  %248 = vmatprep.subr.bf16.mxu0 %v185
  %249 = vmatpush1.bf16.msra.mxu0 %v184
  %250 = vmatprep.subr.bf16.mxu0 %v187
  %251 = vmatpush1.bf16.msra.mxu0 %v186
  %252 = vmatprep.subr.bf16.mxu0 %v189
  %253 = vmatpush1.bf16.msra.mxu0 %v188
  %254 = vmatprep.subr.bf16.mxu0 %v191
  %255 = vmatpush1.bf16.msra.mxu0 %v190
  %256 = vmatprep.subr.bf16.mxu0 %v193
  %257 = vmatpush1.bf16.msra.mxu0 %v192
  %258 = vmatprep.subr.bf16.mxu0 %v195
  %259 = vmatpush1.bf16.msra.mxu0 %v194
  %260 = vmatprep.subr.bf16.mxu0 %v197
  %261 = vmatpush1.bf16.msra.mxu0 %v196
  %262 = vmatprep.subr.bf16.mxu0 %v199
  %263 = vmatpush1.bf16.msra.mxu0 %v198
  %264 = vmatprep.subr.bf16.mxu0 %v201
  %265 = vmatpush1.bf16.msra.mxu0 %v200
  %266 = vmatprep.mubr.bf16.mxu0 %v39
  %267 = vmatmul.mubr.bf16.gmra.mrb[0].mxu0 %v38
  %v268 = vpop.f32.mrb[0].mxu0
  %v269 = vadd.f32 0.0, %v268
  %v270 = vpop.f32.mrb[0].mxu0
  %v271 = vadd.f32 0.0, %v270
  %v272 = vpop.f32.mrb[0].mxu0
  %v273 = vadd.f32 0.0, %v272
  %v274 = vpop.f32.mrb[0].mxu0
  %v275 = vadd.f32 0.0, %v274
  %276 = vmatprep.mubr.bf16.mxu0 %v41
  %277 = vmatmul.mubr.bf16.gmra.mrb[0].mxu0 %v40
  %v278 = vpop.f32.mrb[0].mxu0
  %v279 = vadd.f32 0.0, %v278
  %v280 = vpop.f32.mrb[0].mxu0
  %v281 = vadd.f32 0.0, %v280
  %v282 = vpop.f32.mrb[0].mxu0
  %v283 = vadd.f32 0.0, %v282
  %v284 = vpop.f32.mrb[0].mxu0
  %v285 = vadd.f32 0.0, %v284
  %286 = vdwg.mxu0
  %287 = vst [vmem:[#allocation2] sm:$0xff] %v269
  %288 = vst [vmem:[#allocation2 + $0x8] sm:$0xff] %v271
  %289 = vst [vmem:[#allocation2 + $0x10] sm:$0xff] %v273
  %290 = vst [vmem:[#allocation2 + $0x18] sm:$0xff] %v275
  %291 = vst [vmem:[#allocation2 + $0x20] sm:$0xff] %v279
  %292 = vst [vmem:[#allocation2 + $0x28] sm:$0xff] %v281
  %293 = vst [vmem:[#allocation2 + $0x30] sm:$0xff] %v283
  %294 = vst [vmem:[#allocation2 + $0x38] sm:$0xff] %v285
  %v295 = vld [vmem:[%s2] sm:$0xff]
  %v296 = vld [vmem:[%s2 + $0x8] sm:$0xff]
  %v297 = vld [vmem:[%s2 + $0x10] sm:$0xff]
  %v298 = vld [vmem:[%s2 + $0x18] sm:$0xff]
  %v299 = vld [vmem:[%s2 + $0x20] sm:$0xff]
  %v300 = vld [vmem:[%s2 + $0x28] sm:$0xff]
  %v301 = vld [vmem:[%s2 + $0x30] sm:$0xff]
  %v302 = vld [vmem:[%s2 + $0x38] sm:$0xff]
  %v303 = vld [vmem:[%s2 + $0x40] sm:$0xff]
  %v304 = vld [vmem:[%s2 + $0x48] sm:$0xff]
  %v305 = vld [vmem:[%s2 + $0x50] sm:$0xff]
  %v306 = vld [vmem:[%s2 + $0x58] sm:$0xff]
  %v307 = vld [vmem:[%s2 + $0x60] sm:$0xff]
  %v308 = vld [vmem:[%s2 + $0x68] sm:$0xff]
  %v309 = vld [vmem:[%s2 + $0x70] sm:$0xff]
  %v310 = vld [vmem:[%s2 + $0x78] sm:$0xff]
  %v311 = vld [vmem:[%s2 + $0x80] sm:$0xff]
  %v312 = vld [vmem:[%s2 + $0x88] sm:$0xff]
  %v313 = vld [vmem:[%s2 + $0x90] sm:$0xff]
  %v314 = vld [vmem:[%s2 + $0x98] sm:$0xff]
  %v315 = vld [vmem:[%s2 + $0xa0] sm:$0xff]
  %v316 = vld [vmem:[%s2 + $0xa8] sm:$0xff]
  %v317 = vld [vmem:[%s2 + $0xb0] sm:$0xff]
  %v318 = vld [vmem:[%s2 + $0xb8] sm:$0xff]
  %v319 = vld [vmem:[%s2 + $0xc0] sm:$0xff]
  %v320 = vld [vmem:[%s2 + $0xc8] sm:$0xff]
  %v321 = vld [vmem:[%s2 + $0xd0] sm:$0xff]
  %v322 = vld [vmem:[%s2 + $0xd8] sm:$0xff]
  %v323 = vld [vmem:[%s2 + $0xe0] sm:$0xff]
  %v324 = vld [vmem:[%s2 + $0xe8] sm:$0xff]
  %v325 = vld [vmem:[%s2 + $0xf0] sm:$0xff]
  %v326 = vld [vmem:[%s2 + $0xf8] sm:$0xff]
  %v327 = vld [vmem:[#allocation2] sm:$0xff]
  %v328 = vld [vmem:[#allocation2 + $0x8] sm:$0xff]
  %v361 = vunpack.c.l.b16 %v295
  %v362 = vunpack.c.h.b16 %v295
  %v363 = vunpack.c.l.b16 %v296
  %v364 = vunpack.c.h.b16 %v296
  %v365 = vunpack.c.l.b16 %v297
  %v366 = vunpack.c.h.b16 %v297
  %v367 = vunpack.c.l.b16 %v298
  %v368 = vunpack.c.h.b16 %v298
  %v369 = vunpack.c.l.b16 %v299
  %v370 = vunpack.c.h.b16 %v299
  %v371 = vunpack.c.l.b16 %v300
  %v372 = vunpack.c.h.b16 %v300
  %v373 = vunpack.c.l.b16 %v301
  %v374 = vunpack.c.h.b16 %v301
  %v375 = vunpack.c.l.b16 %v302
  %v376 = vunpack.c.h.b16 %v302
  %v377 = vunpack.c.l.b16 %v303
  %v378 = vunpack.c.h.b16 %v303
  %v379 = vunpack.c.l.b16 %v304
  %v380 = vunpack.c.h.b16 %v304
  %v381 = vunpack.c.l.b16 %v305
  %v382 = vunpack.c.h.b16 %v305
  %v383 = vunpack.c.l.b16 %v306
  %v384 = vunpack.c.h.b16 %v306
  %v385 = vunpack.c.l.b16 %v307
  %v386 = vunpack.c.h.b16 %v307
  %v387 = vunpack.c.l.b16 %v308
  %v388 = vunpack.c.h.b16 %v308
  %v389 = vunpack.c.l.b16 %v309
  %v390 = vunpack.c.h.b16 %v309
  %v391 = vunpack.c.l.b16 %v310
  %v392 = vunpack.c.h.b16 %v310
  %v393 = vunpack.c.l.b16 %v311
  %v394 = vunpack.c.h.b16 %v311
  %v395 = vunpack.c.l.b16 %v312
  %v396 = vunpack.c.h.b16 %v312
  %v397 = vunpack.c.l.b16 %v313
  %v398 = vunpack.c.h.b16 %v313
  %v399 = vunpack.c.l.b16 %v314
  %v400 = vunpack.c.h.b16 %v314
  %v401 = vunpack.c.l.b16 %v315
  %v402 = vunpack.c.h.b16 %v315
  %v403 = vunpack.c.l.b16 %v316
  %v404 = vunpack.c.h.b16 %v316
  %v405 = vunpack.c.l.b16 %v317
  %v406 = vunpack.c.h.b16 %v317
  %v407 = vunpack.c.l.b16 %v318
  %v408 = vunpack.c.h.b16 %v318
  %v409 = vunpack.c.l.b16 %v319
  %v410 = vunpack.c.h.b16 %v319
  %v411 = vunpack.c.l.b16 %v320
  %v412 = vunpack.c.h.b16 %v320
  %v413 = vunpack.c.l.b16 %v321
  %v414 = vunpack.c.h.b16 %v321
  %v415 = vunpack.c.l.b16 %v322
  %v416 = vunpack.c.h.b16 %v322
  %v417 = vunpack.c.l.b16 %v323
  %v418 = vunpack.c.h.b16 %v323
  %v419 = vunpack.c.l.b16 %v324
  %v420 = vunpack.c.h.b16 %v324
  %v421 = vunpack.c.l.b16 %v325
  %v422 = vunpack.c.h.b16 %v325
  %v423 = vunpack.c.l.b16 %v326
  %v424 = vunpack.c.h.b16 %v326
  %v425 = vpack.c.b16 %v363, %v361
  %v426 = vpack.c.b16 %v364, %v362
  %v427 = vpack.c.b16 %v367, %v365
  %v428 = vpack.c.b16 %v368, %v366
  %v429 = vpack.c.b16 %v371, %v369
  %v430 = vpack.c.b16 %v372, %v370
  %v431 = vpack.c.b16 %v375, %v373
  %v432 = vpack.c.b16 %v376, %v374
  %v433 = vpack.c.b16 %v379, %v377
  %v434 = vpack.c.b16 %v380, %v378
  %v435 = vpack.c.b16 %v383, %v381
  %v436 = vpack.c.b16 %v384, %v382
  %v437 = vpack.c.b16 %v387, %v385
  %v438 = vpack.c.b16 %v388, %v386
  %v439 = vpack.c.b16 %v391, %v389
  %v440 = vpack.c.b16 %v392, %v390
  %v441 = vpack.c.b16 %v395, %v393
  %v442 = vpack.c.b16 %v396, %v394
  %v443 = vpack.c.b16 %v399, %v397
  %v444 = vpack.c.b16 %v400, %v398
  %v445 = vpack.c.b16 %v403, %v401
  %v446 = vpack.c.b16 %v404, %v402
  %v447 = vpack.c.b16 %v407, %v405
  %v448 = vpack.c.b16 %v408, %v406
  %v449 = vpack.c.b16 %v411, %v409
  %v450 = vpack.c.b16 %v412, %v410
  %v451 = vpack.c.b16 %v415, %v413
  %v452 = vpack.c.b16 %v416, %v414
  %v453 = vpack.c.b16 %v419, %v417
  %v454 = vpack.c.b16 %v420, %v418
  %v455 = vpack.c.b16 %v423, %v421
  %v456 = vpack.c.b16 %v424, %v422
  %489 = vmatprep.subr.bf16.mxu0 %v426
  %490 = vmatpush1.bf16.msra.mxu0 %v425
  %491 = vmatprep.subr.bf16.mxu0 %v428
  %492 = vmatpush1.bf16.msra.mxu0 %v427
  %493 = vmatprep.subr.bf16.mxu0 %v430
  %494 = vmatpush1.bf16.msra.mxu0 %v429
  %495 = vmatprep.subr.bf16.mxu0 %v432
  %496 = vmatpush1.bf16.msra.mxu0 %v431
  %497 = vmatprep.subr.bf16.mxu0 %v434
  %498 = vmatpush1.bf16.msra.mxu0 %v433
  %499 = vmatprep.subr.bf16.mxu0 %v436
  %500 = vmatpush1.bf16.msra.mxu0 %v435
  %501 = vmatprep.subr.bf16.mxu0 %v438
  %502 = vmatpush1.bf16.msra.mxu0 %v437
  %503 = vmatprep.subr.bf16.mxu0 %v440
  %504 = vmatpush1.bf16.msra.mxu0 %v439
  %505 = vmatprep.subr.bf16.mxu0 %v442
  %506 = vmatpush1.bf16.msra.mxu0 %v441
  %507 = vmatprep.subr.bf16.mxu0 %v444
  %508 = vmatpush1.bf16.msra.mxu0 %v443
  %509 = vmatprep.subr.bf16.mxu0 %v446
  %510 = vmatpush1.bf16.msra.mxu0 %v445
  %511 = vmatprep.subr.bf16.mxu0 %v448
  %512 = vmatpush1.bf16.msra.mxu0 %v447
  %513 = vmatprep.subr.bf16.mxu0 %v450
  %514 = vmatpush1.bf16.msra.mxu0 %v449
  %515 = vmatprep.subr.bf16.mxu0 %v452
  %516 = vmatpush1.bf16.msra.mxu0 %v451
  %517 = vmatprep.subr.bf16.mxu0 %v454
  %518 = vmatpush1.bf16.msra.mxu0 %v453
  %519 = vmatprep.subr.bf16.mxu0 %v456
  %520 = vmatpush1.bf16.msra.mxu0 %v455
  %521 = vmatprep.mubr.bf16.mxu0 0
  %522 = vmatmul.mubr.bf16.gmra.mrb[0].mxu0 0
  %v523 = vpop.f32.mrb[0].mxu0
  %v524 = vadd.f32 %v327, %v523
  %v525 = vpop.f32.mrb[0].mxu0
  %v526 = vadd.f32 %v328, %v525
  %v527 = vpop.f32.mrb[0].mxu0
  %v528 = vpop.f32.mrb[0].mxu0
  %529 = vdwg.mxu0
  %v530 = vmul.f32 %v524, 0.5
  %v531 = vmul.f32 %v526, 0.5
  %v532 = vmul.f32 %v524, 0.044715
  %v533 = vmul.f32 %v526, 0.044715
  %v534 = vmul.f32 %v532, %v524
  %v535 = vmul.f32 %v533, %v526
  %v536 = vmul.f32 %v534, %v524
  %v537 = vmul.f32 %v535, %v526
  %v538 = vadd.f32 %v524, %v536
  %v539 = vadd.f32 %v526, %v537
  %v540 = vmul.f32 %v538, 0.7978846
  %v541 = vmul.f32 %v539, 0.7978846
  %v542 = vtanh.pop %v540
  %v543 = vtanh.pop %v541
  %v544 = vadd.f32 %v542, 1.0
  %v545 = vadd.f32 %v543, 1.0
  %v546 = vmul.f32 %v530, %v544
  %v547 = vmul.f32 %v531, %v545
  %548 = vst [vmem:[#allocation3] sm:$0xff] %v546
  %549 = vst [vmem:[#allocation3 + $0x8] sm:$0xff] %v547
  %v550 = vpack.c.bf16 %v546, %v546
  %v551 = vpack.c.bf16 %v547, %v547
  %s552 = scalar_lea.vmem [#allocation2], 16
  %v553 = vld [vmem:[%s552] sm:$0xff]
  %v554 = vld [vmem:[%s552 + $0x8] sm:$0xff]
  %555 = vmatprep.subr.bf16.mxu0 %v426
  %556 = vmatpush1.bf16.msra.mxu0 %v425
  %557 = vmatprep.subr.bf16.mxu0 %v428
  %558 = vmatpush1.bf16.msra.mxu0 %v427
  %559 = vmatprep.subr.bf16.mxu0 %v430
  %560 = vmatpush1.bf16.msra.mxu0 %v429
  %561 = vmatprep.subr.bf16.mxu0 %v432
  %562 = vmatpush1.bf16.msra.mxu0 %v431
  %563 = vmatprep.subr.bf16.mxu0 %v434
  %564 = vmatpush1.bf16.msra.mxu0 %v433
  %565 = vmatprep.subr.bf16.mxu0 %v436
  %566 = vmatpush1.bf16.msra.mxu0 %v435
  %567 = vmatprep.subr.bf16.mxu0 %v438
  %568 = vmatpush1.bf16.msra.mxu0 %v437
  %569 = vmatprep.subr.bf16.mxu0 %v440
  %570 = vmatpush1.bf16.msra.mxu0 %v439
  %571 = vmatprep.subr.bf16.mxu0 %v442
  %572 = vmatpush1.bf16.msra.mxu0 %v441
  %573 = vmatprep.subr.bf16.mxu0 %v444
  %574 = vmatpush1.bf16.msra.mxu0 %v443
  %575 = vmatprep.subr.bf16.mxu0 %v446
  %576 = vmatpush1.bf16.msra.mxu0 %v445
  %577 = vmatprep.subr.bf16.mxu0 %v448
  %578 = vmatpush1.bf16.msra.mxu0 %v447
  %579 = vmatprep.subr.bf16.mxu0 %v450
  %580 = vmatpush1.bf16.msra.mxu0 %v449
  %581 = vmatprep.subr.bf16.mxu0 %v452
  %582 = vmatpush1.bf16.msra.mxu0 %v451
  %583 = vmatprep.subr.bf16.mxu0 %v454
  %584 = vmatpush1.bf16.msra.mxu0 %v453
  %585 = vmatprep.subr.bf16.mxu0 %v456
  %586 = vmatpush1.bf16.msra.mxu0 %v455
  %587 = vmatprep.mubr.bf16.mxu0 %v551
  %588 = vmatmul.mubr.bf16.gmra.mrb[0].mxu0 %v550
  %v589 = vpop.f32.mrb[0].mxu0
  %v590 = vadd.f32 %v553, %v589
  %v591 = vpop.f32.mrb[0].mxu0
  %v592 = vadd.f32 %v554, %v591
  %v593 = vpop.f32.mrb[0].mxu0
  %v594 = vpop.f32.mrb[0].mxu0
  %595 = vdwg.mxu0
  %v596 = vmul.f32 %v590, 0.5
  %v597 = vmul.f32 %v592, 0.5
  %v598 = vmul.f32 %v590, 0.044715
  %v599 = vmul.f32 %v592, 0.044715
  %v600 = vmul.f32 %v598, %v590
  %v601 = vmul.f32 %v599, %v592
  %v602 = vmul.f32 %v600, %v590
  %v603 = vmul.f32 %v601, %v592
  %v604 = vadd.f32 %v590, %v602
  %v605 = vadd.f32 %v592, %v603
  %v606 = vmul.f32 %v604, 0.7978846
  %v607 = vmul.f32 %v605, 0.7978846
  %v608 = vtanh.pop %v606
  %v609 = vtanh.pop %v607
  %v610 = vadd.f32 %v608, 1.0
  %v611 = vadd.f32 %v609, 1.0
  %v612 = vmul.f32 %v596, %v610
  %v613 = vmul.f32 %v597, %v611
  %s614 = scalar_lea.vmem [#allocation3], 16
  %615 = vst [vmem:[%s614] sm:$0xff] %v612
  %616 = vst [vmem:[%s614 + $0x8] sm:$0xff] %v613
  %v617 = vpack.c.bf16 %v612, %v612
  %v618 = vpack.c.bf16 %v613, %v613
  %s619 = scalar_lea.vmem [#allocation2], 32
  %v620 = vld [vmem:[%s619] sm:$0xff]
  %v621 = vld [vmem:[%s619 + $0x8] sm:$0xff]
  %622 = vmatprep.subr.bf16.mxu0 %v426
  %623 = vmatpush1.bf16.msra.mxu0 %v425
  %624 = vmatprep.subr.bf16.mxu0 %v428
  %625 = vmatpush1.bf16.msra.mxu0 %v427
  %626 = vmatprep.subr.bf16.mxu0 %v430
  %627 = vmatpush1.bf16.msra.mxu0 %v429
  %628 = vmatprep.subr.bf16.mxu0 %v432
  %629 = vmatpush1.bf16.msra.mxu0 %v431
  %630 = vmatprep.subr.bf16.mxu0 %v434
  %631 = vmatpush1.bf16.msra.mxu0 %v433
  %632 = vmatprep.subr.bf16.mxu0 %v436
  %633 = vmatpush1.bf16.msra.mxu0 %v435
  %634 = vmatprep.subr.bf16.mxu0 %v438
  %635 = vmatpush1.bf16.msra.mxu0 %v437
  %636 = vmatprep.subr.bf16.mxu0 %v440
  %637 = vmatpush1.bf16.msra.mxu0 %v439
  %638 = vmatprep.subr.bf16.mxu0 %v442
  %639 = vmatpush1.bf16.msra.mxu0 %v441
  %640 = vmatprep.subr.bf16.mxu0 %v444
  %641 = vmatpush1.bf16.msra.mxu0 %v443
  %642 = vmatprep.subr.bf16.mxu0 %v446
  %643 = vmatpush1.bf16.msra.mxu0 %v445
  %644 = vmatprep.subr.bf16.mxu0 %v448
  %645 = vmatpush1.bf16.msra.mxu0 %v447
  %646 = vmatprep.subr.bf16.mxu0 %v450
  %647 = vmatpush1.bf16.msra.mxu0 %v449
  %648 = vmatprep.subr.bf16.mxu0 %v452
  %649 = vmatpush1.bf16.msra.mxu0 %v451
  %650 = vmatprep.subr.bf16.mxu0 %v454
  %651 = vmatpush1.bf16.msra.mxu0 %v453
  %652 = vmatprep.subr.bf16.mxu0 %v456
  %653 = vmatpush1.bf16.msra.mxu0 %v455
  %654 = vmatprep.mubr.bf16.mxu0 %v618
  %655 = vmatmul.mubr.bf16.gmra.mrb[0].mxu0 %v617
  %v656 = vpop.f32.mrb[0].mxu0
  %v657 = vadd.f32 %v620, %v656
  %v658 = vpop.f32.mrb[0].mxu0
  %v659 = vadd.f32 %v621, %v658
  %v660 = vpop.f32.mrb[0].mxu0
  %v661 = vpop.f32.mrb[0].mxu0
  %662 = vdwg.mxu0
  %v663 = vmul.f32 %v657, 0.5
  %v664 = vmul.f32 %v659, 0.5
  %v665 = vmul.f32 %v657, 0.044715
  %v666 = vmul.f32 %v659, 0.044715
  %v667 = vmul.f32 %v665, %v657
  %v668 = vmul.f32 %v666, %v659
  %v669 = vmul.f32 %v667, %v657
  %v670 = vmul.f32 %v668, %v659
  %v671 = vadd.f32 %v657, %v669
  %v672 = vadd.f32 %v659, %v670
  %v673 = vmul.f32 %v671, 0.7978846
  %v674 = vmul.f32 %v672, 0.7978846
  %v675 = vtanh.pop %v673
  %v676 = vtanh.pop %v674
  %v677 = vadd.f32 %v675, 1.0
  %v678 = vadd.f32 %v676, 1.0
  %v679 = vmul.f32 %v663, %v677
  %v680 = vmul.f32 %v664, %v678
  %s681 = scalar_lea.vmem [#allocation3], 32
  %682 = vst [vmem:[%s681] sm:$0xff] %v679
  %683 = vst [vmem:[%s681 + $0x8] sm:$0xff] %v680
  %v684 = vpack.c.bf16 %v679, %v679
  %v685 = vpack.c.bf16 %v680, %v680
  %s686 = scalar_lea.vmem [#allocation2], 48
  %v687 = vld [vmem:[%s686] sm:$0xff]
  %v688 = vld [vmem:[%s686 + $0x8] sm:$0xff]
  %689 = vmatprep.subr.bf16.mxu0 %v426
  %690 = vmatpush1.bf16.msra.mxu0 %v425
  %691 = vmatprep.subr.bf16.mxu0 %v428
  %692 = vmatpush1.bf16.msra.mxu0 %v427
  %693 = vmatprep.subr.bf16.mxu0 %v430
  %694 = vmatpush1.bf16.msra.mxu0 %v429
  %695 = vmatprep.subr.bf16.mxu0 %v432
  %696 = vmatpush1.bf16.msra.mxu0 %v431
  %697 = vmatprep.subr.bf16.mxu0 %v434
  %698 = vmatpush1.bf16.msra.mxu0 %v433
  %699 = vmatprep.subr.bf16.mxu0 %v436
  %700 = vmatpush1.bf16.msra.mxu0 %v435
  %701 = vmatprep.subr.bf16.mxu0 %v438
  %702 = vmatpush1.bf16.msra.mxu0 %v437
  %703 = vmatprep.subr.bf16.mxu0 %v440
  %704 = vmatpush1.bf16.msra.mxu0 %v439
  %705 = vmatprep.subr.bf16.mxu0 %v442
  %706 = vmatpush1.bf16.msra.mxu0 %v441
  %707 = vmatprep.subr.bf16.mxu0 %v444
  %708 = vmatpush1.bf16.msra.mxu0 %v443
  %709 = vmatprep.subr.bf16.mxu0 %v446
  %710 = vmatpush1.bf16.msra.mxu0 %v445
  %711 = vmatprep.subr.bf16.mxu0 %v448
  %712 = vmatpush1.bf16.msra.mxu0 %v447
  %713 = vmatprep.subr.bf16.mxu0 %v450
  %714 = vmatpush1.bf16.msra.mxu0 %v449
  %715 = vmatprep.subr.bf16.mxu0 %v452
  %716 = vmatpush1.bf16.msra.mxu0 %v451
  %717 = vmatprep.subr.bf16.mxu0 %v454
  %718 = vmatpush1.bf16.msra.mxu0 %v453
  %719 = vmatprep.subr.bf16.mxu0 %v456
  %720 = vmatpush1.bf16.msra.mxu0 %v455
  %721 = vmatprep.mubr.bf16.mxu0 %v685
  %722 = vmatmul.mubr.bf16.gmra.mrb[0].mxu0 %v684
  %v723 = vpop.f32.mrb[0].mxu0
  %v724 = vadd.f32 %v687, %v723
  %v725 = vpop.f32.mrb[0].mxu0
  %v726 = vadd.f32 %v688, %v725
  %v727 = vpop.f32.mrb[0].mxu0
  %v728 = vpop.f32.mrb[0].mxu0
  %729 = vdwg.mxu0
  %v730 = vmul.f32 %v724, 0.5
  %v731 = vmul.f32 %v726, 0.5
  %v732 = vmul.f32 %v724, 0.044715
  %v733 = vmul.f32 %v726, 0.044715
  %v734 = vmul.f32 %v732, %v724
  %v735 = vmul.f32 %v733, %v726
  %v736 = vmul.f32 %v734, %v724
  %v737 = vmul.f32 %v735, %v726
  %v738 = vadd.f32 %v724, %v736
  %v739 = vadd.f32 %v726, %v737
  %v740 = vmul.f32 %v738, 0.7978846
  %v741 = vmul.f32 %v739, 0.7978846
  %v742 = vtanh.pop %v740
  %v743 = vtanh.pop %v741
  %v744 = vadd.f32 %v742, 1.0
  %v745 = vadd.f32 %v743, 1.0
  %v746 = vmul.f32 %v730, %v744
  %v747 = vmul.f32 %v731, %v745
  %s748 = scalar_lea.vmem [#allocation3], 48
  %749 = vst [vmem:[%s748] sm:$0xff] %v746
  %750 = vst [vmem:[%s748 + $0x8] sm:$0xff] %v747
  %v751 = vld [vmem:[#allocation3] sm:$0xff]
  %v752 = vld [vmem:[#allocation3 + $0x8] sm:$0xff]
  %v753 = vld [vmem:[#allocation3 + $0x10] sm:$0xff]
  %v754 = vld [vmem:[#allocation3 + $0x18] sm:$0xff]
  %v755 = vld [vmem:[#allocation3 + $0x20] sm:$0xff]
  %v756 = vld [vmem:[#allocation3 + $0x28] sm:$0xff]
  %v757 = vld [vmem:[#allocation3 + $0x30] sm:$0xff]
  %v758 = vld [vmem:[#allocation3 + $0x38] sm:$0xff]
  %v759 = vpack.c.bf16 %v753, %v751
  %v760 = vpack.c.bf16 %v754, %v752
  %v761 = vpack.c.bf16 %v757, %v755
  %v762 = vpack.c.bf16 %v758, %v756
  %v763 = vld [vmem:[%s3] sm:$0xff]
  %v764 = vld [vmem:[%s3 + $0x8] sm:$0xff]
  %v765 = vld [vmem:[%s3 + $0x10] sm:$0xff]
  %v766 = vld [vmem:[%s3 + $0x18] sm:$0xff]
  %v767 = vld [vmem:[%s3 + $0x20] sm:$0xff]
  %v768 = vld [vmem:[%s3 + $0x28] sm:$0xff]
  %v769 = vld [vmem:[%s3 + $0x30] sm:$0xff]
  %v770 = vld [vmem:[%s3 + $0x38] sm:$0xff]
  %v771 = vld [vmem:[%s3 + $0x40] sm:$0xff]
  %v772 = vld [vmem:[%s3 + $0x48] sm:$0xff]
  %v773 = vld [vmem:[%s3 + $0x50] sm:$0xff]
  %v774 = vld [vmem:[%s3 + $0x58] sm:$0xff]
  %v775 = vld [vmem:[%s3 + $0x60] sm:$0xff]
  %v776 = vld [vmem:[%s3 + $0x68] sm:$0xff]
  %v777 = vld [vmem:[%s3 + $0x70] sm:$0xff]
  %v778 = vld [vmem:[%s3 + $0x78] sm:$0xff]
  %v779 = vld [vmem:[%s3 + $0x80] sm:$0xff]
  %v780 = vld [vmem:[%s3 + $0x88] sm:$0xff]
  %v781 = vld [vmem:[%s3 + $0x90] sm:$0xff]
  %v782 = vld [vmem:[%s3 + $0x98] sm:$0xff]
  %v783 = vld [vmem:[%s3 + $0xa0] sm:$0xff]
  %v784 = vld [vmem:[%s3 + $0xa8] sm:$0xff]
  %v785 = vld [vmem:[%s3 + $0xb0] sm:$0xff]
  %v786 = vld [vmem:[%s3 + $0xb8] sm:$0xff]
  %v787 = vld [vmem:[%s3 + $0xc0] sm:$0xff]
  %v788 = vld [vmem:[%s3 + $0xc8] sm:$0xff]
  %v789 = vld [vmem:[%s3 + $0xd0] sm:$0xff]
  %v790 = vld [vmem:[%s3 + $0xd8] sm:$0xff]
  %v791 = vld [vmem:[%s3 + $0xe0] sm:$0xff]
  %v792 = vld [vmem:[%s3 + $0xe8] sm:$0xff]
  %v793 = vld [vmem:[%s3 + $0xf0] sm:$0xff]
  %v794 = vld [vmem:[%s3 + $0xf8] sm:$0xff]
  %v827 = vunpack.c.l.b16 %v763
  %v828 = vunpack.c.h.b16 %v763
  %v829 = vunpack.c.l.b16 %v764
  %v830 = vunpack.c.h.b16 %v764
  %v831 = vunpack.c.l.b16 %v765
  %v832 = vunpack.c.h.b16 %v765
  %v833 = vunpack.c.l.b16 %v766
  %v834 = vunpack.c.h.b16 %v766
  %v835 = vunpack.c.l.b16 %v767
  %v836 = vunpack.c.h.b16 %v767
  %v837 = vunpack.c.l.b16 %v768
  %v838 = vunpack.c.h.b16 %v768
  %v839 = vunpack.c.l.b16 %v769
  %v840 = vunpack.c.h.b16 %v769
  %v841 = vunpack.c.l.b16 %v770
  %v842 = vunpack.c.h.b16 %v770
  %v843 = vunpack.c.l.b16 %v771
  %v844 = vunpack.c.h.b16 %v771
  %v845 = vunpack.c.l.b16 %v772
  %v846 = vunpack.c.h.b16 %v772
  %v847 = vunpack.c.l.b16 %v773
  %v848 = vunpack.c.h.b16 %v773
  %v849 = vunpack.c.l.b16 %v774
  %v850 = vunpack.c.h.b16 %v774
  %v851 = vunpack.c.l.b16 %v775
  %v852 = vunpack.c.h.b16 %v775
  %v853 = vunpack.c.l.b16 %v776
  %v854 = vunpack.c.h.b16 %v776
  %v855 = vunpack.c.l.b16 %v777
  %v856 = vunpack.c.h.b16 %v777
  %v857 = vunpack.c.l.b16 %v778
  %v858 = vunpack.c.h.b16 %v778
  %v859 = vunpack.c.l.b16 %v779
  %v860 = vunpack.c.h.b16 %v779
  %v861 = vunpack.c.l.b16 %v780
  %v862 = vunpack.c.h.b16 %v780
  %v863 = vunpack.c.l.b16 %v781
  %v864 = vunpack.c.h.b16 %v781
  %v865 = vunpack.c.l.b16 %v782
  %v866 = vunpack.c.h.b16 %v782
  %v867 = vunpack.c.l.b16 %v783
  %v868 = vunpack.c.h.b16 %v783
  %v869 = vunpack.c.l.b16 %v784
  %v870 = vunpack.c.h.b16 %v784
  %v871 = vunpack.c.l.b16 %v785
  %v872 = vunpack.c.h.b16 %v785
  %v873 = vunpack.c.l.b16 %v786
  %v874 = vunpack.c.h.b16 %v786
  %v875 = vunpack.c.l.b16 %v787
  %v876 = vunpack.c.h.b16 %v787
  %v877 = vunpack.c.l.b16 %v788
  %v878 = vunpack.c.h.b16 %v788
  %v879 = vunpack.c.l.b16 %v789
  %v880 = vunpack.c.h.b16 %v789
  %v881 = vunpack.c.l.b16 %v790
  %v882 = vunpack.c.h.b16 %v790
  %v883 = vunpack.c.l.b16 %v791
  %v884 = vunpack.c.h.b16 %v791
  %v885 = vunpack.c.l.b16 %v792
  %v886 = vunpack.c.h.b16 %v792
  %v887 = vunpack.c.l.b16 %v793
  %v888 = vunpack.c.h.b16 %v793
  %v889 = vunpack.c.l.b16 %v794
  %v890 = vunpack.c.h.b16 %v794
  %v891 = vpack.c.b16 %v829, %v827
  %v892 = vpack.c.b16 %v830, %v828
  %v893 = vpack.c.b16 %v833, %v831
  %v894 = vpack.c.b16 %v834, %v832
  %v895 = vpack.c.b16 %v837, %v835
  %v896 = vpack.c.b16 %v838, %v836
  %v897 = vpack.c.b16 %v841, %v839
  %v898 = vpack.c.b16 %v842, %v840
  %v899 = vpack.c.b16 %v845, %v843
  %v900 = vpack.c.b16 %v846, %v844
  %v901 = vpack.c.b16 %v849, %v847
  %v902 = vpack.c.b16 %v850, %v848
  %v903 = vpack.c.b16 %v853, %v851
  %v904 = vpack.c.b16 %v854, %v852
  %v905 = vpack.c.b16 %v857, %v855
  %v906 = vpack.c.b16 %v858, %v856
  %v907 = vpack.c.b16 %v861, %v859
  %v908 = vpack.c.b16 %v862, %v860
  %v909 = vpack.c.b16 %v865, %v863
  %v910 = vpack.c.b16 %v866, %v864
  %v911 = vpack.c.b16 %v869, %v867
  %v912 = vpack.c.b16 %v870, %v868
  %v913 = vpack.c.b16 %v873, %v871
  %v914 = vpack.c.b16 %v874, %v872
  %v915 = vpack.c.b16 %v877, %v875
  %v916 = vpack.c.b16 %v878, %v876
  %v917 = vpack.c.b16 %v881, %v879
  %v918 = vpack.c.b16 %v882, %v880
  %v919 = vpack.c.b16 %v885, %v883
  %v920 = vpack.c.b16 %v886, %v884
  %v921 = vpack.c.b16 %v889, %v887
  %v922 = vpack.c.b16 %v890, %v888
  %955 = vmatprep.subr.bf16.mxu0 %v892
  %956 = vmatpush1.bf16.msra.mxu0 %v891
  %957 = vmatprep.subr.bf16.mxu0 %v894
  %958 = vmatpush1.bf16.msra.mxu0 %v893
  %959 = vmatprep.subr.bf16.mxu0 %v896
  %960 = vmatpush1.bf16.msra.mxu0 %v895
  %961 = vmatprep.subr.bf16.mxu0 %v898
  %962 = vmatpush1.bf16.msra.mxu0 %v897
  %963 = vmatprep.subr.bf16.mxu0 %v900
  %964 = vmatpush1.bf16.msra.mxu0 %v899
  %965 = vmatprep.subr.bf16.mxu0 %v902
  %966 = vmatpush1.bf16.msra.mxu0 %v901
  %967 = vmatprep.subr.bf16.mxu0 %v904
  %968 = vmatpush1.bf16.msra.mxu0 %v903
  %969 = vmatprep.subr.bf16.mxu0 %v906
  %970 = vmatpush1.bf16.msra.mxu0 %v905
  %971 = vmatprep.subr.bf16.mxu0 %v908
  %972 = vmatpush1.bf16.msra.mxu0 %v907
  %973 = vmatprep.subr.bf16.mxu0 %v910
  %974 = vmatpush1.bf16.msra.mxu0 %v909
  %975 = vmatprep.subr.bf16.mxu0 %v912
  %976 = vmatpush1.bf16.msra.mxu0 %v911
  %977 = vmatprep.subr.bf16.mxu0 %v914
  %978 = vmatpush1.bf16.msra.mxu0 %v913
  %979 = vmatprep.subr.bf16.mxu0 %v916
  %980 = vmatpush1.bf16.msra.mxu0 %v915
  %981 = vmatprep.subr.bf16.mxu0 %v918
  %982 = vmatpush1.bf16.msra.mxu0 %v917
  %983 = vmatprep.subr.bf16.mxu0 %v920
  %984 = vmatpush1.bf16.msra.mxu0 %v919
  %985 = vmatprep.subr.bf16.mxu0 %v922
  %986 = vmatpush1.bf16.msra.mxu0 %v921
  %987 = vmatprep.mubr.bf16.mxu0 %v760
  %988 = vmatmul.mubr.bf16.gmra.mrb[0].mxu0 %v759
  %v989 = vpop.f32.mrb[0].mxu0
  %v990 = vadd.f32 0.0, %v989
  %v991 = vpop.f32.mrb[0].mxu0
  %v992 = vadd.f32 0.0, %v991
  %v993 = vpop.f32.mrb[0].mxu0
  %v994 = vadd.f32 0.0, %v993
  %v995 = vpop.f32.mrb[0].mxu0
  %v996 = vadd.f32 0.0, %v995
  %997 = vmatprep.mubr.bf16.mxu0 %v762
  %998 = vmatmul.mubr.bf16.gmra.mrb[0].mxu0 %v761
  %v999 = vpop.f32.mrb[0].mxu0
  %v1000 = vadd.f32 0.0, %v999
  %v1001 = vpop.f32.mrb[0].mxu0
  %v1002 = vadd.f32 0.0, %v1001
  %v1003 = vpop.f32.mrb[0].mxu0
  %v1004 = vadd.f32 0.0, %v1003
  %v1005 = vpop.f32.mrb[0].mxu0
  %v1006 = vadd.f32 0.0, %v1005
  %1007 = vdwg.mxu0
  %v1008 = vadd.f32 %v990, %v992
  %1009 = vadd.xlane.f32.xlu0 %v1008
  %v1010 = vpop.xlane.xlu0 %1009
  %v1011 = vadd.f32 %v994, %v996
  %1012 = vadd.xlane.f32.xlu0 %v1011
  %v1013 = vpop.xlane.xlu0 %1012
  %v1014 = vadd.f32 %v1000, %v1002
  %1015 = vadd.xlane.f32.xlu0 %v1014
  %v1016 = vpop.xlane.xlu0 %1015
  %v1017 = vadd.f32 %v1004, %v1006
  %1018 = vadd.xlane.f32.xlu0 %v1017
  %v1019 = vpop.xlane.xlu0 %1018
  %v1020 = vrcp.pop 256.0
  %v1021 = vmul.f32 %v1010, %v1020
  %v1022 = vmul.f32 %v1013, %v1020
  %v1023 = vmul.f32 %v1016, %v1020
  %v1024 = vmul.f32 %v1019, %v1020
  %v1025 = vsub.f32 %v990, %v1021
  %v1026 = vsub.f32 %v992, %v1021
  %v1027 = vsub.f32 %v994, %v1022
  %v1028 = vsub.f32 %v996, %v1022
  %v1029 = vsub.f32 %v1000, %v1023
  %v1030 = vsub.f32 %v1002, %v1023
  %v1031 = vsub.f32 %v1004, %v1024
  %v1032 = vsub.f32 %v1006, %v1024
  %v1033 = vmul.f32 %v1025, %v1025
  %v1034 = vmul.f32 %v1026, %v1026
  %v1035 = vmul.f32 %v1027, %v1027
  %v1036 = vmul.f32 %v1028, %v1028
  %v1037 = vmul.f32 %v1029, %v1029
  %v1038 = vmul.f32 %v1030, %v1030
  %v1039 = vmul.f32 %v1031, %v1031
  %v1040 = vmul.f32 %v1032, %v1032
  %v1041 = vadd.f32 %v1033, %v1034
  %1042 = vadd.xlane.f32.xlu0 %v1041
  %v1043 = vpop.xlane.xlu0 %1042
  %v1044 = vadd.f32 %v1035, %v1036
  %1045 = vadd.xlane.f32.xlu0 %v1044
  %v1046 = vpop.xlane.xlu0 %1045
  %v1047 = vadd.f32 %v1037, %v1038
  %1048 = vadd.xlane.f32.xlu0 %v1047
  %v1049 = vpop.xlane.xlu0 %1048
  %v1050 = vadd.f32 %v1039, %v1040
  %1051 = vadd.xlane.f32.xlu0 %v1050
  %v1052 = vpop.xlane.xlu0 %1051
  %v1053 = vmul.f32 %v1043, %v1020
  %v1054 = vmul.f32 %v1046, %v1020
  %v1055 = vmul.f32 %v1049, %v1020
  %v1056 = vmul.f32 %v1052, %v1020
  %v1057 = vadd.f32 %v1053, 1e-05
  %v1058 = vadd.f32 %v1054, 1e-05
  %v1059 = vadd.f32 %v1055, 1e-05
  %v1060 = vadd.f32 %v1056, 1e-05
  %v1061 = vrsqrt.pop %v1057
  %v1062 = vrsqrt.pop %v1058
  %v1063 = vrsqrt.pop %v1059
  %v1064 = vrsqrt.pop %v1060
  %v1065 = vmul.f32 %v1025, %v1061
  %v1066 = vmul.f32 %v1026, %v1061
  %v1067 = vmul.f32 %v1027, %v1062
  %v1068 = vmul.f32 %v1028, %v1062
  %v1069 = vmul.f32 %v1029, %v1063
  %v1070 = vmul.f32 %v1030, %v1063
  %v1071 = vmul.f32 %v1031, %v1064
  %v1072 = vmul.f32 %v1032, %v1064
  %v1073 = vld [vmem:[%s4] sm:$0x3]
  %v1075 = vlaneseq
  %v1076 = vshrl.u32 %v1075, 7
  %v1077 = vsub.s32 0, %v1076
  %v1078 = vrot.slane %v1073, %v1077
  %v1079 = vlaneseq
  %v1080 = vshrl.u32 %v1079, 7
  %v1081 = vsub.s32 1, %v1080
  %v1082 = vrot.slane %v1073, %v1081
  %v1085 = vmul.f32 %v1065, %v1078
  %v1086 = vmul.f32 %v1066, %v1082
  %v1087 = vmul.f32 %v1067, %v1078
  %v1088 = vmul.f32 %v1068, %v1082
  %v1089 = vmul.f32 %v1069, %v1078
  %v1090 = vmul.f32 %v1070, %v1082
  %v1091 = vmul.f32 %v1071, %v1078
  %v1092 = vmul.f32 %v1072, %v1082
  %v1093 = vld [vmem:[%s5] sm:$0x3]
  %v1095 = vlaneseq
  %v1096 = vshrl.u32 %v1095, 7
  %v1097 = vsub.s32 0, %v1096
  %v1098 = vrot.slane %v1093, %v1097
  %v1099 = vlaneseq
  %v1100 = vshrl.u32 %v1099, 7
  %v1101 = vsub.s32 1, %v1100
  %v1102 = vrot.slane %v1093, %v1101
  %v1105 = vadd.f32 %v1085, %v1098
  %v1106 = vadd.f32 %v1086, %v1102
  %v1107 = vadd.f32 %v1087, %v1098
  %v1108 = vadd.f32 %v1088, %v1102
  %v1109 = vadd.f32 %v1089, %v1098
  %v1110 = vadd.f32 %v1090, %v1102
  %v1111 = vadd.f32 %v1091, %v1098
  %v1112 = vadd.f32 %v1092, %v1102
  %v1113 = vpack.c.bf16 %v1107, %v1105
  %v1114 = vpack.c.bf16 %v1108, %v1106
  %v1115 = vpack.c.bf16 %v1111, %v1109
  %v1116 = vpack.c.bf16 %v1112, %v1110
  %v1117 = vld [vmem:[%s6] sm:$0xf]
  %v1118 = vld [vmem:[%s6 + $0x4] sm:$0xf]
  %v1119 = vld [vmem:[%s6 + $0x8] sm:$0xf]
  %v1120 = vld [vmem:[%s6 + $0xc] sm:$0xf]
  %v1121 = vld [vmem:[%s6 + $0x10] sm:$0xf]
  %v1122 = vld [vmem:[%s6 + $0x14] sm:$0xf]
  %v1123 = vld [vmem:[%s6 + $0x18] sm:$0xf]
  %v1124 = vld [vmem:[%s6 + $0x1c] sm:$0xf]
  %v1125 = vld [vmem:[%s6 + $0x20] sm:$0xf]
  %v1126 = vld [vmem:[%s6 + $0x24] sm:$0xf]
  %v1127 = vld [vmem:[%s6 + $0x28] sm:$0xf]
  %v1128 = vld [vmem:[%s6 + $0x2c] sm:$0xf]
  %v1129 = vld [vmem:[%s6 + $0x30] sm:$0xf]
  %v1130 = vld [vmem:[%s6 + $0x34] sm:$0xf]
  %v1131 = vld [vmem:[%s6 + $0x38] sm:$0xf]
  %v1132 = vld [vmem:[%s6 + $0x3c] sm:$0xf]
  %v1133 = vld [vmem:[%s6 + $0x40] sm:$0xf]
  %v1134 = vld [vmem:[%s6 + $0x44] sm:$0xf]
  %v1135 = vld [vmem:[%s6 + $0x48] sm:$0xf]
  %v1136 = vld [vmem:[%s6 + $0x4c] sm:$0xf]
  %v1137 = vld [vmem:[%s6 + $0x50] sm:$0xf]
  %v1138 = vld [vmem:[%s6 + $0x54] sm:$0xf]
  %v1139 = vld [vmem:[%s6 + $0x58] sm:$0xf]
  %v1140 = vld [vmem:[%s6 + $0x5c] sm:$0xf]
  %v1141 = vld [vmem:[%s6 + $0x60] sm:$0xf]
  %v1142 = vld [vmem:[%s6 + $0x64] sm:$0xf]
  %v1143 = vld [vmem:[%s6 + $0x68] sm:$0xf]
  %v1144 = vld [vmem:[%s6 + $0x6c] sm:$0xf]
  %v1145 = vld [vmem:[%s6 + $0x70] sm:$0xf]
  %v1146 = vld [vmem:[%s6 + $0x74] sm:$0xf]
  %v1147 = vld [vmem:[%s6 + $0x78] sm:$0xf]
  %v1148 = vld [vmem:[%s6 + $0x7c] sm:$0xf]
  %v1149 = vld [vmem:[%s7] sm:$0x1]
  %v1151 = vlaneseq
  %v1152 = vshrl.u32 %v1151, 7
  %v1153 = vsub.s32 0, %v1152
  %v1154 = vrot.slane %v1149, %v1153
  %v1188 = vunpack.c.l.b16 %v1117
  %v1189 = vunpack.c.l.b16 %v1118
  %v1190 = vunpack.c.l.b16 %v1119
  %v1191 = vunpack.c.l.b16 %v1120
  %v1192 = vunpack.c.l.b16 %v1121
  %v1193 = vunpack.c.l.b16 %v1122
  %v1194 = vunpack.c.l.b16 %v1123
  %v1195 = vunpack.c.l.b16 %v1124
  %v1196 = vunpack.c.l.b16 %v1125
  %v1197 = vunpack.c.l.b16 %v1126
  %v1198 = vunpack.c.l.b16 %v1127
  %v1199 = vunpack.c.l.b16 %v1128
  %v1200 = vunpack.c.l.b16 %v1129
  %v1201 = vunpack.c.l.b16 %v1130
  %v1202 = vunpack.c.l.b16 %v1131
  %v1203 = vunpack.c.l.b16 %v1132
  %v1204 = vunpack.c.l.b16 %v1133
  %v1205 = vunpack.c.l.b16 %v1134
  %v1206 = vunpack.c.l.b16 %v1135
  %v1207 = vunpack.c.l.b16 %v1136
  %v1208 = vunpack.c.l.b16 %v1137
  %v1209 = vunpack.c.l.b16 %v1138
  %v1210 = vunpack.c.l.b16 %v1139
  %v1211 = vunpack.c.l.b16 %v1140
  %v1212 = vunpack.c.l.b16 %v1141
  %v1213 = vunpack.c.l.b16 %v1142
  %v1214 = vunpack.c.l.b16 %v1143
  %v1215 = vunpack.c.l.b16 %v1144
  %v1216 = vunpack.c.l.b16 %v1145
  %v1217 = vunpack.c.l.b16 %v1146
  %v1218 = vunpack.c.l.b16 %v1147
  %v1219 = vunpack.c.l.b16 %v1148
  %v1220 = vpack.c.b16 %v1189, %v1188
  %v1221 = vpack.c.b16 %v1191, %v1190
  %v1222 = vpack.c.b16 %v1193, %v1192
  %v1223 = vpack.c.b16 %v1195, %v1194
  %v1224 = vpack.c.b16 %v1197, %v1196
  %v1225 = vpack.c.b16 %v1199, %v1198
  %v1226 = vpack.c.b16 %v1201, %v1200
  %v1227 = vpack.c.b16 %v1203, %v1202
  %v1228 = vpack.c.b16 %v1205, %v1204
  %v1229 = vpack.c.b16 %v1207, %v1206
  %v1230 = vpack.c.b16 %v1209, %v1208
  %v1231 = vpack.c.b16 %v1211, %v1210
  %v1232 = vpack.c.b16 %v1213, %v1212
  %v1233 = vpack.c.b16 %v1215, %v1214
  %v1234 = vpack.c.b16 %v1217, %v1216
  %v1235 = vpack.c.b16 %v1219, %v1218
  %1252 = vmatprep.subr.bf16.mxu0 0
  %1253 = vmatpush1.bf16.msra.mxu0 %v1220
  %1254 = vmatprep.subr.bf16.mxu0 0
  %1255 = vmatpush1.bf16.msra.mxu0 %v1221
  %1256 = vmatprep.subr.bf16.mxu0 0
  %1257 = vmatpush1.bf16.msra.mxu0 %v1222
  %1258 = vmatprep.subr.bf16.mxu0 0
  %1259 = vmatpush1.bf16.msra.mxu0 %v1223
  %1260 = vmatprep.subr.bf16.mxu0 0
  %1261 = vmatpush1.bf16.msra.mxu0 %v1224
  %1262 = vmatprep.subr.bf16.mxu0 0
  %1263 = vmatpush1.bf16.msra.mxu0 %v1225
  %1264 = vmatprep.subr.bf16.mxu0 0
  %1265 = vmatpush1.bf16.msra.mxu0 %v1226
  %1266 = vmatprep.subr.bf16.mxu0 0
  %1267 = vmatpush1.bf16.msra.mxu0 %v1227
  %1268 = vmatprep.subr.bf16.mxu0 0
  %1269 = vmatpush1.bf16.msra.mxu0 %v1228
  %1270 = vmatprep.subr.bf16.mxu0 0
  %1271 = vmatpush1.bf16.msra.mxu0 %v1229
  %1272 = vmatprep.subr.bf16.mxu0 0
  %1273 = vmatpush1.bf16.msra.mxu0 %v1230
  %1274 = vmatprep.subr.bf16.mxu0 0
  %1275 = vmatpush1.bf16.msra.mxu0 %v1231
  %1276 = vmatprep.subr.bf16.mxu0 0
  %1277 = vmatpush1.bf16.msra.mxu0 %v1232
  %1278 = vmatprep.subr.bf16.mxu0 0
  %1279 = vmatpush1.bf16.msra.mxu0 %v1233
  %1280 = vmatprep.subr.bf16.mxu0 0
  %1281 = vmatpush1.bf16.msra.mxu0 %v1234
  %1282 = vmatprep.subr.bf16.mxu0 0
  %1283 = vmatpush1.bf16.msra.mxu0 %v1235
  %1284 = vmatprep.mubr.bf16.mxu0 %v1114
  %1285 = vmatmul.mubr.bf16.gmra.mrb[0].mxu0 %v1113
  %v1286 = vpop.f32.mrb[0].mxu0
  %v1287 = vadd.f32 %v1154, %v1286
  %v1288 = vpop.f32.mrb[0].mxu0
  %v1289 = vpop.f32.mrb[0].mxu0
  %v1290 = vadd.f32 %v1154, %v1289
  %v1291 = vpop.f32.mrb[0].mxu0
  %1292 = vmatprep.mubr.bf16.mxu0 %v1116
  %1293 = vmatmul.mubr.bf16.gmra.mrb[0].mxu0 %v1115
  %v1294 = vpop.f32.mrb[0].mxu0
  %v1295 = vadd.f32 %v1154, %v1294
  %v1296 = vpop.f32.mrb[0].mxu0
  %v1297 = vpop.f32.mrb[0].mxu0
  %v1298 = vadd.f32 %v1154, %v1297
  %v1299 = vpop.f32.mrb[0].mxu0
  %1300 = vdwg.mxu0
  %1301 = vst [vmem:[%s8] sm:$0xff] %v1287
  %1302 = vst [vmem:[%s8 + $0x8] sm:$0xff] %v1290
  %1303 = vst [vmem:[%s8 + $0x10] sm:$0xff] %v1295
  %1304 = vst [vmem:[%s8 + $0x18] sm:$0xff] %v1298
  // Predicated region
  $region34: #{_lambda_.5} parent=0 // pred_check
    _
  $region35: #{_lambda_.5} parent=0 // pred_check_branch
    %1306 = sbr.rel (0) target = $region37
  $region36: #{_lambda_.5} parent=0 // pred_region
    _
  $region37: #{_lambda_.5} parent=0 // pred_fallthru
    _
  // Predicated region
  $region38: #{_lambda_.5} parent=0 // pred_check
    _
  $region39: #{_lambda_.5} parent=0 // pred_check_branch
    %1308 = sbr.rel (0) target = $region41
  $region40: #{_lambda_.5} parent=0 // pred_region
    _
  $region41: #{_lambda_.5} parent=0 // pred_fallthru
    _

// kernel: _lambda_.3
$region0: #{_lambda_.3}
  #allocation0 [shape = 'u32[]', space=smem, size = 0x4, offset = 0x4, fixed_abs, tag = 'smem constant byte address 0x4 - core index']
  #allocation1 [shape = 'u32[144,128]{1,0:T(1,128)}', space=vmem, size = 0x12000, scoped, tag = 'internal scratch']
  %s0 = inlined_call_operand.vmem [shape: bf16[32,1280], index: 0, kind: input, shape index: {}]
  %s1 = inlined_call_operand.vmem [shape: bf16[1280,256], index: 1, kind: input, shape index: {}]
  %s2 = inlined_call_operand.vmem [shape: f32[1,256], index: 2, kind: input, shape index: {}]
  %s3 = inlined_call_operand.vmem [shape: bf16[256,768], index: 3, kind: input, shape index: {}]
  %s4 = inlined_call_operand.vmem [shape: f32[1,768], index: 4, kind: input, shape index: {}]
  %s5 = inlined_call_operand.vmem [shape: f32[32,768], index: 5, kind: output, shape index: {}]
  %s6 = sld [smem:[#allocation0]]
  $region30: #{_lambda_.3} parent=0
    _
  %s8 = ssub.s32 1, %s6
  %s9 = scalar_select 0, %s8, %s6
  // Predicated region
  $region2: #{_lambda_.3} parent=0 // pred_check
    _
  $region3: #{_lambda_.3} parent=0 // pred_check_branch
    %11 = sbr.rel (0) target = $region5
  $region4: #{_lambda_.3} parent=0 // pred_region
    _
  $region5: #{_lambda_.3} parent=0 // pred_fallthru
    _
  // Predicated region
  $region6: #{_lambda_.3} parent=0 // pred_check
    _
  $region7: #{_lambda_.3} parent=0 // pred_check_branch
    %13 = sbr.rel (0) target = $region9
  $region8: #{_lambda_.3} parent=0 // pred_region
    _
  $region9: #{_lambda_.3} parent=0 // pred_fallthru
    _
  // Predicated region
  $region10: #{_lambda_.3} parent=0 // pred_check
    _
  $region11: #{_lambda_.3} parent=0 // pred_check_branch
    %15 = sbr.rel (0) target = $region13
  $region12: #{_lambda_.3} parent=0 // pred_region
    _
  $region13: #{_lambda_.3} parent=0 // pred_fallthru
    _
  // Predicated region
  $region14: #{_lambda_.3} parent=0 // pred_check
    _
  $region15: #{_lambda_.3} parent=0 // pred_check_branch
    %17 = sbr.rel (0) target = $region17
  $region16: #{_lambda_.3} parent=0 // pred_region
    _
  $region17: #{_lambda_.3} parent=0 // pred_fallthru
    _
  // Predicated region
  $region18: #{_lambda_.3} parent=0 // pred_check
    _
  $region19: #{_lambda_.3} parent=0 // pred_check_branch
    %19 = sbr.rel (0) target = $region21
  $region20: #{_lambda_.3} parent=0 // pred_region
    _
  $region21: #{_lambda_.3} parent=0 // pred_fallthru
    _
  %v20 = vld [vmem:[%s0] sm:$0xff]
  %v21 = vld [vmem:[%s0 + $0x8] sm:$0xff]
  %v22 = vld [vmem:[%s0 + $0x10] sm:$0xff]
  %v23 = vld [vmem:[%s0 + $0x18] sm:$0xff]
  %v24 = vld [vmem:[%s0 + $0x20] sm:$0xff]
  %v25 = vld [vmem:[%s0 + $0x28] sm:$0xff]
  %v26 = vld [vmem:[%s0 + $0x30] sm:$0xff]
  %v27 = vld [vmem:[%s0 + $0x38] sm:$0xff]
  %v28 = vld [vmem:[%s0 + $0x40] sm:$0xff]
  %v29 = vld [vmem:[%s0 + $0x48] sm:$0xff]
  %v30 = vld [vmem:[%s0 + $0x50] sm:$0xff]
  %v31 = vld [vmem:[%s0 + $0x58] sm:$0xff]
  %v32 = vld [vmem:[%s0 + $0x60] sm:$0xff]
  %v33 = vld [vmem:[%s0 + $0x68] sm:$0xff]
  %v34 = vld [vmem:[%s0 + $0x70] sm:$0xff]
  %v35 = vld [vmem:[%s0 + $0x78] sm:$0xff]
  %v36 = vld [vmem:[%s0 + $0x80] sm:$0xff]
  %v37 = vld [vmem:[%s0 + $0x88] sm:$0xff]
  %v38 = vld [vmem:[%s0 + $0x90] sm:$0xff]
  %v39 = vld [vmem:[%s0 + $0x98] sm:$0xff]
  %v40 = vld [vmem:[%s1] sm:$0xff]
  %v41 = vld [vmem:[%s1 + $0x8] sm:$0xff]
  %v42 = vld [vmem:[%s1 + $0x10] sm:$0xff]
  %v43 = vld [vmem:[%s1 + $0x18] sm:$0xff]
  %v44 = vld [vmem:[%s1 + $0x20] sm:$0xff]
  %v45 = vld [vmem:[%s1 + $0x28] sm:$0xff]
  %v46 = vld [vmem:[%s1 + $0x30] sm:$0xff]
  %v47 = vld [vmem:[%s1 + $0x38] sm:$0xff]
  %v48 = vld [vmem:[%s1 + $0x40] sm:$0xff]
  %v49 = vld [vmem:[%s1 + $0x48] sm:$0xff]
  %v50 = vld [vmem:[%s1 + $0x50] sm:$0xff]
  %v51 = vld [vmem:[%s1 + $0x58] sm:$0xff]
  %v52 = vld [vmem:[%s1 + $0x60] sm:$0xff]
  %v53 = vld [vmem:[%s1 + $0x68] sm:$0xff]
  %v54 = vld [vmem:[%s1 + $0x70] sm:$0xff]
  %v55 = vld [vmem:[%s1 + $0x78] sm:$0xff]
  %v56 = vld [vmem:[%s1 + $0x80] sm:$0xff]
  %v57 = vld [vmem:[%s1 + $0x88] sm:$0xff]
  %v58 = vld [vmem:[%s1 + $0x90] sm:$0xff]
  %v59 = vld [vmem:[%s1 + $0x98] sm:$0xff]
  %v60 = vld [vmem:[%s1 + $0xa0] sm:$0xff]
  %v61 = vld [vmem:[%s1 + $0xa8] sm:$0xff]
  %v62 = vld [vmem:[%s1 + $0xb0] sm:$0xff]
  %v63 = vld [vmem:[%s1 + $0xb8] sm:$0xff]
  %v64 = vld [vmem:[%s1 + $0xc0] sm:$0xff]
  %v65 = vld [vmem:[%s1 + $0xc8] sm:$0xff]
  %v66 = vld [vmem:[%s1 + $0xd0] sm:$0xff]
  %v67 = vld [vmem:[%s1 + $0xd8] sm:$0xff]
  %v68 = vld [vmem:[%s1 + $0xe0] sm:$0xff]
  %v69 = vld [vmem:[%s1 + $0xe8] sm:$0xff]
  %v70 = vld [vmem:[%s1 + $0xf0] sm:$0xff]
  %v71 = vld [vmem:[%s1 + $0xf8] sm:$0xff]
  %v72 = vld [vmem:[%s1 + $0x100] sm:$0xff]
  %v73 = vld [vmem:[%s1 + $0x108] sm:$0xff]
  %v74 = vld [vmem:[%s1 + $0x110] sm:$0xff]
  %v75 = vld [vmem:[%s1 + $0x118] sm:$0xff]
  %v76 = vld [vmem:[%s1 + $0x120] sm:$0xff]
  %v77 = vld [vmem:[%s1 + $0x128] sm:$0xff]
  %v78 = vld [vmem:[%s1 + $0x130] sm:$0xff]
  %v79 = vld [vmem:[%s1 + $0x138] sm:$0xff]
  %v80 = vld [vmem:[%s1 + $0x140] sm:$0xff]
  %v81 = vld [vmem:[%s1 + $0x148] sm:$0xff]
  %v82 = vld [vmem:[%s1 + $0x150] sm:$0xff]
  %v83 = vld [vmem:[%s1 + $0x158] sm:$0xff]
  %v84 = vld [vmem:[%s1 + $0x160] sm:$0xff]
  %v85 = vld [vmem:[%s1 + $0x168] sm:$0xff]
  %v86 = vld [vmem:[%s1 + $0x170] sm:$0xff]
  %v87 = vld [vmem:[%s1 + $0x178] sm:$0xff]
  %v88 = vld [vmem:[%s1 + $0x180] sm:$0xff]
  %v89 = vld [vmem:[%s1 + $0x188] sm:$0xff]
  %v90 = vld [vmem:[%s1 + $0x190] sm:$0xff]
  %v91 = vld [vmem:[%s1 + $0x198] sm:$0xff]
  %v92 = vld [vmem:[%s1 + $0x1a0] sm:$0xff]
  %v93 = vld [vmem:[%s1 + $0x1a8] sm:$0xff]
  %v94 = vld [vmem:[%s1 + $0x1b0] sm:$0xff]
  %v95 = vld [vmem:[%s1 + $0x1b8] sm:$0xff]
  %v96 = vld [vmem:[%s1 + $0x1c0] sm:$0xff]
  %v97 = vld [vmem:[%s1 + $0x1c8] sm:$0xff]
  %v98 = vld [vmem:[%s1 + $0x1d0] sm:$0xff]
  %v99 = vld [vmem:[%s1 + $0x1d8] sm:$0xff]
  %v100 = vld [vmem:[%s1 + $0x1e0] sm:$0xff]
  %v101 = vld [vmem:[%s1 + $0x1e8] sm:$0xff]
  %v102 = vld [vmem:[%s1 + $0x1f0] sm:$0xff]
  %v103 = vld [vmem:[%s1 + $0x1f8] sm:$0xff]
  %v104 = vld [vmem:[%s1 + $0x200] sm:$0xff]
  %v105 = vld [vmem:[%s1 + $0x208] sm:$0xff]
  %v106 = vld [vmem:[%s1 + $0x210] sm:$0xff]
  %v107 = vld [vmem:[%s1 + $0x218] sm:$0xff]
  %v108 = vld [vmem:[%s1 + $0x220] sm:$0xff]
  %v109 = vld [vmem:[%s1 + $0x228] sm:$0xff]
  %v110 = vld [vmem:[%s1 + $0x230] sm:$0xff]
  %v111 = vld [vmem:[%s1 + $0x238] sm:$0xff]
  %v112 = vld [vmem:[%s1 + $0x240] sm:$0xff]
  %v113 = vld [vmem:[%s1 + $0x248] sm:$0xff]
  %v114 = vld [vmem:[%s1 + $0x250] sm:$0xff]
  %v115 = vld [vmem:[%s1 + $0x258] sm:$0xff]
  %v116 = vld [vmem:[%s1 + $0x260] sm:$0xff]
  %v117 = vld [vmem:[%s1 + $0x268] sm:$0xff]
  %v118 = vld [vmem:[%s1 + $0x270] sm:$0xff]
  %v119 = vld [vmem:[%s1 + $0x278] sm:$0xff]
  %v120 = vld [vmem:[%s1 + $0x280] sm:$0xff]
  %v121 = vld [vmem:[%s1 + $0x288] sm:$0xff]
  %v122 = vld [vmem:[%s1 + $0x290] sm:$0xff]
  %v123 = vld [vmem:[%s1 + $0x298] sm:$0xff]
  %v124 = vld [vmem:[%s1 + $0x2a0] sm:$0xff]
  %v125 = vld [vmem:[%s1 + $0x2a8] sm:$0xff]
  %v126 = vld [vmem:[%s1 + $0x2b0] sm:$0xff]
  %v127 = vld [vmem:[%s1 + $0x2b8] sm:$0xff]
  %v128 = vld [vmem:[%s1 + $0x2c0] sm:$0xff]
  %v129 = vld [vmem:[%s1 + $0x2c8] sm:$0xff]
  %v130 = vld [vmem:[%s1 + $0x2d0] sm:$0xff]
  %v131 = vld [vmem:[%s1 + $0x2d8] sm:$0xff]
  %v132 = vld [vmem:[%s1 + $0x2e0] sm:$0xff]
  %v133 = vld [vmem:[%s1 + $0x2e8] sm:$0xff]
  %v134 = vld [vmem:[%s1 + $0x2f0] sm:$0xff]
  %v135 = vld [vmem:[%s1 + $0x2f8] sm:$0xff]
  %v136 = vld [vmem:[%s1 + $0x300] sm:$0xff]
  %v137 = vld [vmem:[%s1 + $0x308] sm:$0xff]
  %v138 = vld [vmem:[%s1 + $0x310] sm:$0xff]
  %v139 = vld [vmem:[%s1 + $0x318] sm:$0xff]
  %v140 = vld [vmem:[%s1 + $0x320] sm:$0xff]
  %v141 = vld [vmem:[%s1 + $0x328] sm:$0xff]
  %v142 = vld [vmem:[%s1 + $0x330] sm:$0xff]
  %v143 = vld [vmem:[%s1 + $0x338] sm:$0xff]
  %v144 = vld [vmem:[%s1 + $0x340] sm:$0xff]
  %v145 = vld [vmem:[%s1 + $0x348] sm:$0xff]
  %v146 = vld [vmem:[%s1 + $0x350] sm:$0xff]
  %v147 = vld [vmem:[%s1 + $0x358] sm:$0xff]
  %v148 = vld [vmem:[%s1 + $0x360] sm:$0xff]
  %v149 = vld [vmem:[%s1 + $0x368] sm:$0xff]
  %v150 = vld [vmem:[%s1 + $0x370] sm:$0xff]
  %v151 = vld [vmem:[%s1 + $0x378] sm:$0xff]
  %v152 = vld [vmem:[%s1 + $0x380] sm:$0xff]
  %v153 = vld [vmem:[%s1 + $0x388] sm:$0xff]
  %v154 = vld [vmem:[%s1 + $0x390] sm:$0xff]
  %v155 = vld [vmem:[%s1 + $0x398] sm:$0xff]
  %v156 = vld [vmem:[%s1 + $0x3a0] sm:$0xff]
  %v157 = vld [vmem:[%s1 + $0x3a8] sm:$0xff]
  %v158 = vld [vmem:[%s1 + $0x3b0] sm:$0xff]
  %v159 = vld [vmem:[%s1 + $0x3b8] sm:$0xff]
  %v160 = vld [vmem:[%s1 + $0x3c0] sm:$0xff]
  %v161 = vld [vmem:[%s1 + $0x3c8] sm:$0xff]
  %v162 = vld [vmem:[%s1 + $0x3d0] sm:$0xff]
  %v163 = vld [vmem:[%s1 + $0x3d8] sm:$0xff]
  %v164 = vld [vmem:[%s1 + $0x3e0] sm:$0xff]
  %v165 = vld [vmem:[%s1 + $0x3e8] sm:$0xff]
  %v166 = vld [vmem:[%s1 + $0x3f0] sm:$0xff]
  %v167 = vld [vmem:[%s1 + $0x3f8] sm:$0xff]
  %v168 = vld [vmem:[%s1 + $0x400] sm:$0xff]
  %v169 = vld [vmem:[%s1 + $0x408] sm:$0xff]
  %v170 = vld [vmem:[%s1 + $0x410] sm:$0xff]
  %v171 = vld [vmem:[%s1 + $0x418] sm:$0xff]
  %v172 = vld [vmem:[%s1 + $0x420] sm:$0xff]
  %v173 = vld [vmem:[%s1 + $0x428] sm:$0xff]
  %v174 = vld [vmem:[%s1 + $0x430] sm:$0xff]
  %v175 = vld [vmem:[%s1 + $0x438] sm:$0xff]
  %v176 = vld [vmem:[%s1 + $0x440] sm:$0xff]
  %v177 = vld [vmem:[%s1 + $0x448] sm:$0xff]
  %v178 = vld [vmem:[%s1 + $0x450] sm:$0xff]
  %v179 = vld [vmem:[%s1 + $0x458] sm:$0xff]
  %v180 = vld [vmem:[%s1 + $0x460] sm:$0xff]
  %v181 = vld [vmem:[%s1 + $0x468] sm:$0xff]
  %v182 = vld [vmem:[%s1 + $0x470] sm:$0xff]
  %v183 = vld [vmem:[%s1 + $0x478] sm:$0xff]
  %v184 = vld [vmem:[%s1 + $0x480] sm:$0xff]
  %v185 = vld [vmem:[%s1 + $0x488] sm:$0xff]
  %v186 = vld [vmem:[%s1 + $0x490] sm:$0xff]
  %v187 = vld [vmem:[%s1 + $0x498] sm:$0xff]
  %v188 = vld [vmem:[%s1 + $0x4a0] sm:$0xff]
  %v189 = vld [vmem:[%s1 + $0x4a8] sm:$0xff]
  %v190 = vld [vmem:[%s1 + $0x4b0] sm:$0xff]
  %v191 = vld [vmem:[%s1 + $0x4b8] sm:$0xff]
  %v192 = vld [vmem:[%s1 + $0x4c0] sm:$0xff]
  %v193 = vld [vmem:[%s1 + $0x4c8] sm:$0xff]
  %v194 = vld [vmem:[%s1 + $0x4d0] sm:$0xff]
  %v195 = vld [vmem:[%s1 + $0x4d8] sm:$0xff]
  %v196 = vld [vmem:[%s1 + $0x4e0] sm:$0xff]
  %v197 = vld [vmem:[%s1 + $0x4e8] sm:$0xff]
  %v198 = vld [vmem:[%s1 + $0x4f0] sm:$0xff]
  %v199 = vld [vmem:[%s1 + $0x4f8] sm:$0xff]
  %v200 = vld [vmem:[%s2] sm:$0x3]
  %v202 = vlaneseq
  %v203 = vshrl.u32 %v202, 7
  %v204 = vsub.s32 0, %v203
  %v205 = vrot.slane %v200, %v204
  %v206 = vlaneseq
  %v207 = vshrl.u32 %v206, 7
  %v208 = vsub.s32 1, %v207
  %v209 = vrot.slane %v200, %v208
  %v232 = vunpack.c.l.b16 %v20
  %v233 = vunpack.c.h.b16 %v20
  %v234 = vunpack.c.l.b16 %v21
  %v235 = vunpack.c.h.b16 %v21
  %v236 = vunpack.c.l.b16 %v22
  %v237 = vunpack.c.h.b16 %v22
  %v238 = vunpack.c.l.b16 %v23
  %v239 = vunpack.c.h.b16 %v23
  %v240 = vunpack.c.l.b16 %v24
  %v241 = vunpack.c.h.b16 %v24
  %v242 = vunpack.c.l.b16 %v25
  %v243 = vunpack.c.h.b16 %v25
  %v244 = vunpack.c.l.b16 %v26
  %v245 = vunpack.c.h.b16 %v26
  %v246 = vunpack.c.l.b16 %v27
  %v247 = vunpack.c.h.b16 %v27
  %v248 = vunpack.c.l.b16 %v28
  %v249 = vunpack.c.h.b16 %v28
  %v250 = vunpack.c.l.b16 %v29
  %v251 = vunpack.c.h.b16 %v29
  %v252 = vunpack.c.l.b16 %v30
  %v253 = vunpack.c.h.b16 %v30
  %v254 = vunpack.c.l.b16 %v31
  %v255 = vunpack.c.h.b16 %v31
  %v256 = vunpack.c.l.b16 %v32
  %v257 = vunpack.c.h.b16 %v32
  %v258 = vunpack.c.l.b16 %v33
  %v259 = vunpack.c.h.b16 %v33
  %v260 = vunpack.c.l.b16 %v34
  %v261 = vunpack.c.h.b16 %v34
  %v262 = vunpack.c.l.b16 %v35
  %v263 = vunpack.c.h.b16 %v35
  %v264 = vunpack.c.l.b16 %v36
  %v265 = vunpack.c.h.b16 %v36
  %v266 = vunpack.c.l.b16 %v37
  %v267 = vunpack.c.h.b16 %v37
  %v268 = vunpack.c.l.b16 %v38
  %v269 = vunpack.c.h.b16 %v38
  %v270 = vunpack.c.l.b16 %v39
  %v271 = vunpack.c.h.b16 %v39
  %v272 = vpack.c.b16 %v242, %v232
  %v273 = vpack.c.b16 %v243, %v233
  %v274 = vpack.c.b16 %v244, %v234
  %v275 = vpack.c.b16 %v245, %v235
  %v276 = vpack.c.b16 %v246, %v236
  %v277 = vpack.c.b16 %v247, %v237
  %v278 = vpack.c.b16 %v248, %v238
  %v279 = vpack.c.b16 %v249, %v239
  %v280 = vpack.c.b16 %v250, %v240
  %v281 = vpack.c.b16 %v251, %v241
  %v282 = vpack.c.b16 %v262, %v252
  %v283 = vpack.c.b16 %v263, %v253
  %v284 = vpack.c.b16 %v264, %v254
  %v285 = vpack.c.b16 %v265, %v255
  %v286 = vpack.c.b16 %v266, %v256
  %v287 = vpack.c.b16 %v267, %v257
  %v288 = vpack.c.b16 %v268, %v258
  %v289 = vpack.c.b16 %v269, %v259
  %v290 = vpack.c.b16 %v270, %v260
  %v291 = vpack.c.b16 %v271, %v261
  %v472 = vunpack.c.l.b16 %v40
  %v473 = vunpack.c.h.b16 %v40
  %v474 = vunpack.c.l.b16 %v41
  %v475 = vunpack.c.h.b16 %v41
  %v476 = vunpack.c.l.b16 %v42
  %v477 = vunpack.c.h.b16 %v42
  %v478 = vunpack.c.l.b16 %v43
  %v479 = vunpack.c.h.b16 %v43
  %v480 = vunpack.c.l.b16 %v44
  %v481 = vunpack.c.h.b16 %v44
  %v482 = vunpack.c.l.b16 %v45
  %v483 = vunpack.c.h.b16 %v45
  %v484 = vunpack.c.l.b16 %v46
  %v485 = vunpack.c.h.b16 %v46
  %v486 = vunpack.c.l.b16 %v47
  %v487 = vunpack.c.h.b16 %v47
  %v488 = vunpack.c.l.b16 %v48
  %v489 = vunpack.c.h.b16 %v48
  %v490 = vunpack.c.l.b16 %v49
  %v491 = vunpack.c.h.b16 %v49
  %v492 = vunpack.c.l.b16 %v50
  %v493 = vunpack.c.h.b16 %v50
  %v494 = vunpack.c.l.b16 %v51
  %v495 = vunpack.c.h.b16 %v51
  %v496 = vunpack.c.l.b16 %v52
  %v497 = vunpack.c.h.b16 %v52
  %v498 = vunpack.c.l.b16 %v53
  %v499 = vunpack.c.h.b16 %v53
  %v500 = vunpack.c.l.b16 %v54
  %v501 = vunpack.c.h.b16 %v54
  %v502 = vunpack.c.l.b16 %v55
  %v503 = vunpack.c.h.b16 %v55
  %v504 = vunpack.c.l.b16 %v56
  %v505 = vunpack.c.h.b16 %v56
  %v506 = vunpack.c.l.b16 %v57
  %v507 = vunpack.c.h.b16 %v57
  %v508 = vunpack.c.l.b16 %v58
  %v509 = vunpack.c.h.b16 %v58
  %v510 = vunpack.c.l.b16 %v59
  %v511 = vunpack.c.h.b16 %v59
  %v512 = vunpack.c.l.b16 %v60
  %v513 = vunpack.c.h.b16 %v60
  %v514 = vunpack.c.l.b16 %v61
  %v515 = vunpack.c.h.b16 %v61
  %v516 = vunpack.c.l.b16 %v62
  %v517 = vunpack.c.h.b16 %v62
  %v518 = vunpack.c.l.b16 %v63
  %v519 = vunpack.c.h.b16 %v63
  %v520 = vunpack.c.l.b16 %v64
  %v521 = vunpack.c.h.b16 %v64
  %v522 = vunpack.c.l.b16 %v65
  %v523 = vunpack.c.h.b16 %v65
  %v524 = vunpack.c.l.b16 %v66
  %v525 = vunpack.c.h.b16 %v66
  %v526 = vunpack.c.l.b16 %v67
  %v527 = vunpack.c.h.b16 %v67
  %v528 = vunpack.c.l.b16 %v68
  %v529 = vunpack.c.h.b16 %v68
  %v530 = vunpack.c.l.b16 %v69
  %v531 = vunpack.c.h.b16 %v69
  %v532 = vunpack.c.l.b16 %v70
  %v533 = vunpack.c.h.b16 %v70
  %v534 = vunpack.c.l.b16 %v71
  %v535 = vunpack.c.h.b16 %v71
  %v536 = vunpack.c.l.b16 %v72
  %v537 = vunpack.c.h.b16 %v72
  %v538 = vunpack.c.l.b16 %v73
  %v539 = vunpack.c.h.b16 %v73
  %v540 = vunpack.c.l.b16 %v74
  %v541 = vunpack.c.h.b16 %v74
  %v542 = vunpack.c.l.b16 %v75
  %v543 = vunpack.c.h.b16 %v75
  %v544 = vunpack.c.l.b16 %v76
  %v545 = vunpack.c.h.b16 %v76
  %v546 = vunpack.c.l.b16 %v77
  %v547 = vunpack.c.h.b16 %v77
  %v548 = vunpack.c.l.b16 %v78
  %v549 = vunpack.c.h.b16 %v78
  %v550 = vunpack.c.l.b16 %v79
  %v551 = vunpack.c.h.b16 %v79
  %v552 = vunpack.c.l.b16 %v80
  %v553 = vunpack.c.h.b16 %v80
  %v554 = vunpack.c.l.b16 %v81
  %v555 = vunpack.c.h.b16 %v81
  %v556 = vunpack.c.l.b16 %v82
  %v557 = vunpack.c.h.b16 %v82
  %v558 = vunpack.c.l.b16 %v83
  %v559 = vunpack.c.h.b16 %v83
  %v560 = vunpack.c.l.b16 %v84
  %v561 = vunpack.c.h.b16 %v84
  %v562 = vunpack.c.l.b16 %v85
  %v563 = vunpack.c.h.b16 %v85
  %v564 = vunpack.c.l.b16 %v86
  %v565 = vunpack.c.h.b16 %v86
  %v566 = vunpack.c.l.b16 %v87
  %v567 = vunpack.c.h.b16 %v87
  %v568 = vunpack.c.l.b16 %v88
  %v569 = vunpack.c.h.b16 %v88
  %v570 = vunpack.c.l.b16 %v89
  %v571 = vunpack.c.h.b16 %v89
  %v572 = vunpack.c.l.b16 %v90
  %v573 = vunpack.c.h.b16 %v90
  %v574 = vunpack.c.l.b16 %v91
  %v575 = vunpack.c.h.b16 %v91
  %v576 = vunpack.c.l.b16 %v92
  %v577 = vunpack.c.h.b16 %v92
  %v578 = vunpack.c.l.b16 %v93
  %v579 = vunpack.c.h.b16 %v93
  %v580 = vunpack.c.l.b16 %v94
  %v581 = vunpack.c.h.b16 %v94
  %v582 = vunpack.c.l.b16 %v95
  %v583 = vunpack.c.h.b16 %v95
  %v584 = vunpack.c.l.b16 %v96
  %v585 = vunpack.c.h.b16 %v96
  %v586 = vunpack.c.l.b16 %v97
  %v587 = vunpack.c.h.b16 %v97
  %v588 = vunpack.c.l.b16 %v98
  %v589 = vunpack.c.h.b16 %v98
  %v590 = vunpack.c.l.b16 %v99
  %v591 = vunpack.c.h.b16 %v99
  %v592 = vunpack.c.l.b16 %v100
  %v593 = vunpack.c.h.b16 %v100
  %v594 = vunpack.c.l.b16 %v101
  %v595 = vunpack.c.h.b16 %v101
  %v596 = vunpack.c.l.b16 %v102
  %v597 = vunpack.c.h.b16 %v102
  %v598 = vunpack.c.l.b16 %v103
  %v599 = vunpack.c.h.b16 %v103
  %v600 = vunpack.c.l.b16 %v104
  %v601 = vunpack.c.h.b16 %v104
  %v602 = vunpack.c.l.b16 %v105
  %v603 = vunpack.c.h.b16 %v105
  %v604 = vunpack.c.l.b16 %v106
  %v605 = vunpack.c.h.b16 %v106
  %v606 = vunpack.c.l.b16 %v107
  %v607 = vunpack.c.h.b16 %v107
  %v608 = vunpack.c.l.b16 %v108
  %v609 = vunpack.c.h.b16 %v108
  %v610 = vunpack.c.l.b16 %v109
  %v611 = vunpack.c.h.b16 %v109
  %v612 = vunpack.c.l.b16 %v110
  %v613 = vunpack.c.h.b16 %v110
  %v614 = vunpack.c.l.b16 %v111
  %v615 = vunpack.c.h.b16 %v111
  %v616 = vunpack.c.l.b16 %v112
  %v617 = vunpack.c.h.b16 %v112
  %v618 = vunpack.c.l.b16 %v113
  %v619 = vunpack.c.h.b16 %v113
  %v620 = vunpack.c.l.b16 %v114
  %v621 = vunpack.c.h.b16 %v114
  %v622 = vunpack.c.l.b16 %v115
  %v623 = vunpack.c.h.b16 %v115
  %v624 = vunpack.c.l.b16 %v116
  %v625 = vunpack.c.h.b16 %v116
  %v626 = vunpack.c.l.b16 %v117
  %v627 = vunpack.c.h.b16 %v117
  %v628 = vunpack.c.l.b16 %v118
  %v629 = vunpack.c.h.b16 %v118
  %v630 = vunpack.c.l.b16 %v119
  %v631 = vunpack.c.h.b16 %v119
  %v632 = vunpack.c.l.b16 %v120
  %v633 = vunpack.c.h.b16 %v120
  %v634 = vunpack.c.l.b16 %v121
  %v635 = vunpack.c.h.b16 %v121
  %v636 = vunpack.c.l.b16 %v122
  %v637 = vunpack.c.h.b16 %v122
  %v638 = vunpack.c.l.b16 %v123
  %v639 = vunpack.c.h.b16 %v123
  %v640 = vunpack.c.l.b16 %v124
  %v641 = vunpack.c.h.b16 %v124
  %v642 = vunpack.c.l.b16 %v125
  %v643 = vunpack.c.h.b16 %v125
  %v644 = vunpack.c.l.b16 %v126
  %v645 = vunpack.c.h.b16 %v126
  %v646 = vunpack.c.l.b16 %v127
  %v647 = vunpack.c.h.b16 %v127
  %v648 = vunpack.c.l.b16 %v128
  %v649 = vunpack.c.h.b16 %v128
  %v650 = vunpack.c.l.b16 %v129
  %v651 = vunpack.c.h.b16 %v129
  %v652 = vunpack.c.l.b16 %v130
  %v653 = vunpack.c.h.b16 %v130
  %v654 = vunpack.c.l.b16 %v131
  %v655 = vunpack.c.h.b16 %v131
  %v656 = vunpack.c.l.b16 %v132
  %v657 = vunpack.c.h.b16 %v132
  %v658 = vunpack.c.l.b16 %v133
  %v659 = vunpack.c.h.b16 %v133
  %v660 = vunpack.c.l.b16 %v134
  %v661 = vunpack.c.h.b16 %v134
  %v662 = vunpack.c.l.b16 %v135
  %v663 = vunpack.c.h.b16 %v135
  %v664 = vunpack.c.l.b16 %v136
  %v665 = vunpack.c.h.b16 %v136
  %v666 = vunpack.c.l.b16 %v137
  %v667 = vunpack.c.h.b16 %v137
  %v668 = vunpack.c.l.b16 %v138
  %v669 = vunpack.c.h.b16 %v138
  %v670 = vunpack.c.l.b16 %v139
  %v671 = vunpack.c.h.b16 %v139
  %v672 = vunpack.c.l.b16 %v140
  %v673 = vunpack.c.h.b16 %v140
  %v674 = vunpack.c.l.b16 %v141
  %v675 = vunpack.c.h.b16 %v141
  %v676 = vunpack.c.l.b16 %v142
  %v677 = vunpack.c.h.b16 %v142
  %v678 = vunpack.c.l.b16 %v143
  %v679 = vunpack.c.h.b16 %v143
  %v680 = vunpack.c.l.b16 %v144
  %v681 = vunpack.c.h.b16 %v144
  %v682 = vunpack.c.l.b16 %v145
  %v683 = vunpack.c.h.b16 %v145
  %v684 = vunpack.c.l.b16 %v146
  %v685 = vunpack.c.h.b16 %v146
  %v686 = vunpack.c.l.b16 %v147
  %v687 = vunpack.c.h.b16 %v147
  %v688 = vunpack.c.l.b16 %v148
  %v689 = vunpack.c.h.b16 %v148
  %v690 = vunpack.c.l.b16 %v149
  %v691 = vunpack.c.h.b16 %v149
  %v692 = vunpack.c.l.b16 %v150
  %v693 = vunpack.c.h.b16 %v150
  %v694 = vunpack.c.l.b16 %v151
  %v695 = vunpack.c.h.b16 %v151
  %v696 = vunpack.c.l.b16 %v152
  %v697 = vunpack.c.h.b16 %v152
  %v698 = vunpack.c.l.b16 %v153
  %v699 = vunpack.c.h.b16 %v153
  %v700 = vunpack.c.l.b16 %v154
  %v701 = vunpack.c.h.b16 %v154
  %v702 = vunpack.c.l.b16 %v155
  %v703 = vunpack.c.h.b16 %v155
  %v704 = vunpack.c.l.b16 %v156
  %v705 = vunpack.c.h.b16 %v156
  %v706 = vunpack.c.l.b16 %v157
  %v707 = vunpack.c.h.b16 %v157
  %v708 = vunpack.c.l.b16 %v158
  %v709 = vunpack.c.h.b16 %v158
  %v710 = vunpack.c.l.b16 %v159
  %v711 = vunpack.c.h.b16 %v159
  %v712 = vunpack.c.l.b16 %v160
  %v713 = vunpack.c.h.b16 %v160
  %v714 = vunpack.c.l.b16 %v161
  %v715 = vunpack.c.h.b16 %v161
  %v716 = vunpack.c.l.b16 %v162
  %v717 = vunpack.c.h.b16 %v162
  %v718 = vunpack.c.l.b16 %v163
  %v719 = vunpack.c.h.b16 %v163
  %v720 = vunpack.c.l.b16 %v164
  %v721 = vunpack.c.h.b16 %v164
  %v722 = vunpack.c.l.b16 %v165
  %v723 = vunpack.c.h.b16 %v165
  %v724 = vunpack.c.l.b16 %v166
  %v725 = vunpack.c.h.b16 %v166
  %v726 = vunpack.c.l.b16 %v167
  %v727 = vunpack.c.h.b16 %v167
  %v728 = vunpack.c.l.b16 %v168
  %v729 = vunpack.c.h.b16 %v168
  %v730 = vunpack.c.l.b16 %v169
  %v731 = vunpack.c.h.b16 %v169
  %v732 = vunpack.c.l.b16 %v170
  %v733 = vunpack.c.h.b16 %v170
  %v734 = vunpack.c.l.b16 %v171
  %v735 = vunpack.c.h.b16 %v171
  %v736 = vunpack.c.l.b16 %v172
  %v737 = vunpack.c.h.b16 %v172
  %v738 = vunpack.c.l.b16 %v173
  %v739 = vunpack.c.h.b16 %v173
  %v740 = vunpack.c.l.b16 %v174
  %v741 = vunpack.c.h.b16 %v174
  %v742 = vunpack.c.l.b16 %v175
  %v743 = vunpack.c.h.b16 %v175
  %v744 = vunpack.c.l.b16 %v176
  %v745 = vunpack.c.h.b16 %v176
  %v746 = vunpack.c.l.b16 %v177
  %v747 = vunpack.c.h.b16 %v177
  %v748 = vunpack.c.l.b16 %v178
  %v749 = vunpack.c.h.b16 %v178
  %v750 = vunpack.c.l.b16 %v179
  %v751 = vunpack.c.h.b16 %v179
  %v752 = vunpack.c.l.b16 %v180
  %v753 = vunpack.c.h.b16 %v180
  %v754 = vunpack.c.l.b16 %v181
  %v755 = vunpack.c.h.b16 %v181
  %v756 = vunpack.c.l.b16 %v182
  %v757 = vunpack.c.h.b16 %v182
  %v758 = vunpack.c.l.b16 %v183
  %v759 = vunpack.c.h.b16 %v183
  %v760 = vunpack.c.l.b16 %v184
  %v761 = vunpack.c.h.b16 %v184
  %v762 = vunpack.c.l.b16 %v185
  %v763 = vunpack.c.h.b16 %v185
  %v764 = vunpack.c.l.b16 %v186
  %v765 = vunpack.c.h.b16 %v186
  %v766 = vunpack.c.l.b16 %v187
  %v767 = vunpack.c.h.b16 %v187
  %v768 = vunpack.c.l.b16 %v188
  %v769 = vunpack.c.h.b16 %v188
  %v770 = vunpack.c.l.b16 %v189
  %v771 = vunpack.c.h.b16 %v189
  %v772 = vunpack.c.l.b16 %v190
  %v773 = vunpack.c.h.b16 %v190
  %v774 = vunpack.c.l.b16 %v191
  %v775 = vunpack.c.h.b16 %v191
  %v776 = vunpack.c.l.b16 %v192
  %v777 = vunpack.c.h.b16 %v192
  %v778 = vunpack.c.l.b16 %v193
  %v779 = vunpack.c.h.b16 %v193
  %v780 = vunpack.c.l.b16 %v194
  %v781 = vunpack.c.h.b16 %v194
  %v782 = vunpack.c.l.b16 %v195
  %v783 = vunpack.c.h.b16 %v195
  %v784 = vunpack.c.l.b16 %v196
  %v785 = vunpack.c.h.b16 %v196
  %v786 = vunpack.c.l.b16 %v197
  %v787 = vunpack.c.h.b16 %v197
  %v788 = vunpack.c.l.b16 %v198
  %v789 = vunpack.c.h.b16 %v198
  %v790 = vunpack.c.l.b16 %v199
  %v791 = vunpack.c.h.b16 %v199
  %v792 = vpack.c.b16 %v474, %v472
  %v793 = vpack.c.b16 %v475, %v473
  %v794 = vpack.c.b16 %v478, %v476
  %v795 = vpack.c.b16 %v479, %v477
  %v796 = vpack.c.b16 %v482, %v480
  %v797 = vpack.c.b16 %v483, %v481
  %v798 = vpack.c.b16 %v486, %v484
  %v799 = vpack.c.b16 %v487, %v485
  %v800 = vpack.c.b16 %v490, %v488
  %v801 = vpack.c.b16 %v491, %v489
  %v802 = vpack.c.b16 %v494, %v492
  %v803 = vpack.c.b16 %v495, %v493
  %v804 = vpack.c.b16 %v498, %v496
  %v805 = vpack.c.b16 %v499, %v497
  %v806 = vpack.c.b16 %v502, %v500
  %v807 = vpack.c.b16 %v503, %v501
  %v808 = vpack.c.b16 %v506, %v504
  %v809 = vpack.c.b16 %v507, %v505
  %v810 = vpack.c.b16 %v510, %v508
  %v811 = vpack.c.b16 %v511, %v509
  %v812 = vpack.c.b16 %v514, %v512
  %v813 = vpack.c.b16 %v515, %v513
  %v814 = vpack.c.b16 %v518, %v516
  %v815 = vpack.c.b16 %v519, %v517
  %v816 = vpack.c.b16 %v522, %v520
  %v817 = vpack.c.b16 %v523, %v521
  %v818 = vpack.c.b16 %v526, %v524
  %v819 = vpack.c.b16 %v527, %v525
  %v820 = vpack.c.b16 %v530, %v528
  %v821 = vpack.c.b16 %v531, %v529
  %v822 = vpack.c.b16 %v534, %v532
  %v823 = vpack.c.b16 %v535, %v533
  %v824 = vpack.c.b16 %v538, %v536
  %v825 = vpack.c.b16 %v539, %v537
  %v826 = vpack.c.b16 %v542, %v540
  %v827 = vpack.c.b16 %v543, %v541
  %v828 = vpack.c.b16 %v546, %v544
  %v829 = vpack.c.b16 %v547, %v545
  %v830 = vpack.c.b16 %v550, %v548
  %v831 = vpack.c.b16 %v551, %v549
  %v832 = vpack.c.b16 %v554, %v552
  %v833 = vpack.c.b16 %v555, %v553
  %v834 = vpack.c.b16 %v558, %v556
  %v835 = vpack.c.b16 %v559, %v557
  %v836 = vpack.c.b16 %v562, %v560
  %v837 = vpack.c.b16 %v563, %v561
  %v838 = vpack.c.b16 %v566, %v564
  %v839 = vpack.c.b16 %v567, %v565
  %v840 = vpack.c.b16 %v570, %v568
  %v841 = vpack.c.b16 %v571, %v569
  %v842 = vpack.c.b16 %v574, %v572
  %v843 = vpack.c.b16 %v575, %v573
  %v844 = vpack.c.b16 %v578, %v576
  %v845 = vpack.c.b16 %v579, %v577
  %v846 = vpack.c.b16 %v582, %v580
  %v847 = vpack.c.b16 %v583, %v581
  %v848 = vpack.c.b16 %v586, %v584
  %v849 = vpack.c.b16 %v587, %v585
  %v850 = vpack.c.b16 %v590, %v588
  %v851 = vpack.c.b16 %v591, %v589
  %v852 = vpack.c.b16 %v594, %v592
  %v853 = vpack.c.b16 %v595, %v593
  %v854 = vpack.c.b16 %v598, %v596
  %v855 = vpack.c.b16 %v599, %v597
  %v856 = vpack.c.b16 %v602, %v600
  %v857 = vpack.c.b16 %v603, %v601
  %v858 = vpack.c.b16 %v606, %v604
  %v859 = vpack.c.b16 %v607, %v605
  %v860 = vpack.c.b16 %v610, %v608
  %v861 = vpack.c.b16 %v611, %v609
  %v862 = vpack.c.b16 %v614, %v612
  %v863 = vpack.c.b16 %v615, %v613
  %v864 = vpack.c.b16 %v618, %v616
  %v865 = vpack.c.b16 %v619, %v617
  %v866 = vpack.c.b16 %v622, %v620
  %v867 = vpack.c.b16 %v623, %v621
  %v868 = vpack.c.b16 %v626, %v624
  %v869 = vpack.c.b16 %v627, %v625
  %v870 = vpack.c.b16 %v630, %v628
  %v871 = vpack.c.b16 %v631, %v629
  %v872 = vpack.c.b16 %v634, %v632
  %v873 = vpack.c.b16 %v635, %v633
  %v874 = vpack.c.b16 %v638, %v636
  %v875 = vpack.c.b16 %v639, %v637
  %v876 = vpack.c.b16 %v642, %v640
  %v877 = vpack.c.b16 %v643, %v641
  %v878 = vpack.c.b16 %v646, %v644
  %v879 = vpack.c.b16 %v647, %v645
  %v880 = vpack.c.b16 %v650, %v648
  %v881 = vpack.c.b16 %v651, %v649
  %v882 = vpack.c.b16 %v654, %v652
  %v883 = vpack.c.b16 %v655, %v653
  %v884 = vpack.c.b16 %v658, %v656
  %v885 = vpack.c.b16 %v659, %v657
  %v886 = vpack.c.b16 %v662, %v660
  %v887 = vpack.c.b16 %v663, %v661
  %v888 = vpack.c.b16 %v666, %v664
  %v889 = vpack.c.b16 %v667, %v665
  %v890 = vpack.c.b16 %v670, %v668
  %v891 = vpack.c.b16 %v671, %v669
  %v892 = vpack.c.b16 %v674, %v672
  %v893 = vpack.c.b16 %v675, %v673
  %v894 = vpack.c.b16 %v678, %v676
  %v895 = vpack.c.b16 %v679, %v677
  %v896 = vpack.c.b16 %v682, %v680
  %v897 = vpack.c.b16 %v683, %v681
  %v898 = vpack.c.b16 %v686, %v684
  %v899 = vpack.c.b16 %v687, %v685
  %v900 = vpack.c.b16 %v690, %v688
  %v901 = vpack.c.b16 %v691, %v689
  %v902 = vpack.c.b16 %v694, %v692
  %v903 = vpack.c.b16 %v695, %v693
  %v904 = vpack.c.b16 %v698, %v696
  %v905 = vpack.c.b16 %v699, %v697
  %v906 = vpack.c.b16 %v702, %v700
  %v907 = vpack.c.b16 %v703, %v701
  %v908 = vpack.c.b16 %v706, %v704
  %v909 = vpack.c.b16 %v707, %v705
  %v910 = vpack.c.b16 %v710, %v708
  %v911 = vpack.c.b16 %v711, %v709
  %v912 = vpack.c.b16 %v714, %v712
  %v913 = vpack.c.b16 %v715, %v713
  %v914 = vpack.c.b16 %v718, %v716
  %v915 = vpack.c.b16 %v719, %v717
  %v916 = vpack.c.b16 %v722, %v720
  %v917 = vpack.c.b16 %v723, %v721
  %v918 = vpack.c.b16 %v726, %v724
  %v919 = vpack.c.b16 %v727, %v725
  %v920 = vpack.c.b16 %v730, %v728
  %v921 = vpack.c.b16 %v731, %v729
  %v922 = vpack.c.b16 %v734, %v732
  %v923 = vpack.c.b16 %v735, %v733
  %v924 = vpack.c.b16 %v738, %v736
  %v925 = vpack.c.b16 %v739, %v737
  %v926 = vpack.c.b16 %v742, %v740
  %v927 = vpack.c.b16 %v743, %v741
  %v928 = vpack.c.b16 %v746, %v744
  %v929 = vpack.c.b16 %v747, %v745
  %v930 = vpack.c.b16 %v750, %v748
  %v931 = vpack.c.b16 %v751, %v749
  %v932 = vpack.c.b16 %v754, %v752
  %v933 = vpack.c.b16 %v755, %v753
  %v934 = vpack.c.b16 %v758, %v756
  %v935 = vpack.c.b16 %v759, %v757
  %v936 = vpack.c.b16 %v762, %v760
  %v937 = vpack.c.b16 %v763, %v761
  %v938 = vpack.c.b16 %v766, %v764
  %v939 = vpack.c.b16 %v767, %v765
  %v940 = vpack.c.b16 %v770, %v768
  %v941 = vpack.c.b16 %v771, %v769
  %v942 = vpack.c.b16 %v774, %v772
  %v943 = vpack.c.b16 %v775, %v773
  %v944 = vpack.c.b16 %v778, %v776
  %v945 = vpack.c.b16 %v779, %v777
  %v946 = vpack.c.b16 %v782, %v780
  %v947 = vpack.c.b16 %v783, %v781
  %v948 = vpack.c.b16 %v786, %v784
  %v949 = vpack.c.b16 %v787, %v785
  %v950 = vpack.c.b16 %v790, %v788
  %v951 = vpack.c.b16 %v791, %v789
  %1112 = vmatprep.subr.bf16.mxu0 %v793
  %1113 = vmatpush1.bf16.msra.mxu0 %v792
  %1114 = vmatprep.subr.bf16.mxu0 %v795
  %1115 = vmatpush1.bf16.msra.mxu0 %v794
  %1116 = vmatprep.subr.bf16.mxu0 %v797
  %1117 = vmatpush1.bf16.msra.mxu0 %v796
  %1118 = vmatprep.subr.bf16.mxu0 %v799
  %1119 = vmatpush1.bf16.msra.mxu0 %v798
  %1120 = vmatprep.subr.bf16.mxu0 %v801
  %1121 = vmatpush1.bf16.msra.mxu0 %v800
  %1122 = vmatprep.subr.bf16.mxu0 %v803
  %1123 = vmatpush1.bf16.msra.mxu0 %v802
  %1124 = vmatprep.subr.bf16.mxu0 %v805
  %1125 = vmatpush1.bf16.msra.mxu0 %v804
  %1126 = vmatprep.subr.bf16.mxu0 %v807
  %1127 = vmatpush1.bf16.msra.mxu0 %v806
  %1128 = vmatprep.subr.bf16.mxu0 %v809
  %1129 = vmatpush1.bf16.msra.mxu0 %v808
  %1130 = vmatprep.subr.bf16.mxu0 %v811
  %1131 = vmatpush1.bf16.msra.mxu0 %v810
  %1132 = vmatprep.subr.bf16.mxu0 %v813
  %1133 = vmatpush1.bf16.msra.mxu0 %v812
  %1134 = vmatprep.subr.bf16.mxu0 %v815
  %1135 = vmatpush1.bf16.msra.mxu0 %v814
  %1136 = vmatprep.subr.bf16.mxu0 %v817
  %1137 = vmatpush1.bf16.msra.mxu0 %v816
  %1138 = vmatprep.subr.bf16.mxu0 %v819
  %1139 = vmatpush1.bf16.msra.mxu0 %v818
  %1140 = vmatprep.subr.bf16.mxu0 %v821
  %1141 = vmatpush1.bf16.msra.mxu0 %v820
  %1142 = vmatprep.subr.bf16.mxu0 %v823
  %1143 = vmatpush1.bf16.msra.mxu0 %v822
  %1144 = vmatprep.mubr.bf16.mxu0 %v273
  %1145 = vmatmul.mubr.bf16.gmra.mrb[0].mxu0 %v272
  %v1146 = vpop.f32.mrb[0].mxu0
  %v1147 = vadd.f32 %v205, %v1146
  %v1148 = vpop.f32.mrb[0].mxu0
  %v1149 = vadd.f32 %v209, %v1148
  %v1150 = vpop.f32.mrb[0].mxu0
  %v1151 = vadd.f32 %v205, %v1150
  %v1152 = vpop.f32.mrb[0].mxu0
  %v1153 = vadd.f32 %v209, %v1152
  %1154 = vmatprep.mubr.bf16.mxu0 %v283
  %1155 = vmatmul.mubr.bf16.gmra.mrb[0].mxu0 %v282
  %v1156 = vpop.f32.mrb[0].mxu0
  %v1157 = vadd.f32 %v205, %v1156
  %v1158 = vpop.f32.mrb[0].mxu0
  %v1159 = vadd.f32 %v209, %v1158
  %v1160 = vpop.f32.mrb[0].mxu0
  %v1161 = vadd.f32 %v205, %v1160
  %v1162 = vpop.f32.mrb[0].mxu0
  %v1163 = vadd.f32 %v209, %v1162
  %1164 = vdwg.mxu0
  %1165 = vmatprep.subr.bf16.mxu0 %v825
  %1166 = vmatpush1.bf16.msra.mxu0 %v824
  %1167 = vmatprep.subr.bf16.mxu0 %v827
  %1168 = vmatpush1.bf16.msra.mxu0 %v826
  %1169 = vmatprep.subr.bf16.mxu0 %v829
  %1170 = vmatpush1.bf16.msra.mxu0 %v828
  %1171 = vmatprep.subr.bf16.mxu0 %v831
  %1172 = vmatpush1.bf16.msra.mxu0 %v830
  %1173 = vmatprep.subr.bf16.mxu0 %v833
  %1174 = vmatpush1.bf16.msra.mxu0 %v832
  %1175 = vmatprep.subr.bf16.mxu0 %v835
  %1176 = vmatpush1.bf16.msra.mxu0 %v834
  %1177 = vmatprep.subr.bf16.mxu0 %v837
  %1178 = vmatpush1.bf16.msra.mxu0 %v836
  %1179 = vmatprep.subr.bf16.mxu0 %v839
  %1180 = vmatpush1.bf16.msra.mxu0 %v838
  %1181 = vmatprep.subr.bf16.mxu0 %v841
  %1182 = vmatpush1.bf16.msra.mxu0 %v840
  %1183 = vmatprep.subr.bf16.mxu0 %v843
  %1184 = vmatpush1.bf16.msra.mxu0 %v842
  %1185 = vmatprep.subr.bf16.mxu0 %v845
  %1186 = vmatpush1.bf16.msra.mxu0 %v844
  %1187 = vmatprep.subr.bf16.mxu0 %v847
  %1188 = vmatpush1.bf16.msra.mxu0 %v846
  %1189 = vmatprep.subr.bf16.mxu0 %v849
  %1190 = vmatpush1.bf16.msra.mxu0 %v848
  %1191 = vmatprep.subr.bf16.mxu0 %v851
  %1192 = vmatpush1.bf16.msra.mxu0 %v850
  %1193 = vmatprep.subr.bf16.mxu0 %v853
  %1194 = vmatpush1.bf16.msra.mxu0 %v852
  %1195 = vmatprep.subr.bf16.mxu0 %v855
  %1196 = vmatpush1.bf16.msra.mxu0 %v854
  %1197 = vmatprep.mubr.bf16.mxu0 %v275
  %1198 = vmatmul.mubr.bf16.gmra.mrb[0].mxu0 %v274
  %v1199 = vpop.f32.mrb[0].mxu0
  %v1200 = vadd.f32 %v1147, %v1199
  %v1201 = vpop.f32.mrb[0].mxu0
  %v1202 = vadd.f32 %v1149, %v1201
  %v1203 = vpop.f32.mrb[0].mxu0
  %v1204 = vadd.f32 %v1151, %v1203
  %v1205 = vpop.f32.mrb[0].mxu0
  %v1206 = vadd.f32 %v1153, %v1205
  %1207 = vmatprep.mubr.bf16.mxu0 %v285
  %1208 = vmatmul.mubr.bf16.gmra.mrb[0].mxu0 %v284
  %v1209 = vpop.f32.mrb[0].mxu0
  %v1210 = vadd.f32 %v1157, %v1209
  %v1211 = vpop.f32.mrb[0].mxu0
  %v1212 = vadd.f32 %v1159, %v1211
  %v1213 = vpop.f32.mrb[0].mxu0
  %v1214 = vadd.f32 %v1161, %v1213
  %v1215 = vpop.f32.mrb[0].mxu0
  %v1216 = vadd.f32 %v1163, %v1215
  %1217 = vdwg.mxu0
  %1218 = vmatprep.subr.bf16.mxu0 %v857
  %1219 = vmatpush1.bf16.msra.mxu0 %v856
  %1220 = vmatprep.subr.bf16.mxu0 %v859
  %1221 = vmatpush1.bf16.msra.mxu0 %v858
  %1222 = vmatprep.subr.bf16.mxu0 %v861
  %1223 = vmatpush1.bf16.msra.mxu0 %v860
  %1224 = vmatprep.subr.bf16.mxu0 %v863
  %1225 = vmatpush1.bf16.msra.mxu0 %v862
  %1226 = vmatprep.subr.bf16.mxu0 %v865
  %1227 = vmatpush1.bf16.msra.mxu0 %v864
  %1228 = vmatprep.subr.bf16.mxu0 %v867
  %1229 = vmatpush1.bf16.msra.mxu0 %v866
  %1230 = vmatprep.subr.bf16.mxu0 %v869
  %1231 = vmatpush1.bf16.msra.mxu0 %v868
  %1232 = vmatprep.subr.bf16.mxu0 %v871
  %1233 = vmatpush1.bf16.msra.mxu0 %v870
  %1234 = vmatprep.subr.bf16.mxu0 %v873
  %1235 = vmatpush1.bf16.msra.mxu0 %v872
  %1236 = vmatprep.subr.bf16.mxu0 %v875
  %1237 = vmatpush1.bf16.msra.mxu0 %v874
  %1238 = vmatprep.subr.bf16.mxu0 %v877
  %1239 = vmatpush1.bf16.msra.mxu0 %v876
  %1240 = vmatprep.subr.bf16.mxu0 %v879
  %1241 = vmatpush1.bf16.msra.mxu0 %v878
  %1242 = vmatprep.subr.bf16.mxu0 %v881
  %1243 = vmatpush1.bf16.msra.mxu0 %v880
  %1244 = vmatprep.subr.bf16.mxu0 %v883
  %1245 = vmatpush1.bf16.msra.mxu0 %v882
  %1246 = vmatprep.subr.bf16.mxu0 %v885
  %1247 = vmatpush1.bf16.msra.mxu0 %v884
  %1248 = vmatprep.subr.bf16.mxu0 %v887
  %1249 = vmatpush1.bf16.msra.mxu0 %v886
  %1250 = vmatprep.mubr.bf16.mxu0 %v277
  %1251 = vmatmul.mubr.bf16.gmra.mrb[0].mxu0 %v276
  %v1252 = vpop.f32.mrb[0].mxu0
  %v1253 = vadd.f32 %v1200, %v1252
  %v1254 = vpop.f32.mrb[0].mxu0
  %v1255 = vadd.f32 %v1202, %v1254
  %v1256 = vpop.f32.mrb[0].mxu0
  %v1257 = vadd.f32 %v1204, %v1256
  %v1258 = vpop.f32.mrb[0].mxu0
  %v1259 = vadd.f32 %v1206, %v1258
  %1260 = vmatprep.mubr.bf16.mxu0 %v287
  %1261 = vmatmul.mubr.bf16.gmra.mrb[0].mxu0 %v286
  %v1262 = vpop.f32.mrb[0].mxu0
  %v1263 = vadd.f32 %v1210, %v1262
  %v1264 = vpop.f32.mrb[0].mxu0
  %v1265 = vadd.f32 %v1212, %v1264
  %v1266 = vpop.f32.mrb[0].mxu0
  %v1267 = vadd.f32 %v1214, %v1266
  %v1268 = vpop.f32.mrb[0].mxu0
  %v1269 = vadd.f32 %v1216, %v1268
  %1270 = vdwg.mxu0
  %1271 = vmatprep.subr.bf16.mxu0 %v889
  %1272 = vmatpush1.bf16.msra.mxu0 %v888
  %1273 = vmatprep.subr.bf16.mxu0 %v891
  %1274 = vmatpush1.bf16.msra.mxu0 %v890
  %1275 = vmatprep.subr.bf16.mxu0 %v893
  %1276 = vmatpush1.bf16.msra.mxu0 %v892
  %1277 = vmatprep.subr.bf16.mxu0 %v895
  %1278 = vmatpush1.bf16.msra.mxu0 %v894
  %1279 = vmatprep.subr.bf16.mxu0 %v897
  %1280 = vmatpush1.bf16.msra.mxu0 %v896
  %1281 = vmatprep.subr.bf16.mxu0 %v899
  %1282 = vmatpush1.bf16.msra.mxu0 %v898
  %1283 = vmatprep.subr.bf16.mxu0 %v901
  %1284 = vmatpush1.bf16.msra.mxu0 %v900
  %1285 = vmatprep.subr.bf16.mxu0 %v903
  %1286 = vmatpush1.bf16.msra.mxu0 %v902
  %1287 = vmatprep.subr.bf16.mxu0 %v905
  %1288 = vmatpush1.bf16.msra.mxu0 %v904
  %1289 = vmatprep.subr.bf16.mxu0 %v907
  %1290 = vmatpush1.bf16.msra.mxu0 %v906
  %1291 = vmatprep.subr.bf16.mxu0 %v909
  %1292 = vmatpush1.bf16.msra.mxu0 %v908
  %1293 = vmatprep.subr.bf16.mxu0 %v911
  %1294 = vmatpush1.bf16.msra.mxu0 %v910
  %1295 = vmatprep.subr.bf16.mxu0 %v913
  %1296 = vmatpush1.bf16.msra.mxu0 %v912
  %1297 = vmatprep.subr.bf16.mxu0 %v915
  %1298 = vmatpush1.bf16.msra.mxu0 %v914
  %1299 = vmatprep.subr.bf16.mxu0 %v917
  %1300 = vmatpush1.bf16.msra.mxu0 %v916
  %1301 = vmatprep.subr.bf16.mxu0 %v919
  %1302 = vmatpush1.bf16.msra.mxu0 %v918
  %1303 = vmatprep.mubr.bf16.mxu0 %v279
  %1304 = vmatmul.mubr.bf16.gmra.mrb[0].mxu0 %v278
  %v1305 = vpop.f32.mrb[0].mxu0
  %v1306 = vadd.f32 %v1253, %v1305
  %v1307 = vpop.f32.mrb[0].mxu0
  %v1308 = vadd.f32 %v1255, %v1307
  %v1309 = vpop.f32.mrb[0].mxu0
  %v1310 = vadd.f32 %v1257, %v1309
  %v1311 = vpop.f32.mrb[0].mxu0
  %v1312 = vadd.f32 %v1259, %v1311
  %1313 = vmatprep.mubr.bf16.mxu0 %v289
  %1314 = vmatmul.mubr.bf16.gmra.mrb[0].mxu0 %v288
  %v1315 = vpop.f32.mrb[0].mxu0
  %v1316 = vadd.f32 %v1263, %v1315
  %v1317 = vpop.f32.mrb[0].mxu0
  %v1318 = vadd.f32 %v1265, %v1317
  %v1319 = vpop.f32.mrb[0].mxu0
  %v1320 = vadd.f32 %v1267, %v1319
  %v1321 = vpop.f32.mrb[0].mxu0
  %v1322 = vadd.f32 %v1269, %v1321
  %1323 = vdwg.mxu0
  %1324 = vmatprep.subr.bf16.mxu0 %v921
  %1325 = vmatpush1.bf16.msra.mxu0 %v920
  %1326 = vmatprep.subr.bf16.mxu0 %v923
  %1327 = vmatpush1.bf16.msra.mxu0 %v922
  %1328 = vmatprep.subr.bf16.mxu0 %v925
  %1329 = vmatpush1.bf16.msra.mxu0 %v924
  %1330 = vmatprep.subr.bf16.mxu0 %v927
  %1331 = vmatpush1.bf16.msra.mxu0 %v926
  %1332 = vmatprep.subr.bf16.mxu0 %v929
  %1333 = vmatpush1.bf16.msra.mxu0 %v928
  %1334 = vmatprep.subr.bf16.mxu0 %v931
  %1335 = vmatpush1.bf16.msra.mxu0 %v930
  %1336 = vmatprep.subr.bf16.mxu0 %v933
  %1337 = vmatpush1.bf16.msra.mxu0 %v932
  %1338 = vmatprep.subr.bf16.mxu0 %v935
  %1339 = vmatpush1.bf16.msra.mxu0 %v934
  %1340 = vmatprep.subr.bf16.mxu0 %v937
  %1341 = vmatpush1.bf16.msra.mxu0 %v936
  %1342 = vmatprep.subr.bf16.mxu0 %v939
  %1343 = vmatpush1.bf16.msra.mxu0 %v938
  %1344 = vmatprep.subr.bf16.mxu0 %v941
  %1345 = vmatpush1.bf16.msra.mxu0 %v940
  %1346 = vmatprep.subr.bf16.mxu0 %v943
  %1347 = vmatpush1.bf16.msra.mxu0 %v942
  %1348 = vmatprep.subr.bf16.mxu0 %v945
  %1349 = vmatpush1.bf16.msra.mxu0 %v944
  %1350 = vmatprep.subr.bf16.mxu0 %v947
  %1351 = vmatpush1.bf16.msra.mxu0 %v946
  %1352 = vmatprep.subr.bf16.mxu0 %v949
  %1353 = vmatpush1.bf16.msra.mxu0 %v948
  %1354 = vmatprep.subr.bf16.mxu0 %v951
  %1355 = vmatpush1.bf16.msra.mxu0 %v950
  %1356 = vmatprep.mubr.bf16.mxu0 %v281
  %1357 = vmatmul.mubr.bf16.gmra.mrb[0].mxu0 %v280
  %v1358 = vpop.f32.mrb[0].mxu0
  %v1359 = vadd.f32 %v1306, %v1358
  %v1360 = vpop.f32.mrb[0].mxu0
  %v1361 = vadd.f32 %v1308, %v1360
  %v1362 = vpop.f32.mrb[0].mxu0
  %v1363 = vadd.f32 %v1310, %v1362
  %v1364 = vpop.f32.mrb[0].mxu0
  %v1365 = vadd.f32 %v1312, %v1364
  %1366 = vmatprep.mubr.bf16.mxu0 %v291
  %1367 = vmatmul.mubr.bf16.gmra.mrb[0].mxu0 %v290
  %v1368 = vpop.f32.mrb[0].mxu0
  %v1369 = vadd.f32 %v1316, %v1368
  %v1370 = vpop.f32.mrb[0].mxu0
  %v1371 = vadd.f32 %v1318, %v1370
  %v1372 = vpop.f32.mrb[0].mxu0
  %v1373 = vadd.f32 %v1320, %v1372
  %v1374 = vpop.f32.mrb[0].mxu0
  %v1375 = vadd.f32 %v1322, %v1374
  %1376 = vdwg.mxu0
  %v1377 = vmax.f32 %v1359, 0.0
  %v1378 = vmax.f32 %v1361, 0.0
  %v1379 = vmax.f32 %v1363, 0.0
  %v1380 = vmax.f32 %v1365, 0.0
  %v1381 = vmax.f32 %v1369, 0.0
  %v1382 = vmax.f32 %v1371, 0.0
  %v1383 = vmax.f32 %v1373, 0.0
  %v1384 = vmax.f32 %v1375, 0.0
  %v1385 = vpack.c.bf16 %v1379, %v1377
  %v1386 = vpack.c.bf16 %v1380, %v1378
  %v1387 = vpack.c.bf16 %v1383, %v1381
  %v1388 = vpack.c.bf16 %v1384, %v1382
  %v1389 = vld [vmem:[%s3] sm:$0xff]
  %v1390 = vld [vmem:[%s3 + $0x8] sm:$0xff]
  %v1391 = vld [vmem:[%s3 + $0x10] sm:$0xff]
  %v1392 = vld [vmem:[%s3 + $0x18] sm:$0xff]
  %v1393 = vld [vmem:[%s3 + $0x20] sm:$0xff]
  %v1394 = vld [vmem:[%s3 + $0x28] sm:$0xff]
  %v1395 = vld [vmem:[%s3 + $0x30] sm:$0xff]
  %v1396 = vld [vmem:[%s3 + $0x38] sm:$0xff]
  %v1397 = vld [vmem:[%s3 + $0x40] sm:$0xff]
  %v1398 = vld [vmem:[%s3 + $0x48] sm:$0xff]
  %v1399 = vld [vmem:[%s3 + $0x50] sm:$0xff]
  %v1400 = vld [vmem:[%s3 + $0x58] sm:$0xff]
  %v1401 = vld [vmem:[%s3 + $0x60] sm:$0xff]
  %v1402 = vld [vmem:[%s3 + $0x68] sm:$0xff]
  %v1403 = vld [vmem:[%s3 + $0x70] sm:$0xff]
  %v1404 = vld [vmem:[%s3 + $0x78] sm:$0xff]
  %v1405 = vld [vmem:[%s3 + $0x80] sm:$0xff]
  %v1406 = vld [vmem:[%s3 + $0x88] sm:$0xff]
  %v1407 = vld [vmem:[%s3 + $0x90] sm:$0xff]
  %v1408 = vld [vmem:[%s3 + $0x98] sm:$0xff]
  %v1409 = vld [vmem:[%s3 + $0xa0] sm:$0xff]
  %v1410 = vld [vmem:[%s3 + $0xa8] sm:$0xff]
  %v1411 = vld [vmem:[%s3 + $0xb0] sm:$0xff]
  %v1412 = vld [vmem:[%s3 + $0xb8] sm:$0xff]
  %v1413 = vld [vmem:[%s3 + $0xc0] sm:$0xff]
  %v1414 = vld [vmem:[%s3 + $0xc8] sm:$0xff]
  %v1415 = vld [vmem:[%s3 + $0xd0] sm:$0xff]
  %v1416 = vld [vmem:[%s3 + $0xd8] sm:$0xff]
  %v1417 = vld [vmem:[%s3 + $0xe0] sm:$0xff]
  %v1418 = vld [vmem:[%s3 + $0xe8] sm:$0xff]
  %v1419 = vld [vmem:[%s3 + $0xf0] sm:$0xff]
  %v1420 = vld [vmem:[%s3 + $0xf8] sm:$0xff]
  %v1421 = vld [vmem:[%s3 + $0x100] sm:$0xff]
  %v1422 = vld [vmem:[%s3 + $0x108] sm:$0xff]
  %v1423 = vld [vmem:[%s3 + $0x110] sm:$0xff]
  %v1424 = vld [vmem:[%s3 + $0x118] sm:$0xff]
  %v1425 = vld [vmem:[%s3 + $0x120] sm:$0xff]
  %v1426 = vld [vmem:[%s3 + $0x128] sm:$0xff]
  %v1427 = vld [vmem:[%s3 + $0x130] sm:$0xff]
  %v1428 = vld [vmem:[%s3 + $0x138] sm:$0xff]
  %v1429 = vld [vmem:[%s3 + $0x140] sm:$0xff]
  %v1430 = vld [vmem:[%s3 + $0x148] sm:$0xff]
  %v1431 = vld [vmem:[%s3 + $0x150] sm:$0xff]
  %v1432 = vld [vmem:[%s3 + $0x158] sm:$0xff]
  %v1433 = vld [vmem:[%s3 + $0x160] sm:$0xff]
  %v1434 = vld [vmem:[%s3 + $0x168] sm:$0xff]
  %v1435 = vld [vmem:[%s3 + $0x170] sm:$0xff]
  %v1436 = vld [vmem:[%s3 + $0x178] sm:$0xff]
  %v1437 = vld [vmem:[%s3 + $0x180] sm:$0xff]
  %v1438 = vld [vmem:[%s3 + $0x188] sm:$0xff]
  %v1439 = vld [vmem:[%s3 + $0x190] sm:$0xff]
  %v1440 = vld [vmem:[%s3 + $0x198] sm:$0xff]
  %v1441 = vld [vmem:[%s3 + $0x1a0] sm:$0xff]
  %v1442 = vld [vmem:[%s3 + $0x1a8] sm:$0xff]
  %v1443 = vld [vmem:[%s3 + $0x1b0] sm:$0xff]
  %v1444 = vld [vmem:[%s3 + $0x1b8] sm:$0xff]
  %v1445 = vld [vmem:[%s3 + $0x1c0] sm:$0xff]
  %v1446 = vld [vmem:[%s3 + $0x1c8] sm:$0xff]
  %v1447 = vld [vmem:[%s3 + $0x1d0] sm:$0xff]
  %v1448 = vld [vmem:[%s3 + $0x1d8] sm:$0xff]
  %v1449 = vld [vmem:[%s3 + $0x1e0] sm:$0xff]
  %v1450 = vld [vmem:[%s3 + $0x1e8] sm:$0xff]
  %v1451 = vld [vmem:[%s3 + $0x1f0] sm:$0xff]
  %v1452 = vld [vmem:[%s3 + $0x1f8] sm:$0xff]
  %v1453 = vld [vmem:[%s3 + $0x200] sm:$0xff]
  %v1454 = vld [vmem:[%s3 + $0x208] sm:$0xff]
  %v1455 = vld [vmem:[%s3 + $0x210] sm:$0xff]
  %v1456 = vld [vmem:[%s3 + $0x218] sm:$0xff]
  %v1457 = vld [vmem:[%s3 + $0x220] sm:$0xff]
  %v1458 = vld [vmem:[%s3 + $0x228] sm:$0xff]
  %v1459 = vld [vmem:[%s3 + $0x230] sm:$0xff]
  %v1460 = vld [vmem:[%s3 + $0x238] sm:$0xff]
  %v1461 = vld [vmem:[%s3 + $0x240] sm:$0xff]
  %v1462 = vld [vmem:[%s3 + $0x248] sm:$0xff]
  %v1463 = vld [vmem:[%s3 + $0x250] sm:$0xff]
  %v1464 = vld [vmem:[%s3 + $0x258] sm:$0xff]
  %v1465 = vld [vmem:[%s3 + $0x260] sm:$0xff]
  %v1466 = vld [vmem:[%s3 + $0x268] sm:$0xff]
  %v1467 = vld [vmem:[%s3 + $0x270] sm:$0xff]
  %v1468 = vld [vmem:[%s3 + $0x278] sm:$0xff]
  %v1469 = vld [vmem:[%s3 + $0x280] sm:$0xff]
  %v1470 = vld [vmem:[%s3 + $0x288] sm:$0xff]
  %v1471 = vld [vmem:[%s3 + $0x290] sm:$0xff]
  %v1472 = vld [vmem:[%s3 + $0x298] sm:$0xff]
  %v1473 = vld [vmem:[%s3 + $0x2a0] sm:$0xff]
  %v1474 = vld [vmem:[%s3 + $0x2a8] sm:$0xff]
  %v1475 = vld [vmem:[%s3 + $0x2b0] sm:$0xff]
  %v1476 = vld [vmem:[%s3 + $0x2b8] sm:$0xff]
  %v1477 = vld [vmem:[%s3 + $0x2c0] sm:$0xff]
  %v1478 = vld [vmem:[%s3 + $0x2c8] sm:$0xff]
  %v1479 = vld [vmem:[%s3 + $0x2d0] sm:$0xff]
  %v1480 = vld [vmem:[%s3 + $0x2d8] sm:$0xff]
  %v1481 = vld [vmem:[%s3 + $0x2e0] sm:$0xff]
  %v1482 = vld [vmem:[%s3 + $0x2e8] sm:$0xff]
  %v1483 = vld [vmem:[%s3 + $0x2f0] sm:$0xff]
  %v1484 = vld [vmem:[%s3 + $0x2f8] sm:$0xff]
  %v1485 = vld [vmem:[%s4] sm:$0x3f]
  %v1487 = vlaneseq
  %v1488 = vshrl.u32 %v1487, 7
  %v1489 = vsub.s32 0, %v1488
  %v1490 = vrot.slane %v1485, %v1489
  %v1491 = vlaneseq
  %v1492 = vshrl.u32 %v1491, 7
  %v1493 = vsub.s32 1, %v1492
  %v1494 = vrot.slane %v1485, %v1493
  %v1495 = vlaneseq
  %v1496 = vshrl.u32 %v1495, 7
  %v1497 = vsub.s32 2, %v1496
  %v1498 = vrot.slane %v1485, %v1497
  %v1499 = vlaneseq
  %v1500 = vshrl.u32 %v1499, 7
  %v1501 = vsub.s32 3, %v1500
  %v1502 = vrot.slane %v1485, %v1501
  %v1503 = vlaneseq
  %v1504 = vshrl.u32 %v1503, 7
  %v1505 = vsub.s32 4, %v1504
  %v1506 = vrot.slane %v1485, %v1505
  %v1507 = vlaneseq
  %v1508 = vshrl.u32 %v1507, 7
  %v1509 = vsub.s32 5, %v1508
  %v1510 = vrot.slane %v1485, %v1509
  %v1613 = vunpack.c.l.b16 %v1389
  %v1614 = vunpack.c.h.b16 %v1389
  %v1615 = vunpack.c.l.b16 %v1390
  %v1616 = vunpack.c.h.b16 %v1390
  %v1617 = vunpack.c.l.b16 %v1391
  %v1618 = vunpack.c.h.b16 %v1391
  %v1619 = vunpack.c.l.b16 %v1392
  %v1620 = vunpack.c.h.b16 %v1392
  %v1621 = vunpack.c.l.b16 %v1393
  %v1622 = vunpack.c.h.b16 %v1393
  %v1623 = vunpack.c.l.b16 %v1394
  %v1624 = vunpack.c.h.b16 %v1394
  %v1625 = vunpack.c.l.b16 %v1395
  %v1626 = vunpack.c.h.b16 %v1395
  %v1627 = vunpack.c.l.b16 %v1396
  %v1628 = vunpack.c.h.b16 %v1396
  %v1629 = vunpack.c.l.b16 %v1397
  %v1630 = vunpack.c.h.b16 %v1397
  %v1631 = vunpack.c.l.b16 %v1398
  %v1632 = vunpack.c.h.b16 %v1398
  %v1633 = vunpack.c.l.b16 %v1399
  %v1634 = vunpack.c.h.b16 %v1399
  %v1635 = vunpack.c.l.b16 %v1400
  %v1636 = vunpack.c.h.b16 %v1400
  %v1637 = vunpack.c.l.b16 %v1401
  %v1638 = vunpack.c.h.b16 %v1401
  %v1639 = vunpack.c.l.b16 %v1402
  %v1640 = vunpack.c.h.b16 %v1402
  %v1641 = vunpack.c.l.b16 %v1403
  %v1642 = vunpack.c.h.b16 %v1403
  %v1643 = vunpack.c.l.b16 %v1404
  %v1644 = vunpack.c.h.b16 %v1404
  %v1645 = vunpack.c.l.b16 %v1405
  %v1646 = vunpack.c.h.b16 %v1405
  %v1647 = vunpack.c.l.b16 %v1406
  %v1648 = vunpack.c.h.b16 %v1406
  %v1649 = vunpack.c.l.b16 %v1407
  %v1650 = vunpack.c.h.b16 %v1407
  %v1651 = vunpack.c.l.b16 %v1408
  %v1652 = vunpack.c.h.b16 %v1408
  %v1653 = vunpack.c.l.b16 %v1409
  %v1654 = vunpack.c.h.b16 %v1409
  %v1655 = vunpack.c.l.b16 %v1410
  %v1656 = vunpack.c.h.b16 %v1410
  %v1657 = vunpack.c.l.b16 %v1411
  %v1658 = vunpack.c.h.b16 %v1411
  %v1659 = vunpack.c.l.b16 %v1412
  %v1660 = vunpack.c.h.b16 %v1412
  %v1661 = vunpack.c.l.b16 %v1413
  %v1662 = vunpack.c.h.b16 %v1413
  %v1663 = vunpack.c.l.b16 %v1414
  %v1664 = vunpack.c.h.b16 %v1414
  %v1665 = vunpack.c.l.b16 %v1415
  %v1666 = vunpack.c.h.b16 %v1415
  %v1667 = vunpack.c.l.b16 %v1416
  %v1668 = vunpack.c.h.b16 %v1416
  %v1669 = vunpack.c.l.b16 %v1417
  %v1670 = vunpack.c.h.b16 %v1417
  %v1671 = vunpack.c.l.b16 %v1418
  %v1672 = vunpack.c.h.b16 %v1418
  %v1673 = vunpack.c.l.b16 %v1419
  %v1674 = vunpack.c.h.b16 %v1419
  %v1675 = vunpack.c.l.b16 %v1420
  %v1676 = vunpack.c.h.b16 %v1420
  %v1677 = vunpack.c.l.b16 %v1421
  %v1678 = vunpack.c.h.b16 %v1421
  %v1679 = vunpack.c.l.b16 %v1422
  %v1680 = vunpack.c.h.b16 %v1422
  %v1681 = vunpack.c.l.b16 %v1423
  %v1682 = vunpack.c.h.b16 %v1423
  %v1683 = vunpack.c.l.b16 %v1424
  %v1684 = vunpack.c.h.b16 %v1424
  %v1685 = vunpack.c.l.b16 %v1425
  %v1686 = vunpack.c.h.b16 %v1425
  %v1687 = vunpack.c.l.b16 %v1426
  %v1688 = vunpack.c.h.b16 %v1426
  %v1689 = vunpack.c.l.b16 %v1427
  %v1690 = vunpack.c.h.b16 %v1427
  %v1691 = vunpack.c.l.b16 %v1428
  %v1692 = vunpack.c.h.b16 %v1428
  %v1693 = vunpack.c.l.b16 %v1429
  %v1694 = vunpack.c.h.b16 %v1429
  %v1695 = vunpack.c.l.b16 %v1430
  %v1696 = vunpack.c.h.b16 %v1430
  %v1697 = vunpack.c.l.b16 %v1431
  %v1698 = vunpack.c.h.b16 %v1431
  %v1699 = vunpack.c.l.b16 %v1432
  %v1700 = vunpack.c.h.b16 %v1432
  %v1701 = vunpack.c.l.b16 %v1433
  %v1702 = vunpack.c.h.b16 %v1433
  %v1703 = vunpack.c.l.b16 %v1434
  %v1704 = vunpack.c.h.b16 %v1434
  %v1705 = vunpack.c.l.b16 %v1435
  %v1706 = vunpack.c.h.b16 %v1435
  %v1707 = vunpack.c.l.b16 %v1436
  %v1708 = vunpack.c.h.b16 %v1436
  %v1709 = vunpack.c.l.b16 %v1437
  %v1710 = vunpack.c.h.b16 %v1437
  %v1711 = vunpack.c.l.b16 %v1438
  %v1712 = vunpack.c.h.b16 %v1438
  %v1713 = vunpack.c.l.b16 %v1439
  %v1714 = vunpack.c.h.b16 %v1439
  %v1715 = vunpack.c.l.b16 %v1440
  %v1716 = vunpack.c.h.b16 %v1440
  %v1717 = vunpack.c.l.b16 %v1441
  %v1718 = vunpack.c.h.b16 %v1441
  %v1719 = vunpack.c.l.b16 %v1442
  %v1720 = vunpack.c.h.b16 %v1442
  %v1721 = vunpack.c.l.b16 %v1443
  %v1722 = vunpack.c.h.b16 %v1443
  %v1723 = vunpack.c.l.b16 %v1444
  %v1724 = vunpack.c.h.b16 %v1444
  %v1725 = vunpack.c.l.b16 %v1445
  %v1726 = vunpack.c.h.b16 %v1445
  %v1727 = vunpack.c.l.b16 %v1446
  %v1728 = vunpack.c.h.b16 %v1446
  %v1729 = vunpack.c.l.b16 %v1447
  %v1730 = vunpack.c.h.b16 %v1447
  %v1731 = vunpack.c.l.b16 %v1448
  %v1732 = vunpack.c.h.b16 %v1448
  %v1733 = vunpack.c.l.b16 %v1449
  %v1734 = vunpack.c.h.b16 %v1449
  %v1735 = vunpack.c.l.b16 %v1450
  %v1736 = vunpack.c.h.b16 %v1450
  %v1737 = vunpack.c.l.b16 %v1451
  %v1738 = vunpack.c.h.b16 %v1451
  %v1739 = vunpack.c.l.b16 %v1452
  %v1740 = vunpack.c.h.b16 %v1452
  %v1741 = vunpack.c.l.b16 %v1453
  %v1742 = vunpack.c.h.b16 %v1453
  %v1743 = vunpack.c.l.b16 %v1454
  %v1744 = vunpack.c.h.b16 %v1454
  %v1745 = vunpack.c.l.b16 %v1455
  %v1746 = vunpack.c.h.b16 %v1455
  %v1747 = vunpack.c.l.b16 %v1456
  %v1748 = vunpack.c.h.b16 %v1456
  %v1749 = vunpack.c.l.b16 %v1457
  %v1750 = vunpack.c.h.b16 %v1457
  %v1751 = vunpack.c.l.b16 %v1458
  %v1752 = vunpack.c.h.b16 %v1458
  %v1753 = vunpack.c.l.b16 %v1459
  %v1754 = vunpack.c.h.b16 %v1459
  %v1755 = vunpack.c.l.b16 %v1460
  %v1756 = vunpack.c.h.b16 %v1460
  %v1757 = vunpack.c.l.b16 %v1461
  %v1758 = vunpack.c.h.b16 %v1461
  %v1759 = vunpack.c.l.b16 %v1462
  %v1760 = vunpack.c.h.b16 %v1462
  %v1761 = vunpack.c.l.b16 %v1463
  %v1762 = vunpack.c.h.b16 %v1463
  %v1763 = vunpack.c.l.b16 %v1464
  %v1764 = vunpack.c.h.b16 %v1464
  %v1765 = vunpack.c.l.b16 %v1465
  %v1766 = vunpack.c.h.b16 %v1465
  %v1767 = vunpack.c.l.b16 %v1466
  %v1768 = vunpack.c.h.b16 %v1466
  %v1769 = vunpack.c.l.b16 %v1467
  %v1770 = vunpack.c.h.b16 %v1467
  %v1771 = vunpack.c.l.b16 %v1468
  %v1772 = vunpack.c.h.b16 %v1468
  %v1773 = vunpack.c.l.b16 %v1469
  %v1774 = vunpack.c.h.b16 %v1469
  %v1775 = vunpack.c.l.b16 %v1470
  %v1776 = vunpack.c.h.b16 %v1470
  %v1777 = vunpack.c.l.b16 %v1471
  %v1778 = vunpack.c.h.b16 %v1471
  %v1779 = vunpack.c.l.b16 %v1472
  %v1780 = vunpack.c.h.b16 %v1472
  %v1781 = vunpack.c.l.b16 %v1473
  %v1782 = vunpack.c.h.b16 %v1473
  %v1783 = vunpack.c.l.b16 %v1474
  %v1784 = vunpack.c.h.b16 %v1474
  %v1785 = vunpack.c.l.b16 %v1475
  %v1786 = vunpack.c.h.b16 %v1475
  %v1787 = vunpack.c.l.b16 %v1476
  %v1788 = vunpack.c.h.b16 %v1476
  %v1789 = vunpack.c.l.b16 %v1477
  %v1790 = vunpack.c.h.b16 %v1477
  %v1791 = vunpack.c.l.b16 %v1478
  %v1792 = vunpack.c.h.b16 %v1478
  %v1793 = vunpack.c.l.b16 %v1479
  %v1794 = vunpack.c.h.b16 %v1479
  %v1795 = vunpack.c.l.b16 %v1480
  %v1796 = vunpack.c.h.b16 %v1480
  %v1797 = vunpack.c.l.b16 %v1481
  %v1798 = vunpack.c.h.b16 %v1481
  %v1799 = vunpack.c.l.b16 %v1482
  %v1800 = vunpack.c.h.b16 %v1482
  %v1801 = vunpack.c.l.b16 %v1483
  %v1802 = vunpack.c.h.b16 %v1483
  %v1803 = vunpack.c.l.b16 %v1484
  %v1804 = vunpack.c.h.b16 %v1484
  %v1805 = vpack.c.b16 %v1619, %v1613
  %v1806 = vpack.c.b16 %v1620, %v1614
  %v1807 = vpack.c.b16 %v1621, %v1615
  %v1808 = vpack.c.b16 %v1622, %v1616
  %v1809 = vpack.c.b16 %v1623, %v1617
  %v1810 = vpack.c.b16 %v1624, %v1618
  %v1811 = vpack.c.b16 %v1631, %v1625
  %v1812 = vpack.c.b16 %v1632, %v1626
  %v1813 = vpack.c.b16 %v1633, %v1627
  %v1814 = vpack.c.b16 %v1634, %v1628
  %v1815 = vpack.c.b16 %v1635, %v1629
  %v1816 = vpack.c.b16 %v1636, %v1630
  %v1817 = vpack.c.b16 %v1643, %v1637
  %v1818 = vpack.c.b16 %v1644, %v1638
  %v1819 = vpack.c.b16 %v1645, %v1639
  %v1820 = vpack.c.b16 %v1646, %v1640
  %v1821 = vpack.c.b16 %v1647, %v1641
  %v1822 = vpack.c.b16 %v1648, %v1642
  %v1823 = vpack.c.b16 %v1655, %v1649
  %v1824 = vpack.c.b16 %v1656, %v1650
  %v1825 = vpack.c.b16 %v1657, %v1651
  %v1826 = vpack.c.b16 %v1658, %v1652
  %v1827 = vpack.c.b16 %v1659, %v1653
  %v1828 = vpack.c.b16 %v1660, %v1654
  %v1829 = vpack.c.b16 %v1667, %v1661
  %v1830 = vpack.c.b16 %v1668, %v1662
  %v1831 = vpack.c.b16 %v1669, %v1663
  %v1832 = vpack.c.b16 %v1670, %v1664
  %v1833 = vpack.c.b16 %v1671, %v1665
  %v1834 = vpack.c.b16 %v1672, %v1666
  %v1835 = vpack.c.b16 %v1679, %v1673
  %v1836 = vpack.c.b16 %v1680, %v1674
  %v1837 = vpack.c.b16 %v1681, %v1675
  %v1838 = vpack.c.b16 %v1682, %v1676
  %v1839 = vpack.c.b16 %v1683, %v1677
  %v1840 = vpack.c.b16 %v1684, %v1678
  %v1841 = vpack.c.b16 %v1691, %v1685
  %v1842 = vpack.c.b16 %v1692, %v1686
  %v1843 = vpack.c.b16 %v1693, %v1687
  %v1844 = vpack.c.b16 %v1694, %v1688
  %v1845 = vpack.c.b16 %v1695, %v1689
  %v1846 = vpack.c.b16 %v1696, %v1690
  %v1847 = vpack.c.b16 %v1703, %v1697
  %v1848 = vpack.c.b16 %v1704, %v1698
  %v1849 = vpack.c.b16 %v1705, %v1699
  %v1850 = vpack.c.b16 %v1706, %v1700
  %v1851 = vpack.c.b16 %v1707, %v1701
  %v1852 = vpack.c.b16 %v1708, %v1702
  %v1853 = vpack.c.b16 %v1715, %v1709
  %v1854 = vpack.c.b16 %v1716, %v1710
  %v1855 = vpack.c.b16 %v1717, %v1711
  %v1856 = vpack.c.b16 %v1718, %v1712
  %v1857 = vpack.c.b16 %v1719, %v1713
  %v1858 = vpack.c.b16 %v1720, %v1714
  %v1859 = vpack.c.b16 %v1727, %v1721
  %v1860 = vpack.c.b16 %v1728, %v1722
  %v1861 = vpack.c.b16 %v1729, %v1723
  %v1862 = vpack.c.b16 %v1730, %v1724
  %v1863 = vpack.c.b16 %v1731, %v1725
  %v1864 = vpack.c.b16 %v1732, %v1726
  %v1865 = vpack.c.b16 %v1739, %v1733
  %v1866 = vpack.c.b16 %v1740, %v1734
  %v1867 = vpack.c.b16 %v1741, %v1735
  %v1868 = vpack.c.b16 %v1742, %v1736
  %v1869 = vpack.c.b16 %v1743, %v1737
  %v1870 = vpack.c.b16 %v1744, %v1738
  %v1871 = vpack.c.b16 %v1751, %v1745
  %v1872 = vpack.c.b16 %v1752, %v1746
  %v1873 = vpack.c.b16 %v1753, %v1747
  %v1874 = vpack.c.b16 %v1754, %v1748
  %v1875 = vpack.c.b16 %v1755, %v1749
  %v1876 = vpack.c.b16 %v1756, %v1750
  %v1877 = vpack.c.b16 %v1763, %v1757
  %v1878 = vpack.c.b16 %v1764, %v1758
  %v1879 = vpack.c.b16 %v1765, %v1759
  %v1880 = vpack.c.b16 %v1766, %v1760
  %v1881 = vpack.c.b16 %v1767, %v1761
  %v1882 = vpack.c.b16 %v1768, %v1762
  %v1883 = vpack.c.b16 %v1775, %v1769
  %v1884 = vpack.c.b16 %v1776, %v1770
  %v1885 = vpack.c.b16 %v1777, %v1771
  %v1886 = vpack.c.b16 %v1778, %v1772
  %v1887 = vpack.c.b16 %v1779, %v1773
  %v1888 = vpack.c.b16 %v1780, %v1774
  %v1889 = vpack.c.b16 %v1787, %v1781
  %v1890 = vpack.c.b16 %v1788, %v1782
  %v1891 = vpack.c.b16 %v1789, %v1783
  %v1892 = vpack.c.b16 %v1790, %v1784
  %v1893 = vpack.c.b16 %v1791, %v1785
  %v1894 = vpack.c.b16 %v1792, %v1786
  %v1895 = vpack.c.b16 %v1799, %v1793
  %v1896 = vpack.c.b16 %v1800, %v1794
  %v1897 = vpack.c.b16 %v1801, %v1795
  %v1898 = vpack.c.b16 %v1802, %v1796
  %v1899 = vpack.c.b16 %v1803, %v1797
  %v1900 = vpack.c.b16 %v1804, %v1798
  %1997 = vmatprep.subr.bf16.mxu0 %v1806
  %1998 = vmatpush1.bf16.msra.mxu0 %v1805
  %1999 = vmatprep.subr.bf16.mxu0 %v1812
  %2000 = vmatpush1.bf16.msra.mxu0 %v1811
  %2001 = vmatprep.subr.bf16.mxu0 %v1818
  %2002 = vmatpush1.bf16.msra.mxu0 %v1817
  %2003 = vmatprep.subr.bf16.mxu0 %v1824
  %2004 = vmatpush1.bf16.msra.mxu0 %v1823
  %2005 = vmatprep.subr.bf16.mxu0 %v1830
  %2006 = vmatpush1.bf16.msra.mxu0 %v1829
  %2007 = vmatprep.subr.bf16.mxu0 %v1836
  %2008 = vmatpush1.bf16.msra.mxu0 %v1835
  %2009 = vmatprep.subr.bf16.mxu0 %v1842
  %2010 = vmatpush1.bf16.msra.mxu0 %v1841
  %2011 = vmatprep.subr.bf16.mxu0 %v1848
  %2012 = vmatpush1.bf16.msra.mxu0 %v1847
  %2013 = vmatprep.subr.bf16.mxu0 %v1854
  %2014 = vmatpush1.bf16.msra.mxu0 %v1853
  %2015 = vmatprep.subr.bf16.mxu0 %v1860
  %2016 = vmatpush1.bf16.msra.mxu0 %v1859
  %2017 = vmatprep.subr.bf16.mxu0 %v1866
  %2018 = vmatpush1.bf16.msra.mxu0 %v1865
  %2019 = vmatprep.subr.bf16.mxu0 %v1872
  %2020 = vmatpush1.bf16.msra.mxu0 %v1871
  %2021 = vmatprep.subr.bf16.mxu0 %v1878
  %2022 = vmatpush1.bf16.msra.mxu0 %v1877
  %2023 = vmatprep.subr.bf16.mxu0 %v1884
  %2024 = vmatpush1.bf16.msra.mxu0 %v1883
  %2025 = vmatprep.subr.bf16.mxu0 %v1890
  %2026 = vmatpush1.bf16.msra.mxu0 %v1889
  %2027 = vmatprep.subr.bf16.mxu0 %v1896
  %2028 = vmatpush1.bf16.msra.mxu0 %v1895
  %2029 = vmatprep.mubr.bf16.mxu0 %v1386
  %2030 = vmatmul.mubr.bf16.gmra.mrb[0].mxu0 %v1385
  %v2031 = vpop.f32.mrb[0].mxu0
  %v2032 = vadd.f32 %v1490, %v2031
  %v2033 = vpop.f32.mrb[0].mxu0
  %v2034 = vadd.f32 %v1494, %v2033
  %v2035 = vpop.f32.mrb[0].mxu0
  %v2036 = vadd.f32 %v1490, %v2035
  %v2037 = vpop.f32.mrb[0].mxu0
  %v2038 = vadd.f32 %v1494, %v2037
  %2039 = vmatprep.mubr.bf16.mxu0 %v1388
  %2040 = vmatmul.mubr.bf16.gmra.mrb[0].mxu0 %v1387
  %v2041 = vpop.f32.mrb[0].mxu0
  %v2042 = vadd.f32 %v1490, %v2041
  %v2043 = vpop.f32.mrb[0].mxu0
  %v2044 = vadd.f32 %v1494, %v2043
  %v2045 = vpop.f32.mrb[0].mxu0
  %v2046 = vadd.f32 %v1490, %v2045
  %v2047 = vpop.f32.mrb[0].mxu0
  %v2048 = vadd.f32 %v1494, %v2047
  %2049 = vdwg.mxu0
  %2050 = vmatprep.subr.bf16.mxu0 %v1808
  %2051 = vmatpush1.bf16.msra.mxu0 %v1807
  %2052 = vmatprep.subr.bf16.mxu0 %v1814
  %2053 = vmatpush1.bf16.msra.mxu0 %v1813
  %2054 = vmatprep.subr.bf16.mxu0 %v1820
  %2055 = vmatpush1.bf16.msra.mxu0 %v1819
  %2056 = vmatprep.subr.bf16.mxu0 %v1826
  %2057 = vmatpush1.bf16.msra.mxu0 %v1825
  %2058 = vmatprep.subr.bf16.mxu0 %v1832
  %2059 = vmatpush1.bf16.msra.mxu0 %v1831
  %2060 = vmatprep.subr.bf16.mxu0 %v1838
  %2061 = vmatpush1.bf16.msra.mxu0 %v1837
  %2062 = vmatprep.subr.bf16.mxu0 %v1844
  %2063 = vmatpush1.bf16.msra.mxu0 %v1843
  %2064 = vmatprep.subr.bf16.mxu0 %v1850
  %2065 = vmatpush1.bf16.msra.mxu0 %v1849
  %2066 = vmatprep.subr.bf16.mxu0 %v1856
  %2067 = vmatpush1.bf16.msra.mxu0 %v1855
  %2068 = vmatprep.subr.bf16.mxu0 %v1862
  %2069 = vmatpush1.bf16.msra.mxu0 %v1861
  %2070 = vmatprep.subr.bf16.mxu0 %v1868
  %2071 = vmatpush1.bf16.msra.mxu0 %v1867
  %2072 = vmatprep.subr.bf16.mxu0 %v1874
  %2073 = vmatpush1.bf16.msra.mxu0 %v1873
  %2074 = vmatprep.subr.bf16.mxu0 %v1880
  %2075 = vmatpush1.bf16.msra.mxu0 %v1879
  %2076 = vmatprep.subr.bf16.mxu0 %v1886
  %2077 = vmatpush1.bf16.msra.mxu0 %v1885
  %2078 = vmatprep.subr.bf16.mxu0 %v1892
  %2079 = vmatpush1.bf16.msra.mxu0 %v1891
  %2080 = vmatprep.subr.bf16.mxu0 %v1898
  %2081 = vmatpush1.bf16.msra.mxu0 %v1897
  %2082 = vmatprep.mubr.bf16.mxu0 %v1386
  %2083 = vmatmul.mubr.bf16.gmra.mrb[0].mxu0 %v1385
  %v2084 = vpop.f32.mrb[0].mxu0
  %v2085 = vadd.f32 %v1498, %v2084
  %v2086 = vpop.f32.mrb[0].mxu0
  %v2087 = vadd.f32 %v1502, %v2086
  %v2088 = vpop.f32.mrb[0].mxu0
  %v2089 = vadd.f32 %v1498, %v2088
  %v2090 = vpop.f32.mrb[0].mxu0
  %v2091 = vadd.f32 %v1502, %v2090
  %2092 = vmatprep.mubr.bf16.mxu0 %v1388
  %2093 = vmatmul.mubr.bf16.gmra.mrb[0].mxu0 %v1387
  %v2094 = vpop.f32.mrb[0].mxu0
  %v2095 = vadd.f32 %v1498, %v2094
  %v2096 = vpop.f32.mrb[0].mxu0
  %v2097 = vadd.f32 %v1502, %v2096
  %v2098 = vpop.f32.mrb[0].mxu0
  %v2099 = vadd.f32 %v1498, %v2098
  %v2100 = vpop.f32.mrb[0].mxu0
  %v2101 = vadd.f32 %v1502, %v2100
  %2102 = vdwg.mxu0
  %2103 = vmatprep.subr.bf16.mxu0 %v1810
  %2104 = vmatpush1.bf16.msra.mxu0 %v1809
  %2105 = vmatprep.subr.bf16.mxu0 %v1816
  %2106 = vmatpush1.bf16.msra.mxu0 %v1815
  %2107 = vmatprep.subr.bf16.mxu0 %v1822
  %2108 = vmatpush1.bf16.msra.mxu0 %v1821
  %2109 = vmatprep.subr.bf16.mxu0 %v1828
  %2110 = vmatpush1.bf16.msra.mxu0 %v1827
  %2111 = vmatprep.subr.bf16.mxu0 %v1834
  %2112 = vmatpush1.bf16.msra.mxu0 %v1833
  %2113 = vmatprep.subr.bf16.mxu0 %v1840
  %2114 = vmatpush1.bf16.msra.mxu0 %v1839
  %2115 = vmatprep.subr.bf16.mxu0 %v1846
  %2116 = vmatpush1.bf16.msra.mxu0 %v1845
  %2117 = vmatprep.subr.bf16.mxu0 %v1852
  %2118 = vmatpush1.bf16.msra.mxu0 %v1851
  %2119 = vmatprep.subr.bf16.mxu0 %v1858
  %2120 = vmatpush1.bf16.msra.mxu0 %v1857
  %2121 = vmatprep.subr.bf16.mxu0 %v1864
  %2122 = vmatpush1.bf16.msra.mxu0 %v1863
  %2123 = vmatprep.subr.bf16.mxu0 %v1870
  %2124 = vmatpush1.bf16.msra.mxu0 %v1869
  %2125 = vmatprep.subr.bf16.mxu0 %v1876
  %2126 = vmatpush1.bf16.msra.mxu0 %v1875
  %2127 = vmatprep.subr.bf16.mxu0 %v1882
  %2128 = vmatpush1.bf16.msra.mxu0 %v1881
  %2129 = vmatprep.subr.bf16.mxu0 %v1888
  %2130 = vmatpush1.bf16.msra.mxu0 %v1887
  %2131 = vmatprep.subr.bf16.mxu0 %v1894
  %2132 = vmatpush1.bf16.msra.mxu0 %v1893
  %2133 = vmatprep.subr.bf16.mxu0 %v1900
  %2134 = vmatpush1.bf16.msra.mxu0 %v1899
  %2135 = vmatprep.mubr.bf16.mxu0 %v1386
  %2136 = vmatmul.mubr.bf16.gmra.mrb[0].mxu0 %v1385
  %v2137 = vpop.f32.mrb[0].mxu0
  %v2138 = vadd.f32 %v1506, %v2137
  %v2139 = vpop.f32.mrb[0].mxu0
  %v2140 = vadd.f32 %v1510, %v2139
  %v2141 = vpop.f32.mrb[0].mxu0
  %v2142 = vadd.f32 %v1506, %v2141
  %v2143 = vpop.f32.mrb[0].mxu0
  %v2144 = vadd.f32 %v1510, %v2143
  %2145 = vmatprep.mubr.bf16.mxu0 %v1388
  %2146 = vmatmul.mubr.bf16.gmra.mrb[0].mxu0 %v1387
  %v2147 = vpop.f32.mrb[0].mxu0
  %v2148 = vadd.f32 %v1506, %v2147
  %v2149 = vpop.f32.mrb[0].mxu0
  %v2150 = vadd.f32 %v1510, %v2149
  %v2151 = vpop.f32.mrb[0].mxu0
  %v2152 = vadd.f32 %v1506, %v2151
  %v2153 = vpop.f32.mrb[0].mxu0
  %v2154 = vadd.f32 %v1510, %v2153
  %2155 = vdwg.mxu0
  %2156 = vst [vmem:[%s5] sm:$0xff] %v2032
  %2157 = vst [vmem:[%s5 + $0x8] sm:$0xff] %v2034
  %2158 = vst [vmem:[%s5 + $0x10] sm:$0xff] %v2085
  %2159 = vst [vmem:[%s5 + $0x18] sm:$0xff] %v2087
  %2160 = vst [vmem:[%s5 + $0x20] sm:$0xff] %v2138
  %2161 = vst [vmem:[%s5 + $0x28] sm:$0xff] %v2140
  %2162 = vst [vmem:[%s5 + $0x30] sm:$0xff] %v2036
  %2163 = vst [vmem:[%s5 + $0x38] sm:$0xff] %v2038
  %2164 = vst [vmem:[%s5 + $0x40] sm:$0xff] %v2089
  %2165 = vst [vmem:[%s5 + $0x48] sm:$0xff] %v2091
  %2166 = vst [vmem:[%s5 + $0x50] sm:$0xff] %v2142
  %2167 = vst [vmem:[%s5 + $0x58] sm:$0xff] %v2144
  %2168 = vst [vmem:[%s5 + $0x60] sm:$0xff] %v2042
  %2169 = vst [vmem:[%s5 + $0x68] sm:$0xff] %v2044
  %2170 = vst [vmem:[%s5 + $0x70] sm:$0xff] %v2095
  %2171 = vst [vmem:[%s5 + $0x78] sm:$0xff] %v2097
  %2172 = vst [vmem:[%s5 + $0x80] sm:$0xff] %v2148
  %2173 = vst [vmem:[%s5 + $0x88] sm:$0xff] %v2150
  %2174 = vst [vmem:[%s5 + $0x90] sm:$0xff] %v2046
  %2175 = vst [vmem:[%s5 + $0x98] sm:$0xff] %v2048
  %2176 = vst [vmem:[%s5 + $0xa0] sm:$0xff] %v2099
  %2177 = vst [vmem:[%s5 + $0xa8] sm:$0xff] %v2101
  %2178 = vst [vmem:[%s5 + $0xb0] sm:$0xff] %v2152
  %2179 = vst [vmem:[%s5 + $0xb8] sm:$0xff] %v2154
  // Predicated region
  $region22: #{_lambda_.3} parent=0 // pred_check
    _
  $region23: #{_lambda_.3} parent=0 // pred_check_branch
    %2181 = sbr.rel (0) target = $region25
  $region24: #{_lambda_.3} parent=0 // pred_region
    _
  $region25: #{_lambda_.3} parent=0 // pred_fallthru
    _
  // Predicated region
  $region26: #{_lambda_.3} parent=0 // pred_check
    _
  $region27: #{_lambda_.3} parent=0 // pred_check_branch
    %2183 = sbr.rel (0) target = $region29
  $region28: #{_lambda_.3} parent=0 // pred_region
    _
  $region29: #{_lambda_.3} parent=0 // pred_fallthru
    _

</llo_original>
